<compile_context>
chip_gen: v7x
topology: tpu7x:2x2x1
jax: 0.10.0
libtpu: 0.0.40
codegen_flags: <defaults>
</compile_context>

<pallas_src>
import jax
import jax.numpy as jnp
from jax.experimental import pallas as pl
from jax.experimental.pallas import tpu as pltpu


# ----------------------------------------------------------------------------
# host-side helpers (tiny constant matrices)
# ----------------------------------------------------------------------------
def _bilinear_matrix(n_in, n_out, dtype=jnp.float32):
    """align_corners=True interpolation matrix (nn.UpsamplingBilinear2d)."""
    src = jnp.arange(n_out, dtype=jnp.float32) * (n_in - 1) / (n_out - 1)
    lo = jnp.clip(jnp.floor(src).astype(jnp.int32), 0, n_in - 1)
    hi = jnp.clip(lo + 1, 0, n_in - 1)
    frac = src - lo.astype(jnp.float32)
    a = jnp.zeros((n_out, n_in), dtype)
    a = a.at[jnp.arange(n_out), lo].add((1.0 - frac).astype(dtype))
    a = a.at[jnp.arange(n_out), hi].add(frac.astype(dtype))
    return a


def _spatial_band_matrix(sa_w, ow):
    """(14*(OW+6), OW) banded matrix implementing the 2->1 7x7 conv (pad=3).

    Block row (c*7 + dh) is a (OW+6, OW) band B with B[o+dw, o] = sa_w[c,dh,dw],
    so sum_j sp_pad[c, oh+dh, j] * B[j, o] = sum_dw sa_w[c,dh,dw] *
    sp_pad[c, oh+dh, o+dw] — the whole 7x7 conv becomes one MXU matmul.
    """
    p = ow + 6
    o = jnp.arange(ow)
    bands = []
    for c in range(2):
        for dh in range(7):
            b = jnp.zeros((p, ow), jnp.float32)
            for dw in range(7):
                b = b.at[o + dw, o].set(sa_w[c, dh, dw])
            bands.append(b)
    return jnp.concatenate(bands, axis=0)           # (14*(OW+6), OW)


# ----------------------------------------------------------------------------
# wrapper + Pallas kernel (one grid step per batch element)
# ----------------------------------------------------------------------------
def upsampling_layer(x_nchw, params):
    B, C, H, W = x_nchw.shape
    OH, OW = 2 * H, 2 * W
    Cout = params['conv_w'].shape[-1]
    mid = params['ca_w1'].shape[1]

    # Fused 2x bilinear upsample as a single matmul on the flattened spatial
    # axis: kron(Ah, Aw) maps (H*W) -> (OH*OW), keeping C on the lane axis.
    # TODO(synk): for large images replace the kron matrix (O((H*W)^2) bytes)
    # with separable in-kernel row/col interpolation + an H-tiled grid.
    ah = _bilinear_matrix(H, OH)
    aw = _bilinear_matrix(W, OW)
    a_up = jnp.kron(ah, aw).astype(jnp.bfloat16)                 # (OH*OW, H*W)

    sa_band = _spatial_band_matrix(params['sa_w'], OW).astype(jnp.bfloat16)
    wc = params['conv_w'].reshape(9 * C, Cout).astype(jnp.bfloat16)

    # Fold eval-mode BatchNorm + conv bias into one (2, Cout) scale/shift
    # constant (row 0 = scale, row 1 = shift) -> a single small DMA.
    bn_inv = params['bn_gamma'] / jnp.sqrt(params['bn_var'] + 1e-5)
    scale = bn_inv.astype(jnp.float32)
    shift = ((params['conv_b'] - params['bn_mean']) * bn_inv
             + params['bn_beta']).astype(jnp.float32)
    bn = jnp.stack([scale, shift], axis=0)                       # (2, Cout)

    # Channels-last, flattened spatial axis; bf16 halves the input DMA.
    x_flat = (jnp.transpose(x_nchw, (0, 2, 3, 1))
              .reshape(B, H * W, C).astype(jnp.bfloat16))

    def kernel(x_ref, aup_ref, w1_ref, w2_ref, band_ref, wc_ref, bn_ref,
               o_ref, sp_pad, conv_pad):
        # ---- bilinear 2x upsample: one MXU matmul ---------------------------
        up = jnp.dot(aup_ref[...], x_ref[0],
                     preferred_element_type=jnp.float32)         # (OH*OW, C)

        # ---- channel attention: avg & max pooled rows share one MLP pass ----
        # (kept in f32 — two (2,C)x(C,mid) matmuls are negligible on the MXU
        #  and the pooled statistics are precision-sensitive).
        pooled = jnp.concatenate(
            [jnp.mean(up, axis=0, keepdims=True),
             jnp.max(up, axis=0, keepdims=True)], axis=0)        # (2, C)
        hid = jnp.maximum(
            jnp.dot(pooled, w1_ref[...], preferred_element_type=jnp.float32),
            0.0)
        att = jnp.dot(hid, w2_ref[...], preferred_element_type=jnp.float32)
        ca = jax.nn.sigmoid(att[0:1] + att[1:2])                 # (1, C)
        xc = up * ca
        xc3 = xc.reshape(OH, OW, C)

        # ---- spatial attention: 7x7 conv as ONE banded matmul ---------------
        # sp_pad is re-zeroed every step (tiny buffer) -> no cross-iteration
        # state, so the batch grid axis stays safely "parallel".
        sp_pad[...] = jnp.zeros_like(sp_pad)
        sp_pad[0, 3:3 + OH, 3:3 + OW] = jnp.mean(xc3, axis=-1)
        sp_pad[1, 3:3 + OH, 3:3 + OW] = jnp.max(xc3, axis=-1)
        rows = [sp_pad[c, dh:dh + OH, :] for c in range(2) for dh in range(7)]
        lhs = jnp.concatenate(rows, axis=-1).astype(jnp.bfloat16)  # (OH, 14*(OW+6))
        sa = jnp.dot(lhs, band_ref[...],
                     preferred_element_type=jnp.float32)         # (OH, OW)
        xs3 = xc3 * jax.nn.sigmoid(sa).reshape(OH, OW, 1)

        # ---- 3x3 conv (pad=1) as ONE K=9*C im2col matmul + folded BN --------
        # Only the 1-pixel border is zeroed per step; interior is fully
        # overwritten, so no stale data and no cross-iteration dependence.
        zrow = jnp.zeros((1, OW + 2, C), jnp.float32)
        zcol = jnp.zeros((OH, 1, C), jnp.float32)
        conv_pad[0:1, :, :] = zrow
        conv_pad[OH + 1:OH + 2, :, :] = zrow
        conv_pad[1:1 + OH, 0:1, :] = zcol
        conv_pad[1:1 + OH, OW + 1:OW + 2, :] = zcol
        conv_pad[1:1 + OH, 1:1 + OW, :] = xs3

        patches = jnp.concatenate(
            [conv_pad[dh:dh + OH, dw:dw + OW, :].reshape(OH * OW, C)
             for dh in range(3) for dw in range(3)],
            axis=-1).astype(jnp.bfloat16)                        # (OH*OW, 9*C)
        y = jnp.dot(patches, wc_ref[...],
                    preferred_element_type=jnp.float32)          # (OH*OW, Cout)
        # folded conv-bias + BatchNorm: per-channel scale / shift
        o_ref[0] = y * bn_ref[0:1, :] + bn_ref[1:2, :]

    out = pl.pallas_call(
        kernel,
        out_shape=jax.ShapeDtypeStruct((B, OH * OW, Cout), jnp.float32),
        grid_spec=pltpu.PrefetchScalarGridSpec(
            num_scalar_prefetch=0,
            grid=(B,),
            in_specs=[
                pl.BlockSpec((1, H * W, C), lambda b: (b, 0, 0)),
                pl.BlockSpec((OH * OW, H * W), lambda b: (0, 0)),
                pl.BlockSpec((C, mid), lambda b: (0, 0)),
                pl.BlockSpec((mid, C), lambda b: (0, 0)),
                pl.BlockSpec((14 * (OW + 6), OW), lambda b: (0, 0)),
                pl.BlockSpec((9 * C, Cout), lambda b: (0, 0)),
                pl.BlockSpec((2, Cout), lambda b: (0, 0)),
            ],
            out_specs=pl.BlockSpec((1, OH * OW, Cout), lambda b: (b, 0, 0)),
            scratch_shapes=[
                pltpu.VMEM((2, OH + 6, OW + 6), jnp.float32),   # padded SA maps
                pltpu.VMEM((OH + 2, OW + 2, C), jnp.float32),   # padded conv in
            ]),
        compiler_params=pltpu.CompilerParams(
            # Independent output block per batch element -> legal "parallel";
            # lets v7x shard the batch loop across its two TensorCores.
            dimension_semantics=("parallel",),
            # Explicit VMEM budget, safe on v5e/v6e/v7x at these shapes.
            # TODO(synk): for large images add an H-tile grid axis (1-row halo
            # for the 3x3, 3-row halo for the 7x7) to fit v7x's 64 MiB VMEM.
            vmem_limit_bytes=32 * 1024 * 1024),
    )(x_flat, a_up, params['ca_w1'].astype(jnp.float32),
      params['ca_w2'].astype(jnp.float32), sa_band, wc, bn)

    # Back to NCHW to match the PyTorch module.
    # TODO(synk): drop this transpose if the consumer accepts NHWC.
    return jnp.transpose(out.reshape(B, OH, OW, Cout), (0, 3, 1, 2))


# ----------------------------------------------------------------------------
# deterministic synthetic parameters (shapes from UpsamplingLayer.__init__)
# ----------------------------------------------------------------------------
def init_params(key, dim, out_dim, ratio=16):
    mid = max(dim // ratio, 1)
    ks = jax.random.split(key, 8)
    p = {}
    p['ca_w1'] = 0.3 * jax.random.normal(ks[0], (dim, mid), jnp.float32)
    p['ca_w2'] = 0.3 * jax.random.normal(ks[1], (mid, dim), jnp.float32)
    p['sa_w'] = 0.1 * jax.random.normal(ks[2], (2, 7, 7), jnp.float32)
    p['conv_w'] = jax.random.normal(ks[3], (3, 3, dim, out_dim),
                                    jnp.float32) / jnp.sqrt(9.0 * dim)
    p['conv_b'] = 0.05 * jax.random.normal(ks[4], (out_dim,), jnp.float32)
    # BatchNorm2d (eval mode) affine params + running statistics
    p['bn_gamma'] = 1.0 + 0.1 * jax.random.normal(ks[5], (out_dim,), jnp.float32)
    p['bn_beta'] = 0.1 * jax.random.normal(ks[6], (out_dim,), jnp.float32)
    p['bn_mean'] = 0.1 * jax.random.normal(ks[7], (out_dim,), jnp.float32)
    p['bn_var'] = 0.9 * jnp.ones((out_dim,), jnp.float32)
    return p


# ----------------------------------------------------------------------------
# pure-JAX reference for correctness checking
# ----------------------------------------------------------------------------
def reference(x_nchw, params):
    B, C, H, W = x_nchw.shape
    ah = _bilinear_matrix(H, 2 * H)
    aw = _bilinear_matrix(W, 2 * W)
    x = jnp.transpose(x_nchw, (0, 2, 3, 1)).astype(jnp.float32)
    x = jnp.einsum('oh,pw,bhwc->bopc', ah, aw, x)
    # channel attention
    avg_p = jnp.mean(x, axis=(1, 2))
    max_p = jnp.max(x, axis=(1, 2))

    def mlp(p):
        return jnp.maximum(p @ params['ca_w1'], 0.0) @ params['ca_w2']

    ca = jax.nn.sigmoid(mlp(avg_p) + mlp(max_p))
    x = x * ca[:, None, None, :]
    # spatial attention
    sp = jnp.stack([jnp.mean(x, axis=-1), jnp.max(x, axis=-1)], axis=-1)
    sa_k = jnp.transpose(params['sa_w'], (1, 2, 0))[..., None]
    sa = jax.lax.conv_general_dilated(
        sp, sa_k, (1, 1), [(3, 3), (3, 3)],
        dimension_numbers=('NHWC', 'HWIO', 'NHWC'))
    x = x * jax.nn.sigmoid(sa)
    # 3x3 conv + bias + eval-mode BatchNorm
    y = jax.lax.conv_general_dilated(
        x, params['conv_w'], (1, 1), [(1, 1), (1, 1)],
        dimension_numbers=('NHWC', 'HWIO', 'NHWC')) + params['conv_b']
    y = ((y - params['bn_mean']) / jnp.sqrt(params['bn_var'] + 1e-5)
         * params['bn_gamma'] + params['bn_beta'])
    return jnp.transpose(y, (0, 3, 1, 2))


if __name__ == "__main__":
    key = jax.random.PRNGKey(0)
    kx, kp = jax.random.split(key)
    B, C, H, W = 2, 32, 8, 8            # dim=32, ratio=16 -> hidden 2
    out_dim = 16
    x = jax.random.normal(kx, (B, C, H, W), jnp.float32)
    params = init_params(kp, C, out_dim)

    y = jax.block_until_ready(upsampling_layer(x, params))
    assert y.shape == (B, out_dim, 2 * H, 2 * W), y.shape

    y_ref = jax.block_until_ready(reference(x, params))
    err = float(jnp.max(jnp.abs(y - y_ref)))
    assert err < 5e-2, f"max abs err too large: {err}"
    print("KERNEL_OK")
</pallas_src>

<mosaic_0001>
module attributes {stable_mosaic.version = 11 : i64} {
  func.func @kernel(%arg0: i32, %arg1: memref<1x64x32xbf16, #tpu.memory_space<vmem>>, %arg2: memref<256x64xbf16, #tpu.memory_space<vmem>>, %arg3: memref<32x2xf32, #tpu.memory_space<vmem>>, %arg4: memref<2x32xf32, #tpu.memory_space<vmem>>, %arg5: memref<308x16xbf16, #tpu.memory_space<vmem>>, %arg6: memref<288x16xbf16, #tpu.memory_space<vmem>>, %arg7: memref<2x16xf32, #tpu.memory_space<vmem>>, %arg8: memref<1x256x16xf32, #tpu.memory_space<vmem>>, %arg9: memref<2x22x22xf32, #tpu.memory_space<vmem>>, %arg10: memref<18x18x32xf32, #tpu.memory_space<vmem>>) attributes {dimension_semantics = [#tpu.dimension_semantics<parallel>], iteration_bounds = array<i64: 2>, scalar_prefetch = 0 : i64, scratch_operands = 2 : i64, tpu.core_type = #tpu.core_type<tc>, window_params = [{transform_indices = @transform_0, window_bounds = array<i64: 1, 64, 32>}, {pipeline_mode = #tpu.pipeline_mode<synchronous>, transform_indices = @transform_1, window_bounds = array<i64: 256, 64>}, {pipeline_mode = #tpu.pipeline_mode<synchronous>, transform_indices = @transform_2, window_bounds = array<i64: 32, 2>}, {pipeline_mode = #tpu.pipeline_mode<synchronous>, transform_indices = @transform_3, window_bounds = array<i64: 2, 32>}, {pipeline_mode = #tpu.pipeline_mode<synchronous>, transform_indices = @transform_4, window_bounds = array<i64: 308, 16>}, {pipeline_mode = #tpu.pipeline_mode<synchronous>, transform_indices = @transform_5, window_bounds = array<i64: 288, 16>}, {pipeline_mode = #tpu.pipeline_mode<synchronous>, transform_indices = @transform_6, window_bounds = array<i64: 2, 16>}, {transform_indices = @transform_7, window_bounds = array<i64: 1, 256, 16>}]} {
    %c0 = arith.constant 0 : index
    %c0_0 = arith.constant 0 : index
    %0 = vector.load %arg2[%c0, %c0_0] : memref<256x64xbf16, #tpu.memory_space<vmem>>, vector<256x64xbf16>
    %c0_1 = arith.constant 0 : index
    %c0_2 = arith.constant 0 : index
    %c0_3 = arith.constant 0 : index
    %1 = vector.load %arg1[%c0_1, %c0_2, %c0_3] : memref<1x64x32xbf16, #tpu.memory_space<vmem>>, vector<1x64x32xbf16>
    %2 = vector.shape_cast %1 : vector<1x64x32xbf16> to vector<64x32xbf16>
    %cst = arith.constant dense<0.000000e+00> : vector<256x32xf32>
    %3 = tpu.matmul %0, %2, %cst {dimension_numbers = #tpu.dot_dimension_numbers<[1], [0], [0], [1], [0, 0, 1, 1], [], []>} : vector<256x64xbf16>, vector<64x32xbf16>, vector<256x32xf32> -> vector<256x32xf32>
    %cst_4 = arith.constant dense<0.000000e+00> : vector<32xf32>
    %4 = vector.multi_reduction <add>, %3, %cst_4 [0] : vector<256x32xf32> to vector<32xf32>
    %5 = vector.shape_cast %4 : vector<32xf32> to vector<1x32xf32>
    %cst_5 = arith.constant 2.560000e+02 : f32
    %6 = vector.broadcast %cst_5 : f32 to vector<1x32xf32>
    %7 = arith.divf %5, %6 : vector<1x32xf32>
    %cst_6 = arith.constant dense<0xFF800000> : vector<32xf32>
    %8 = vector.multi_reduction <maximumf>, %3, %cst_6 [0] : vector<256x32xf32> to vector<32xf32>
    %9 = vector.shape_cast %8 : vector<32xf32> to vector<1x32xf32>
    %10 = tpu.concatenate %7, %9 in 0 : vector<1x32xf32>, vector<1x32xf32> -> vector<2x32xf32>
    %c0_7 = arith.constant 0 : index
    %c0_8 = arith.constant 0 : index
    %11 = vector.load %arg3[%c0_7, %c0_8] : memref<32x2xf32, #tpu.memory_space<vmem>>, vector<32x2xf32>
    %cst_9 = arith.constant dense<0.000000e+00> : vector<2x2xf32>
    %12 = tpu.matmul %10, %11, %cst_9 {dimension_numbers = #tpu.dot_dimension_numbers<[1], [0], [0], [1], [0, 0, 1, 1], [], []>} : vector<2x32xf32>, vector<32x2xf32>, vector<2x2xf32> -> vector<2x2xf32>
    %cst_10 = arith.constant 0.000000e+00 : f32
    %13 = vector.broadcast %cst_10 : f32 to vector<2x2xf32>
    %14 = arith.maximumf %12, %13 : vector<2x2xf32>
    %c0_11 = arith.constant 0 : index
    %c0_12 = arith.constant 0 : index
    %15 = vector.load %arg4[%c0_11, %c0_12] : memref<2x32xf32, #tpu.memory_space<vmem>>, vector<2x32xf32>
    %cst_13 = arith.constant dense<0.000000e+00> : vector<2x32xf32>
    %16 = tpu.matmul %14, %15, %cst_13 {dimension_numbers = #tpu.dot_dimension_numbers<[1], [0], [0], [1], [0, 0, 1, 1], [], []>} : vector<2x2xf32>, vector<2x32xf32>, vector<2x32xf32> -> vector<2x32xf32>
    %17 = vector.extract_strided_slice %16 {offsets = [0, 0], sizes = [1, 32], strides = [1, 1]} : vector<2x32xf32> to vector<1x32xf32>
    %18 = vector.extract_strided_slice %16 {offsets = [1, 0], sizes = [1, 32], strides = [1, 1]} : vector<2x32xf32> to vector<1x32xf32>
    %19 = arith.addf %17, %18 : vector<1x32xf32>
    %20 = arith.negf %19 : vector<1x32xf32>
    %21 = math.exp %20 : vector<1x32xf32>
    %cst_14 = arith.constant 1.000000e+00 : f32
    %22 = vector.broadcast %cst_14 : f32 to vector<1x32xf32>
    %23 = arith.addf %22, %21 : vector<1x32xf32>
    %24 = arith.divf %22, %23 : vector<1x32xf32>
    %25 = vector.broadcast %24 : vector<1x32xf32> to vector<256x32xf32>
    %26 = arith.mulf %3, %25 : vector<256x32xf32>
    %27 = vector.shape_cast %26 : vector<256x32xf32> to vector<16x16x32xf32>
    %cst_15 = arith.constant 0.000000e+00 : f32
    %28 = vector.broadcast %cst_15 : f32 to vector<2x22x22xf32>
    %c0_16 = arith.constant 0 : index
    %c0_17 = arith.constant 0 : index
    %c0_18 = arith.constant 0 : index
    %29 = vector.load %arg9[%c0_16, %c0_17, %c0_18] : memref<2x22x22xf32, #tpu.memory_space<vmem>>, vector<2x22x22xf32>
    tpu.vector_store %arg9[%c0_16, %c0_17, %c0_18], %28 {strides = array<i32>} : memref<2x22x22xf32, #tpu.memory_space<vmem>>, vector<2x22x22xf32>,
    %cst_19 = arith.constant dense<0.000000e+00> : vector<16x16xf32>
    %30 = vector.multi_reduction <add>, %27, %cst_19 [2] : vector<16x16x32xf32> to vector<16x16xf32>
    %cst_20 = arith.constant 3.200000e+01 : f32
    %31 = vector.broadcast %cst_20 : f32 to vector<16x16xf32>
    %32 = arith.divf %30, %31 : vector<16x16xf32>
    %c0_21 = arith.constant 0 : index
    %c3 = arith.constant 3 : index
    %c3_22 = arith.constant 3 : index
    %33 = vector.load %arg9[%c0_21, %c3, %c3_22] : memref<2x22x22xf32, #tpu.memory_space<vmem>>, vector<1x16x16xf32>
    %34 = vector.shape_cast %33 : vector<1x16x16xf32> to vector<16x16xf32>
    %35 = vector.shape_cast %32 : vector<16x16xf32> to vector<1x16x16xf32>
    tpu.vector_store %arg9[%c0_21, %c3, %c3_22], %35 {strides = array<i32>} : memref<2x22x22xf32, #tpu.memory_space<vmem>>, vector<1x16x16xf32>,
    %cst_23 = arith.constant dense<0xFF800000> : vector<16x16xf32>
    %36 = vector.multi_reduction <maximumf>, %27, %cst_23 [2] : vector<16x16x32xf32> to vector<16x16xf32>
    %c1 = arith.constant 1 : index
    %c3_24 = arith.constant 3 : index
    %c3_25 = arith.constant 3 : index
    %37 = vector.load %arg9[%c1, %c3_24, %c3_25] : memref<2x22x22xf32, #tpu.memory_space<vmem>>, vector<1x16x16xf32>
    %38 = vector.shape_cast %37 : vector<1x16x16xf32> to vector<16x16xf32>
    %39 = vector.shape_cast %36 : vector<16x16xf32> to vector<1x16x16xf32>
    tpu.vector_store %arg9[%c1, %c3_24, %c3_25], %39 {strides = array<i32>} : memref<2x22x22xf32, #tpu.memory_space<vmem>>, vector<1x16x16xf32>,
    %c0_26 = arith.constant 0 : index
    %c0_27 = arith.constant 0 : index
    %c0_28 = arith.constant 0 : index
    %40 = vector.load %arg9[%c0_26, %c0_27, %c0_28] : memref<2x22x22xf32, #tpu.memory_space<vmem>>, vector<1x16x22xf32>
    %41 = vector.shape_cast %40 : vector<1x16x22xf32> to vector<16x22xf32>
    %c0_29 = arith.constant 0 : index
    %c1_30 = arith.constant 1 : index
    %c0_31 = arith.constant 0 : index
    %42 = vector.load %arg9[%c0_29, %c1_30, %c0_31] : memref<2x22x22xf32, #tpu.memory_space<vmem>>, vector<1x16x22xf32>
    %43 = vector.shape_cast %42 : vector<1x16x22xf32> to vector<16x22xf32>
    %c0_32 = arith.constant 0 : index
    %c2 = arith.constant 2 : index
    %c0_33 = arith.constant 0 : index
    %44 = vector.load %arg9[%c0_32, %c2, %c0_33] : memref<2x22x22xf32, #tpu.memory_space<vmem>>, vector<1x16x22xf32>
    %45 = vector.shape_cast %44 : vector<1x16x22xf32> to vector<16x22xf32>
    %c0_34 = arith.constant 0 : index
    %c3_35 = arith.constant 3 : index
    %c0_36 = arith.constant 0 : index
    %46 = vector.load %arg9[%c0_34, %c3_35, %c0_36] : memref<2x22x22xf32, #tpu.memory_space<vmem>>, vector<1x16x22xf32>
    %47 = vector.shape_cast %46 : vector<1x16x22xf32> to vector<16x22xf32>
    %c0_37 = arith.constant 0 : index
    %c4 = arith.constant 4 : index
    %c0_38 = arith.constant 0 : index
    %48 = vector.load %arg9[%c0_37, %c4, %c0_38] : memref<2x22x22xf32, #tpu.memory_space<vmem>>, vector<1x16x22xf32>
    %49 = vector.shape_cast %48 : vector<1x16x22xf32> to vector<16x22xf32>
    %c0_39 = arith.constant 0 : index
    %c5 = arith.constant 5 : index
    %c0_40 = arith.constant 0 : index
    %50 = vector.load %arg9[%c0_39, %c5, %c0_40] : memref<2x22x22xf32, #tpu.memory_space<vmem>>, vector<1x16x22xf32>
    %51 = vector.shape_cast %50 : vector<1x16x22xf32> to vector<16x22xf32>
    %c0_41 = arith.constant 0 : index
    %c6 = arith.constant 6 : index
    %c0_42 = arith.constant 0 : index
    %52 = vector.load %arg9[%c0_41, %c6, %c0_42] : memref<2x22x22xf32, #tpu.memory_space<vmem>>, vector<1x16x22xf32>
    %53 = vector.shape_cast %52 : vector<1x16x22xf32> to vector<16x22xf32>
    %c1_43 = arith.constant 1 : index
    %c0_44 = arith.constant 0 : index
    %c0_45 = arith.constant 0 : index
    %54 = vector.load %arg9[%c1_43, %c0_44, %c0_45] : memref<2x22x22xf32, #tpu.memory_space<vmem>>, vector<1x16x22xf32>
    %55 = vector.shape_cast %54 : vector<1x16x22xf32> to vector<16x22xf32>
    %c1_46 = arith.constant 1 : index
    %c1_47 = arith.constant 1 : index
    %c0_48 = arith.constant 0 : index
    %56 = vector.load %arg9[%c1_46, %c1_47, %c0_48] : memref<2x22x22xf32, #tpu.memory_space<vmem>>, vector<1x16x22xf32>
    %57 = vector.shape_cast %56 : vector<1x16x22xf32> to vector<16x22xf32>
    %c1_49 = arith.constant 1 : index
    %c2_50 = arith.constant 2 : index
    %c0_51 = arith.constant 0 : index
    %58 = vector.load %arg9[%c1_49, %c2_50, %c0_51] : memref<2x22x22xf32, #tpu.memory_space<vmem>>, vector<1x16x22xf32>
    %59 = vector.shape_cast %58 : vector<1x16x22xf32> to vector<16x22xf32>
    %c1_52 = arith.constant 1 : index
    %c3_53 = arith.constant 3 : index
    %c0_54 = arith.constant 0 : index
    %60 = vector.load %arg9[%c1_52, %c3_53, %c0_54] : memref<2x22x22xf32, #tpu.memory_space<vmem>>, vector<1x16x22xf32>
    %61 = vector.shape_cast %60 : vector<1x16x22xf32> to vector<16x22xf32>
    %c1_55 = arith.constant 1 : index
    %c4_56 = arith.constant 4 : index
    %c0_57 = arith.constant 0 : index
    %62 = vector.load %arg9[%c1_55, %c4_56, %c0_57] : memref<2x22x22xf32, #tpu.memory_space<vmem>>, vector<1x16x22xf32>
    %63 = vector.shape_cast %62 : vector<1x16x22xf32> to vector<16x22xf32>
    %c1_58 = arith.constant 1 : index
    %c5_59 = arith.constant 5 : index
    %c0_60 = arith.constant 0 : index
    %64 = vector.load %arg9[%c1_58, %c5_59, %c0_60] : memref<2x22x22xf32, #tpu.memory_space<vmem>>, vector<1x16x22xf32>
    %65 = vector.shape_cast %64 : vector<1x16x22xf32> to vector<16x22xf32>
    %c1_61 = arith.constant 1 : index
    %c6_62 = arith.constant 6 : index
    %c0_63 = arith.constant 0 : index
    %66 = vector.load %arg9[%c1_61, %c6_62, %c0_63] : memref<2x22x22xf32, #tpu.memory_space<vmem>>, vector<1x16x22xf32>
    %67 = vector.shape_cast %66 : vector<1x16x22xf32> to vector<16x22xf32>
    %68 = tpu.concatenate %41, %43, %45, %47, %49, %51, %53, %55, %57, %59, %61, %63, %65, %67 in 1 : vector<16x22xf32>, vector<16x22xf32>, vector<16x22xf32>, vector<16x22xf32>, vector<16x22xf32>, vector<16x22xf32>, vector<16x22xf32>, vector<16x22xf32>, vector<16x22xf32>, vector<16x22xf32>, vector<16x22xf32>, vector<16x22xf32>, vector<16x22xf32>, vector<16x22xf32> -> vector<16x308xf32>
    %69 = arith.truncf %68 : vector<16x308xf32> to vector<16x308xbf16>
    %c0_64 = arith.constant 0 : index
    %c0_65 = arith.constant 0 : index
    %70 = vector.load %arg5[%c0_64, %c0_65] : memref<308x16xbf16, #tpu.memory_space<vmem>>, vector<308x16xbf16>
    %cst_66 = arith.constant dense<0.000000e+00> : vector<16x16xf32>
    %71 = tpu.matmul %69, %70, %cst_66 {dimension_numbers = #tpu.dot_dimension_numbers<[1], [0], [0], [1], [0, 0, 1, 1], [], []>} : vector<16x308xbf16>, vector<308x16xbf16>, vector<16x16xf32> -> vector<16x16xf32>
    %72 = arith.negf %71 : vector<16x16xf32>
    %73 = math.exp %72 : vector<16x16xf32>
    %cst_67 = arith.constant 1.000000e+00 : f32
    %74 = vector.broadcast %cst_67 : f32 to vector<16x16xf32>
    %75 = arith.addf %74, %73 : vector<16x16xf32>
    %76 = arith.divf %74, %75 : vector<16x16xf32>
    %77 = vector.shape_cast %76 : vector<16x16xf32> to vector<16x16x1xf32>
    %78 = vector.broadcast %77 : vector<16x16x1xf32> to vector<16x16x32xf32>
    %79 = arith.mulf %27, %78 : vector<16x16x32xf32>
    %cst_68 = arith.constant 0.000000e+00 : f32
    %80 = vector.broadcast %cst_68 : f32 to vector<1x18x32xf32>
    %cst_69 = arith.constant 0.000000e+00 : f32
    %81 = vector.broadcast %cst_69 : f32 to vector<16x1x32xf32>
    %c0_70 = arith.constant 0 : index
    %c0_71 = arith.constant 0 : index
    %c0_72 = arith.constant 0 : index
    %82 = vector.load %arg10[%c0_70, %c0_71, %c0_72] : memref<18x18x32xf32, #tpu.memory_space<vmem>>, vector<1x18x32xf32>
    tpu.vector_store %arg10[%c0_70, %c0_71, %c0_72], %80 {strides = array<i32>} : memref<18x18x32xf32, #tpu.memory_space<vmem>>, vector<1x18x32xf32>,
    %c17 = arith.constant 17 : index
    %c0_73 = arith.constant 0 : index
    %c0_74 = arith.constant 0 : index
    %83 = vector.load %arg10[%c17, %c0_73, %c0_74] : memref<18x18x32xf32, #tpu.memory_space<vmem>>, vector<1x18x32xf32>
    tpu.vector_store %arg10[%c17, %c0_73, %c0_74], %80 {strides = array<i32>} : memref<18x18x32xf32, #tpu.memory_space<vmem>>, vector<1x18x32xf32>,
    %c1_75 = arith.constant 1 : index
    %c0_76 = arith.constant 0 : index
    %c0_77 = arith.constant 0 : index
    %84 = vector.load %arg10[%c1_75, %c0_76, %c0_77] : memref<18x18x32xf32, #tpu.memory_space<vmem>>, vector<16x1x32xf32>
    tpu.vector_store %arg10[%c1_75, %c0_76, %c0_77], %81 {strides = array<i32>} : memref<18x18x32xf32, #tpu.memory_space<vmem>>, vector<16x1x32xf32>,
    %c1_78 = arith.constant 1 : index
    %c17_79 = arith.constant 17 : index
    %c0_80 = arith.constant 0 : index
    %85 = vector.load %arg10[%c1_78, %c17_79, %c0_80] : memref<18x18x32xf32, #tpu.memory_space<vmem>>, vector<16x1x32xf32>
    tpu.vector_store %arg10[%c1_78, %c17_79, %c0_80], %81 {strides = array<i32>} : memref<18x18x32xf32, #tpu.memory_space<vmem>>, vector<16x1x32xf32>,
    %c1_81 = arith.constant 1 : index
    %c1_82 = arith.constant 1 : index
    %c0_83 = arith.constant 0 : index
    %86 = vector.load %arg10[%c1_81, %c1_82, %c0_83] : memref<18x18x32xf32, #tpu.memory_space<vmem>>, vector<16x16x32xf32>
    tpu.vector_store %arg10[%c1_81, %c1_82, %c0_83], %79 {strides = array<i32>} : memref<18x18x32xf32, #tpu.memory_space<vmem>>, vector<16x16x32xf32>,
    %c0_84 = arith.constant 0 : index
    %c0_85 = arith.constant 0 : index
    %c0_86 = arith.constant 0 : index
    %87 = vector.load %arg10[%c0_84, %c0_85, %c0_86] : memref<18x18x32xf32, #tpu.memory_space<vmem>>, vector<16x16x32xf32>
    %88 = vector.shape_cast %87 : vector<16x16x32xf32> to vector<256x32xf32>
    %c0_87 = arith.constant 0 : index
    %c1_88 = arith.constant 1 : index
    %c0_89 = arith.constant 0 : index
    %89 = vector.load %arg10[%c0_87, %c1_88, %c0_89] : memref<18x18x32xf32, #tpu.memory_space<vmem>>, vector<16x16x32xf32>
    %90 = vector.shape_cast %89 : vector<16x16x32xf32> to vector<256x32xf32>
    %c0_90 = arith.constant 0 : index
    %c2_91 = arith.constant 2 : index
    %c0_92 = arith.constant 0 : index
    %91 = vector.load %arg10[%c0_90, %c2_91, %c0_92] : memref<18x18x32xf32, #tpu.memory_space<vmem>>, vector<16x16x32xf32>
    %92 = vector.shape_cast %91 : vector<16x16x32xf32> to vector<256x32xf32>
    %c1_93 = arith.constant 1 : index
    %c0_94 = arith.constant 0 : index
    %c0_95 = arith.constant 0 : index
    %93 = vector.load %arg10[%c1_93, %c0_94, %c0_95] : memref<18x18x32xf32, #tpu.memory_space<vmem>>, vector<16x16x32xf32>
    %94 = vector.shape_cast %93 : vector<16x16x32xf32> to vector<256x32xf32>
    %c1_96 = arith.constant 1 : index
    %c1_97 = arith.constant 1 : index
    %c0_98 = arith.constant 0 : index
    %95 = vector.load %arg10[%c1_96, %c1_97, %c0_98] : memref<18x18x32xf32, #tpu.memory_space<vmem>>, vector<16x16x32xf32>
    %96 = vector.shape_cast %95 : vector<16x16x32xf32> to vector<256x32xf32>
    %c1_99 = arith.constant 1 : index
    %c2_100 = arith.constant 2 : index
    %c0_101 = arith.constant 0 : index
    %97 = vector.load %arg10[%c1_99, %c2_100, %c0_101] : memref<18x18x32xf32, #tpu.memory_space<vmem>>, vector<16x16x32xf32>
    %98 = vector.shape_cast %97 : vector<16x16x32xf32> to vector<256x32xf32>
    %c2_102 = arith.constant 2 : index
    %c0_103 = arith.constant 0 : index
    %c0_104 = arith.constant 0 : index
    %99 = vector.load %arg10[%c2_102, %c0_103, %c0_104] : memref<18x18x32xf32, #tpu.memory_space<vmem>>, vector<16x16x32xf32>
    %100 = vector.shape_cast %99 : vector<16x16x32xf32> to vector<256x32xf32>
    %c2_105 = arith.constant 2 : index
    %c1_106 = arith.constant 1 : index
    %c0_107 = arith.constant 0 : index
    %101 = vector.load %arg10[%c2_105, %c1_106, %c0_107] : memref<18x18x32xf32, #tpu.memory_space<vmem>>, vector<16x16x32xf32>
    %102 = vector.shape_cast %101 : vector<16x16x32xf32> to vector<256x32xf32>
    %c2_108 = arith.constant 2 : index
    %c2_109 = arith.constant 2 : index
    %c0_110 = arith.constant 0 : index
    %103 = vector.load %arg10[%c2_108, %c2_109, %c0_110] : memref<18x18x32xf32, #tpu.memory_space<vmem>>, vector<16x16x32xf32>
    %104 = vector.shape_cast %103 : vector<16x16x32xf32> to vector<256x32xf32>
    %105 = tpu.concatenate %88, %90, %92, %94, %96, %98, %100, %102, %104 in 1 : vector<256x32xf32>, vector<256x32xf32>, vector<256x32xf32>, vector<256x32xf32>, vector<256x32xf32>, vector<256x32xf32>, vector<256x32xf32>, vector<256x32xf32>, vector<256x32xf32> -> vector<256x288xf32>
    %106 = arith.truncf %105 : vector<256x288xf32> to vector<256x288xbf16>
    %c0_111 = arith.constant 0 : index
    %c0_112 = arith.constant 0 : index
    %107 = vector.load %arg6[%c0_111, %c0_112] : memref<288x16xbf16, #tpu.memory_space<vmem>>, vector<288x16xbf16>
    %cst_113 = arith.constant dense<0.000000e+00> : vector<256x16xf32>
    %108 = tpu.matmul %106, %107, %cst_113 {dimension_numbers = #tpu.dot_dimension_numbers<[1], [0], [0], [1], [0, 0, 1, 1], [], []>} : vector<256x288xbf16>, vector<288x16xbf16>, vector<256x16xf32> -> vector<256x16xf32>
    %c0_114 = arith.constant 0 : index
    %c0_115 = arith.constant 0 : index
    %109 = vector.load %arg7[%c0_114, %c0_115] : memref<2x16xf32, #tpu.memory_space<vmem>>, vector<1x16xf32>
    %110 = vector.broadcast %109 : vector<1x16xf32> to vector<256x16xf32>
    %111 = arith.mulf %108, %110 : vector<256x16xf32>
    %c1_116 = arith.constant 1 : index
    %c0_117 = arith.constant 0 : index
    %112 = vector.load %arg7[%c1_116, %c0_117] : memref<2x16xf32, #tpu.memory_space<vmem>>, vector<1x16xf32>
    %113 = vector.broadcast %112 : vector<1x16xf32> to vector<256x16xf32>
    %114 = arith.addf %111, %113 : vector<256x16xf32>
    %c0_118 = arith.constant 0 : index
    %c0_119 = arith.constant 0 : index
    %c0_120 = arith.constant 0 : index
    %115 = vector.load %arg8[%c0_118, %c0_119, %c0_120] : memref<1x256x16xf32, #tpu.memory_space<vmem>>, vector<1x256x16xf32>
    %116 = vector.shape_cast %115 : vector<1x256x16xf32> to vector<256x16xf32>
    %117 = vector.shape_cast %114 : vector<256x16xf32> to vector<1x256x16xf32>
    tpu.vector_store %arg8[%c0_118, %c0_119, %c0_120], %117 {strides = array<i32>} : memref<1x256x16xf32, #tpu.memory_space<vmem>>, vector<1x256x16xf32>,
    return
  }
  func.func @transform_0(%arg0: i32) -> (i32, i32, i32) {
    %c0_i32 = arith.constant 0 : i32
    %c0_i32_0 = arith.constant 0 : i32
    %c0_i32_1 = arith.constant 0 : i32
    return %arg0, %c0_i32, %c0_i32_0 : i32, i32, i32
  }
  func.func @transform_1(%arg0: i32) -> (i32, i32) {
    %c0_i32 = arith.constant 0 : i32
    %c0_i32_0 = arith.constant 0 : i32
    %c0_i32_1 = arith.constant 0 : i32
    return %c0_i32, %c0_i32_0 : i32, i32
  }
  func.func @transform_2(%arg0: i32) -> (i32, i32) {
    %c0_i32 = arith.constant 0 : i32
    %c0_i32_0 = arith.constant 0 : i32
    %c0_i32_1 = arith.constant 0 : i32
    return %c0_i32, %c0_i32_0 : i32, i32
  }
  func.func @transform_3(%arg0: i32) -> (i32, i32) {
    %c0_i32 = arith.constant 0 : i32
    %c0_i32_0 = arith.constant 0 : i32
    %c0_i32_1 = arith.constant 0 : i32
    return %c0_i32, %c0_i32_0 : i32, i32
  }
  func.func @transform_4(%arg0: i32) -> (i32, i32) {
    %c0_i32 = arith.constant 0 : i32
    %c0_i32_0 = arith.constant 0 : i32
    %c0_i32_1 = arith.constant 0 : i32
    return %c0_i32, %c0_i32_0 : i32, i32
  }
  func.func @transform_5(%arg0: i32) -> (i32, i32) {
    %c0_i32 = arith.constant 0 : i32
    %c0_i32_0 = arith.constant 0 : i32
    %c0_i32_1 = arith.constant 0 : i32
    return %c0_i32, %c0_i32_0 : i32, i32
  }
  func.func @transform_6(%arg0: i32) -> (i32, i32) {
    %c0_i32 = arith.constant 0 : i32
    %c0_i32_0 = arith.constant 0 : i32
    %c0_i32_1 = arith.constant 0 : i32
    return %c0_i32, %c0_i32_0 : i32, i32
  }
  func.func @transform_7(%arg0: i32) -> (i32, i32, i32) {
    %c0_i32 = arith.constant 0 : i32
    %c0_i32_0 = arith.constant 0 : i32
    %c0_i32_1 = arith.constant 0 : i32
    return %arg0, %c0_i32, %c0_i32_0 : i32, i32, i32
  }
}

</mosaic_0001>

<llo_original>
// kernel: tpu_custom_call.1
$region0: #{tpu_custom_call.1}
  #allocation0 [shape = 'u32[]', space=smem, size = 0x4, offset = 0x4, fixed_abs, tag = 'smem constant byte address 0x4 - core index']
  #allocation1 [shape = 'u32[144,128]{1,0:T(1,128)}', space=vmem, size = 0x12000, scoped, tag = 'internal scratch']
  #allocation2 [shape = 'f32[2,22,22]{2,1,0:T(8,128)}', space=vmem, size = 0x6000, scoped, tag = 'scratch operand']
  #allocation3 [shape = 'f32[18,18,32]{2,1,0:T(8,128)}', space=vmem, size = 0x36000, scoped, tag = 'scratch operand']
  %s0 = inlined_call_operand.vmem [shape: bf16[2,64,32], index: 0, kind: input, shape index: {}]
  %s1 = inlined_call_operand.vmem [shape: bf16[256,64], index: 1, kind: input, shape index: {}]
  %s2 = inlined_call_operand.vmem [shape: f32[32,2], index: 2, kind: input, shape index: {}]
  %s3 = inlined_call_operand.vmem [shape: f32[2,32], index: 3, kind: input, shape index: {}]
  %s4 = inlined_call_operand.vmem [shape: bf16[308,16], index: 4, kind: input, shape index: {}]
  %s5 = inlined_call_operand.vmem [shape: bf16[288,16], index: 5, kind: input, shape index: {}]
  %s6 = inlined_call_operand.vmem [shape: f32[2,16], index: 6, kind: input, shape index: {}]
  %s7 = inlined_call_operand.vmem [shape: f32[2,256,16], index: 7, kind: output, shape index: {}]
  %s8 = sld [smem:[#allocation0]]
  $region61: #{tpu_custom_call.1} parent=0
    _
  %s10 = ssub.s32 1, %s8
  %s11 = scalar_select 0, %s10, %s8
  loop: start=0, step=1, limit=4
  $region2: #{tpu_custom_call.1} parent=0 // loop_pre_header
    _
  $region3: #{tpu_custom_call.1} parent=0 // loop_header
    %s13 = sphi 0, %s17
    %p14 = scmp.ge.s32.totalorder %s13, 4
    %s23 = sphi 0, %s25
    %s26 = sphi 0, %s23
    %s27 = sphi 0, %s26
    %s43 = sphi 0, %s27
    %s47 = sphi 0, %s47
    %s49 = sphi 0, %s47
    %s50 = sphi 0, %s49
    %s64 = sphi 0, %s50
    %s68 = sphi 0, %s68
    %s70 = sphi 0, %s68
    %s71 = sphi 0, %s70
    %s85 = sphi 0, %s71
    %s89 = sphi 0, %s89
    %s91 = sphi 0, %s89
    %s92 = sphi 0, %s91
    %s106 = sphi 0, %s92
    %s110 = sphi 0, %s110
    %s112 = sphi 0, %s110
    %s113 = sphi 0, %s112
    %s127 = sphi 0, %s113
    %s131 = sphi 0, %s131
    %s133 = sphi 0, %s131
    %s134 = sphi 0, %s133
    %s148 = sphi 0, %s134
    %s152 = sphi 0, %s152
    %s154 = sphi 0, %s152
    %s155 = sphi 0, %s154
    %s169 = sphi 0, %s155
    %s175 = sphi 0, %s177
    %s178 = sphi 0, %s175
    %s179 = sphi 0, %s178
    %s195 = sphi 0, %s179
  $region4: #{tpu_custom_call.1} parent=0 // loop_header_branch
    %16 = sbr.rel (%p14) target = $region8
  $region5: #{tpu_custom_call.1} parent=0 // loop_body
    %s18 = ssub.s32 %s13, 1
    %s19 = ssub.s32 %s13, 2
    %s20 = sadd.s32 %s13, 1
    %s21 = ssub.s32 %s13, %s20
    %p22 = scmp.eq.s32.totalorder %s21, 0
    %s24 = sadd.s32 %s23, 1
    %s25 = scalar_select %p22, %s23, %s24
    %p28 = pneg %p22
    %p29 = scmp.eq.s32.totalorder %s13, 1
    %p30 = por %p28, %p29
    %p31 = scmp.ne.s32.totalorder %s23, %s26
    %p32 = scmp.eq.s32.totalorder %s13, 0
    %p33 = por %p31, %p32
    %p34 = scmp.ne.s32.totalorder %s23, %s26
    %p35 = scmp.eq.s32.totalorder %s18, 1
    %p36 = por %p34, %p35
    %p37 = scmp.ne.s32.totalorder %s26, %s27
    %p38 = scmp.eq.s32.totalorder %s18, 0
    %p39 = por %p37, %p38
    %p40 = scmp.ne.s32.totalorder %s26, %s27
    %p41 = scmp.eq.s32.totalorder %s19, 1
    %p42 = por %p40, %p41
    %p44 = scmp.ne.s32.totalorder %s27, %s43
    %p45 = scmp.eq.s32.totalorder %s19, 0
    %p46 = por %p44, %p45
    %s48 = sadd.s32 %s47, 1
    %p51 = scmp.eq.s32.totalorder %s13, 1
    %p52 = scmp.ne.s32.totalorder %s47, %s49
    %p53 = scmp.eq.s32.totalorder %s13, 0
    %p54 = por %p52, %p53
    %p55 = scmp.ne.s32.totalorder %s47, %s49
    %p56 = scmp.eq.s32.totalorder %s18, 1
    %p57 = por %p55, %p56
    %p58 = scmp.ne.s32.totalorder %s49, %s50
    %p59 = scmp.eq.s32.totalorder %s18, 0
    %p60 = por %p58, %p59
    %p61 = scmp.ne.s32.totalorder %s49, %s50
    %p62 = scmp.eq.s32.totalorder %s19, 1
    %p63 = por %p61, %p62
    %p65 = scmp.ne.s32.totalorder %s50, %s64
    %p66 = scmp.eq.s32.totalorder %s19, 0
    %p67 = por %p65, %p66
    %s69 = sadd.s32 %s68, 1
    %p72 = scmp.eq.s32.totalorder %s13, 1
    %p73 = scmp.ne.s32.totalorder %s68, %s70
    %p74 = scmp.eq.s32.totalorder %s13, 0
    %p75 = por %p73, %p74
    %p76 = scmp.ne.s32.totalorder %s68, %s70
    %p77 = scmp.eq.s32.totalorder %s18, 1
    %p78 = por %p76, %p77
    %p79 = scmp.ne.s32.totalorder %s70, %s71
    %p80 = scmp.eq.s32.totalorder %s18, 0
    %p81 = por %p79, %p80
    %p82 = scmp.ne.s32.totalorder %s70, %s71
    %p83 = scmp.eq.s32.totalorder %s19, 1
    %p84 = por %p82, %p83
    %p86 = scmp.ne.s32.totalorder %s71, %s85
    %p87 = scmp.eq.s32.totalorder %s19, 0
    %p88 = por %p86, %p87
    %s90 = sadd.s32 %s89, 1
    %p93 = scmp.eq.s32.totalorder %s13, 1
    %p94 = scmp.ne.s32.totalorder %s89, %s91
    %p95 = scmp.eq.s32.totalorder %s13, 0
    %p96 = por %p94, %p95
    %p97 = scmp.ne.s32.totalorder %s89, %s91
    %p98 = scmp.eq.s32.totalorder %s18, 1
    %p99 = por %p97, %p98
    %p100 = scmp.ne.s32.totalorder %s91, %s92
    %p101 = scmp.eq.s32.totalorder %s18, 0
    %p102 = por %p100, %p101
    %p103 = scmp.ne.s32.totalorder %s91, %s92
    %p104 = scmp.eq.s32.totalorder %s19, 1
    %p105 = por %p103, %p104
    %p107 = scmp.ne.s32.totalorder %s92, %s106
    %p108 = scmp.eq.s32.totalorder %s19, 0
    %p109 = por %p107, %p108
    %s111 = sadd.s32 %s110, 1
    %p114 = scmp.eq.s32.totalorder %s13, 1
    %p115 = scmp.ne.s32.totalorder %s110, %s112
    %p116 = scmp.eq.s32.totalorder %s13, 0
    %p117 = por %p115, %p116
    %p118 = scmp.ne.s32.totalorder %s110, %s112
    %p119 = scmp.eq.s32.totalorder %s18, 1
    %p120 = por %p118, %p119
    %p121 = scmp.ne.s32.totalorder %s112, %s113
    %p122 = scmp.eq.s32.totalorder %s18, 0
    %p123 = por %p121, %p122
    %p124 = scmp.ne.s32.totalorder %s112, %s113
    %p125 = scmp.eq.s32.totalorder %s19, 1
    %p126 = por %p124, %p125
    %p128 = scmp.ne.s32.totalorder %s113, %s127
    %p129 = scmp.eq.s32.totalorder %s19, 0
    %p130 = por %p128, %p129
    %s132 = sadd.s32 %s131, 1
    %p135 = scmp.eq.s32.totalorder %s13, 1
    %p136 = scmp.ne.s32.totalorder %s131, %s133
    %p137 = scmp.eq.s32.totalorder %s13, 0
    %p138 = por %p136, %p137
    %p139 = scmp.ne.s32.totalorder %s131, %s133
    %p140 = scmp.eq.s32.totalorder %s18, 1
    %p141 = por %p139, %p140
    %p142 = scmp.ne.s32.totalorder %s133, %s134
    %p143 = scmp.eq.s32.totalorder %s18, 0
    %p144 = por %p142, %p143
    %p145 = scmp.ne.s32.totalorder %s133, %s134
    %p146 = scmp.eq.s32.totalorder %s19, 1
    %p147 = por %p145, %p146
    %p149 = scmp.ne.s32.totalorder %s134, %s148
    %p150 = scmp.eq.s32.totalorder %s19, 0
    %p151 = por %p149, %p150
    %s153 = sadd.s32 %s152, 1
    %p156 = scmp.eq.s32.totalorder %s13, 1
    %p157 = scmp.ne.s32.totalorder %s152, %s154
    %p158 = scmp.eq.s32.totalorder %s13, 0
    %p159 = por %p157, %p158
    %p160 = scmp.ne.s32.totalorder %s152, %s154
    %p161 = scmp.eq.s32.totalorder %s18, 1
    %p162 = por %p160, %p161
    %p163 = scmp.ne.s32.totalorder %s154, %s155
    %p164 = scmp.eq.s32.totalorder %s18, 0
    %p165 = por %p163, %p164
    %p166 = scmp.ne.s32.totalorder %s154, %s155
    %p167 = scmp.eq.s32.totalorder %s19, 1
    %p168 = por %p166, %p167
    %p170 = scmp.ne.s32.totalorder %s155, %s169
    %p171 = scmp.eq.s32.totalorder %s19, 0
    %p172 = por %p170, %p171
    %s173 = ssub.s32 %s13, %s20
    %p174 = scmp.eq.s32.totalorder %s173, 0
    %s176 = sadd.s32 %s175, 1
    %s177 = scalar_select %p174, %s175, %s176
    %p180 = pneg %p174
    %p181 = scmp.eq.s32.totalorder %s13, 1
    %p182 = por %p180, %p181
    %p183 = scmp.ne.s32.totalorder %s175, %s178
    %p184 = scmp.eq.s32.totalorder %s13, 0
    %p185 = por %p183, %p184
    %p186 = scmp.ne.s32.totalorder %s175, %s178
    %p187 = scmp.eq.s32.totalorder %s18, 1
    %p188 = por %p186, %p187
    %p189 = scmp.ne.s32.totalorder %s178, %s179
    %p190 = scmp.eq.s32.totalorder %s18, 0
    %p191 = por %p189, %p190
    %p192 = scmp.ne.s32.totalorder %s178, %s179
    %p193 = scmp.eq.s32.totalorder %s19, 1
    %p194 = por %p192, %p193
    %p196 = scmp.ne.s32.totalorder %s179, %s195
    %p197 = scmp.eq.s32.totalorder %s19, 0
    %p198 = por %p196, %p197
    %p199 = scmp.le.s32.totalorder 1, %s13
    %p200 = scmp.lt.s32.totalorder %s13, 3
    %p201 = pnand %p199, %p200
    %p202 = pneg %p201
    // Predicated region
    $region9: #{tpu_custom_call.1} parent=5 // pred_check
      _
    $region10: #{tpu_custom_call.1} parent=5 // pred_check_branch
      %204 = sbr.rel (%p201) target = $region12
    $region11: #{tpu_custom_call.1} parent=5 // pred_region
      %s205 = ssub.s32 %s13, 1
      // Predicated region
      $region13: #{tpu_custom_call.1} parent=11 // pred_check
        %p206 = pneg %p60
      $region14: #{tpu_custom_call.1} parent=11 // pred_check_branch
        %208 = sbr.rel (%p206) target = $region16
      $region15: #{tpu_custom_call.1} parent=11 // pred_region
        _
      $region16: #{tpu_custom_call.1} parent=11 // pred_fallthru
        _
      // Predicated region
      $region17: #{tpu_custom_call.1} parent=11 // pred_check
        %p209 = pneg %p81
      $region18: #{tpu_custom_call.1} parent=11 // pred_check_branch
        %211 = sbr.rel (%p209) target = $region20
      $region19: #{tpu_custom_call.1} parent=11 // pred_region
        _
      $region20: #{tpu_custom_call.1} parent=11 // pred_fallthru
        _
      // Predicated region
      $region21: #{tpu_custom_call.1} parent=11 // pred_check
        %p212 = pneg %p102
      $region22: #{tpu_custom_call.1} parent=11 // pred_check_branch
        %214 = sbr.rel (%p212) target = $region24
      $region23: #{tpu_custom_call.1} parent=11 // pred_region
        _
      $region24: #{tpu_custom_call.1} parent=11 // pred_fallthru
        _
      // Predicated region
      $region25: #{tpu_custom_call.1} parent=11 // pred_check
        %p215 = pneg %p123
      $region26: #{tpu_custom_call.1} parent=11 // pred_check_branch
        %217 = sbr.rel (%p215) target = $region28
      $region27: #{tpu_custom_call.1} parent=11 // pred_region
        _
      $region28: #{tpu_custom_call.1} parent=11 // pred_fallthru
        _
      // Predicated region
      $region29: #{tpu_custom_call.1} parent=11 // pred_check
        %p218 = pneg %p144
      $region30: #{tpu_custom_call.1} parent=11 // pred_check_branch
        %220 = sbr.rel (%p218) target = $region32
      $region31: #{tpu_custom_call.1} parent=11 // pred_region
        _
      $region32: #{tpu_custom_call.1} parent=11 // pred_fallthru
        _
      // Predicated region
      $region33: #{tpu_custom_call.1} parent=11 // pred_check
        %p221 = pneg %p165
      $region34: #{tpu_custom_call.1} parent=11 // pred_check_branch
        %223 = sbr.rel (%p221) target = $region36
      $region35: #{tpu_custom_call.1} parent=11 // pred_region
        _
      $region36: #{tpu_custom_call.1} parent=11 // pred_fallthru
        _
    $region12: #{tpu_custom_call.1} parent=5 // pred_fallthru
      _
    %p224 = scmp.lt.s32.totalorder %s13, 2
    // Predicated region
    $region37: #{tpu_custom_call.1} parent=5 // pred_check
      %p225 = pneg %p224
    $region38: #{tpu_custom_call.1} parent=5 // pred_check_branch
      %227 = sbr.rel (%p225) target = $region40
    $region39: #{tpu_custom_call.1} parent=5 // pred_region
      // Predicated region
      $region41: #{tpu_custom_call.1} parent=39 // pred_check
        %p228 = pneg %p33
      $region42: #{tpu_custom_call.1} parent=39 // pred_check_branch
        %230 = sbr.rel (%p228) target = $region44
      $region43: #{tpu_custom_call.1} parent=39 // pred_region
        %p231 = scmp.lt.s32.totalorder %s13, 1
        %s232 = scalar_select %p231, %s13, 1
        %s233 = smul.addr %s232, 8
        %s234 = smul.addr %s233, 4
        %s235 = scalar_lea.vmem %s0, %s234
      $region44: #{tpu_custom_call.1} parent=39 // pred_fallthru
        _
    $region40: #{tpu_custom_call.1} parent=5 // pred_fallthru
      _
    %p236 = scmp.le.s32.totalorder 1, %s13
    %p237 = scmp.lt.s32.totalorder %s13, 3
    %p238 = pnand %p236, %p237
    %p239 = pneg %p238
    // Predicated region
    $region45: #{tpu_custom_call.1} parent=5 // pred_check
      _
    $region46: #{tpu_custom_call.1} parent=5 // pred_check_branch
      %241 = sbr.rel (%p238) target = $region48
    $region47: #{tpu_custom_call.1} parent=5 // pred_region
      %s242 = ssub.s32 %s13, 1
      %p243 = scmp.lt.s32.totalorder %s18, 1
      %s244 = scalar_select %p243, %s18, 1
      %s245 = smul.addr %s244, 8
      %s246 = smul.addr %s245, 4
      %s247 = scalar_lea.vmem %s0, %s246
      %p248 = pneg %p39
      %p249 = pneg %p36
      %p250 = pneg %p60
      %p251 = pneg %p57
      %p252 = pneg %p81
      %p253 = pneg %p78
      %p254 = pneg %p102
      %p255 = pneg %p99
      %p256 = pneg %p123
      %p257 = pneg %p120
      %p258 = pneg %p144
      %p259 = pneg %p141
      %p260 = pneg %p165
      %p261 = pneg %p162
      %p262 = pneg %p191
      %p263 = pneg %p188
      %p264 = scmp.lt.s32.totalorder %s18, 1
      %s265 = scalar_select %p264, %s18, 1
      %s266 = smul.addr %s265, 32
      %s267 = smul.addr %s266, 8
      %s268 = scalar_lea.vmem %s7, %s267
      %p269 = scmp.lt.s32.totalorder %s18, 1
      %s270 = scalar_select %p269, %s18, 1
      %s271 = smul.addr %s270, 8
      %s272 = smul.addr %s271, 4
      %s273 = scalar_lea.vmem %s0, %s272
      %p274 = scmp.lt.s32.totalorder %s18, 1
      %s275 = scalar_select %p274, %s18, 1
      %s276 = smul.addr %s275, 32
      %s277 = smul.addr %s276, 8
      %s278 = scalar_lea.vmem %s7, %s277
      %v280 = vld [vmem:[%s1] sm:$0xf]
      %v281 = vld [vmem:[%s1 + $0x4] sm:$0xf]
      %v282 = vld [vmem:[%s1 + $0x8] sm:$0xf]
      %v283 = vld [vmem:[%s1 + $0xc] sm:$0xf]
      %v284 = vld [vmem:[%s1 + $0x10] sm:$0xf]
      %v285 = vld [vmem:[%s1 + $0x14] sm:$0xf]
      %v286 = vld [vmem:[%s1 + $0x18] sm:$0xf]
      %v287 = vld [vmem:[%s1 + $0x1c] sm:$0xf]
      %v288 = vld [vmem:[%s1 + $0x20] sm:$0xf]
      %v289 = vld [vmem:[%s1 + $0x24] sm:$0xf]
      %v290 = vld [vmem:[%s1 + $0x28] sm:$0xf]
      %v291 = vld [vmem:[%s1 + $0x2c] sm:$0xf]
      %v292 = vld [vmem:[%s1 + $0x30] sm:$0xf]
      %v293 = vld [vmem:[%s1 + $0x34] sm:$0xf]
      %v294 = vld [vmem:[%s1 + $0x38] sm:$0xf]
      %v295 = vld [vmem:[%s1 + $0x3c] sm:$0xf]
      %v296 = vld [vmem:[%s1 + $0x40] sm:$0xf]
      %v297 = vld [vmem:[%s1 + $0x44] sm:$0xf]
      %v298 = vld [vmem:[%s1 + $0x48] sm:$0xf]
      %v299 = vld [vmem:[%s1 + $0x4c] sm:$0xf]
      %v300 = vld [vmem:[%s1 + $0x50] sm:$0xf]
      %v301 = vld [vmem:[%s1 + $0x54] sm:$0xf]
      %v302 = vld [vmem:[%s1 + $0x58] sm:$0xf]
      %v303 = vld [vmem:[%s1 + $0x5c] sm:$0xf]
      %v304 = vld [vmem:[%s1 + $0x60] sm:$0xf]
      %v305 = vld [vmem:[%s1 + $0x64] sm:$0xf]
      %v306 = vld [vmem:[%s1 + $0x68] sm:$0xf]
      %v307 = vld [vmem:[%s1 + $0x6c] sm:$0xf]
      %v308 = vld [vmem:[%s1 + $0x70] sm:$0xf]
      %v309 = vld [vmem:[%s1 + $0x74] sm:$0xf]
      %v310 = vld [vmem:[%s1 + $0x78] sm:$0xf]
      %v311 = vld [vmem:[%s1 + $0x7c] sm:$0xf]
      %v312 = vld [vmem:[%s273] sm:$0xf]
      %v313 = vld [vmem:[%s273 + $0x4] sm:$0xf]
      %v314 = vld [vmem:[%s273 + $0x8] sm:$0xf]
      %v315 = vld [vmem:[%s273 + $0xc] sm:$0xf]
      %v316 = vld [vmem:[%s273 + $0x10] sm:$0xf]
      %v317 = vld [vmem:[%s273 + $0x14] sm:$0xf]
      %v318 = vld [vmem:[%s273 + $0x18] sm:$0xf]
      %v319 = vld [vmem:[%s273 + $0x1c] sm:$0xf]
      %v352 = vunpack.c.l.b16 %v280
      %v353 = vunpack.c.l.b16 %v281
      %v354 = vunpack.c.l.b16 %v282
      %v355 = vunpack.c.l.b16 %v283
      %v356 = vunpack.c.l.b16 %v284
      %v357 = vunpack.c.l.b16 %v285
      %v358 = vunpack.c.l.b16 %v286
      %v359 = vunpack.c.l.b16 %v287
      %v360 = vunpack.c.l.b16 %v288
      %v361 = vunpack.c.l.b16 %v289
      %v362 = vunpack.c.l.b16 %v290
      %v363 = vunpack.c.l.b16 %v291
      %v364 = vunpack.c.l.b16 %v292
      %v365 = vunpack.c.l.b16 %v293
      %v366 = vunpack.c.l.b16 %v294
      %v367 = vunpack.c.l.b16 %v295
      %v368 = vunpack.c.l.b16 %v296
      %v369 = vunpack.c.l.b16 %v297
      %v370 = vunpack.c.l.b16 %v298
      %v371 = vunpack.c.l.b16 %v299
      %v372 = vunpack.c.l.b16 %v300
      %v373 = vunpack.c.l.b16 %v301
      %v374 = vunpack.c.l.b16 %v302
      %v375 = vunpack.c.l.b16 %v303
      %v376 = vunpack.c.l.b16 %v304
      %v377 = vunpack.c.l.b16 %v305
      %v378 = vunpack.c.l.b16 %v306
      %v379 = vunpack.c.l.b16 %v307
      %v380 = vunpack.c.l.b16 %v308
      %v381 = vunpack.c.l.b16 %v309
      %v382 = vunpack.c.l.b16 %v310
      %v383 = vunpack.c.l.b16 %v311
      %v384 = vpack.c.b16 %v353, %v352
      %v385 = vpack.c.b16 %v355, %v354
      %v386 = vpack.c.b16 %v357, %v356
      %v387 = vpack.c.b16 %v359, %v358
      %v388 = vpack.c.b16 %v361, %v360
      %v389 = vpack.c.b16 %v363, %v362
      %v390 = vpack.c.b16 %v365, %v364
      %v391 = vpack.c.b16 %v367, %v366
      %v392 = vpack.c.b16 %v369, %v368
      %v393 = vpack.c.b16 %v371, %v370
      %v394 = vpack.c.b16 %v373, %v372
      %v395 = vpack.c.b16 %v375, %v374
      %v396 = vpack.c.b16 %v377, %v376
      %v397 = vpack.c.b16 %v379, %v378
      %v398 = vpack.c.b16 %v381, %v380
      %v399 = vpack.c.b16 %v383, %v382
      %v408 = vunpack.c.l.b16 %v312
      %v409 = vunpack.c.l.b16 %v313
      %v410 = vunpack.c.l.b16 %v314
      %v411 = vunpack.c.l.b16 %v315
      %v412 = vunpack.c.l.b16 %v316
      %v413 = vunpack.c.l.b16 %v317
      %v414 = vunpack.c.l.b16 %v318
      %v415 = vunpack.c.l.b16 %v319
      %v416 = vpack.c.b16 %v409, %v408
      %v417 = vpack.c.b16 %v411, %v410
      %v418 = vpack.c.b16 %v413, %v412
      %v419 = vpack.c.b16 %v415, %v414
      %vm424 = vcmask 523264
      %v426 = vsel %vm424, %v384, 0
      %v429 = vsel %vm424, %v385, 0
      %v432 = vsel %vm424, %v386, 0
      %v435 = vsel %vm424, %v387, 0
      %v438 = vsel %vm424, %v388, 0
      %v441 = vsel %vm424, %v389, 0
      %v444 = vsel %vm424, %v390, 0
      %v447 = vsel %vm424, %v391, 0
      %v450 = vsel %vm424, %v392, 0
      %v453 = vsel %vm424, %v393, 0
      %v456 = vsel %vm424, %v394, 0
      %v459 = vsel %vm424, %v395, 0
      %v462 = vsel %vm424, %v396, 0
      %v465 = vsel %vm424, %v397, 0
      %v468 = vsel %vm424, %v398, 0
      %v471 = vsel %vm424, %v399, 0
      %473 = vmatprep.subr.bf16.mxu0 0
      %474 = vmatpush1.bf16.msra.mxu0 %v416
      %475 = vmatprep.subr.bf16.mxu0 0
      %476 = vmatpush1.bf16.msra.mxu0 %v417
      %477 = vmatprep.subr.bf16.mxu0 0
      %478 = vmatpush1.bf16.msra.mxu0 %v418
      %479 = vmatprep.subr.bf16.mxu0 0
      %480 = vmatpush1.bf16.msra.mxu0 %v419
      %481 = vmatprep.subr.bf16.mxu0 0
      %482 = vmatpush1.bf16.msra.mxu0 0
      %483 = vmatprep.subr.bf16.mxu0 0
      %484 = vmatpush1.bf16.msra.mxu0 0
      %485 = vmatprep.subr.bf16.mxu0 0
      %486 = vmatpush1.bf16.msra.mxu0 0
      %487 = vmatprep.subr.bf16.mxu0 0
      %488 = vmatpush1.bf16.msra.mxu0 0
      %489 = vmatprep.subr.bf16.mxu0 0
      %490 = vmatpush1.bf16.msra.mxu0 0
      %491 = vmatprep.subr.bf16.mxu0 0
      %492 = vmatpush1.bf16.msra.mxu0 0
      %493 = vmatprep.subr.bf16.mxu0 0
      %494 = vmatpush1.bf16.msra.mxu0 0
      %495 = vmatprep.subr.bf16.mxu0 0
      %496 = vmatpush1.bf16.msra.mxu0 0
      %497 = vmatprep.subr.bf16.mxu0 0
      %498 = vmatpush1.bf16.msra.mxu0 0
      %499 = vmatprep.subr.bf16.mxu0 0
      %500 = vmatpush1.bf16.msra.mxu0 0
      %501 = vmatprep.subr.bf16.mxu0 0
      %502 = vmatpush1.bf16.msra.mxu0 0
      %503 = vmatprep.subr.bf16.mxu0 0
      %504 = vmatpush1.bf16.msra.mxu0 0
      %505 = vmatprep.mubr.bf16.mxu0 0
      %506 = vmatmul.mubr.bf16.gmra.mrb[0].mxu0 %v426
      %v507 = vpop.f32.mrb[0].mxu0
      %v508 = vadd.f32 0.0, %v507
      %v509 = vpop.f32.mrb[0].mxu0
      %v510 = vpop.f32.mrb[0].mxu0
      %v511 = vadd.f32 0.0, %v510
      %v512 = vpop.f32.mrb[0].mxu0
      %513 = vmatprep.mubr.bf16.mxu0 0
      %514 = vmatmul.mubr.bf16.gmra.mrb[0].mxu0 %v429
      %v515 = vpop.f32.mrb[0].mxu0
      %v516 = vadd.f32 0.0, %v515
      %v517 = vpop.f32.mrb[0].mxu0
      %v518 = vpop.f32.mrb[0].mxu0
      %v519 = vadd.f32 0.0, %v518
      %v520 = vpop.f32.mrb[0].mxu0
      %521 = vmatprep.mubr.bf16.mxu0 0
      %522 = vmatmul.mubr.bf16.gmra.mrb[0].mxu0 %v432
      %v523 = vpop.f32.mrb[0].mxu0
      %v524 = vadd.f32 0.0, %v523
      %v525 = vpop.f32.mrb[0].mxu0
      %v526 = vpop.f32.mrb[0].mxu0
      %v527 = vadd.f32 0.0, %v526
      %v528 = vpop.f32.mrb[0].mxu0
      %529 = vmatprep.mubr.bf16.mxu0 0
      %530 = vmatmul.mubr.bf16.gmra.mrb[0].mxu0 %v435
      %v531 = vpop.f32.mrb[0].mxu0
      %v532 = vadd.f32 0.0, %v531
      %v533 = vpop.f32.mrb[0].mxu0
      %v534 = vpop.f32.mrb[0].mxu0
      %v535 = vadd.f32 0.0, %v534
      %v536 = vpop.f32.mrb[0].mxu0
      %537 = vmatprep.mubr.bf16.mxu0 0
      %538 = vmatmul.mubr.bf16.gmra.mrb[0].mxu0 %v438
      %v539 = vpop.f32.mrb[0].mxu0
      %v540 = vadd.f32 0.0, %v539
      %v541 = vpop.f32.mrb[0].mxu0
      %v542 = vpop.f32.mrb[0].mxu0
      %v543 = vadd.f32 0.0, %v542
      %v544 = vpop.f32.mrb[0].mxu0
      %545 = vmatprep.mubr.bf16.mxu0 0
      %546 = vmatmul.mubr.bf16.gmra.mrb[0].mxu0 %v441
      %v547 = vpop.f32.mrb[0].mxu0
      %v548 = vadd.f32 0.0, %v547
      %v549 = vpop.f32.mrb[0].mxu0
      %v550 = vpop.f32.mrb[0].mxu0
      %v551 = vadd.f32 0.0, %v550
      %v552 = vpop.f32.mrb[0].mxu0
      %553 = vmatprep.mubr.bf16.mxu0 0
      %554 = vmatmul.mubr.bf16.gmra.mrb[0].mxu0 %v444
      %v555 = vpop.f32.mrb[0].mxu0
      %v556 = vadd.f32 0.0, %v555
      %v557 = vpop.f32.mrb[0].mxu0
      %v558 = vpop.f32.mrb[0].mxu0
      %v559 = vadd.f32 0.0, %v558
      %v560 = vpop.f32.mrb[0].mxu0
      %561 = vmatprep.mubr.bf16.mxu0 0
      %562 = vmatmul.mubr.bf16.gmra.mrb[0].mxu0 %v447
      %v563 = vpop.f32.mrb[0].mxu0
      %v564 = vadd.f32 0.0, %v563
      %v565 = vpop.f32.mrb[0].mxu0
      %v566 = vpop.f32.mrb[0].mxu0
      %v567 = vadd.f32 0.0, %v566
      %v568 = vpop.f32.mrb[0].mxu0
      %569 = vmatprep.mubr.bf16.mxu0 0
      %570 = vmatmul.mubr.bf16.gmra.mrb[0].mxu0 %v450
      %v571 = vpop.f32.mrb[0].mxu0
      %v572 = vadd.f32 0.0, %v571
      %v573 = vpop.f32.mrb[0].mxu0
      %v574 = vpop.f32.mrb[0].mxu0
      %v575 = vadd.f32 0.0, %v574
      %v576 = vpop.f32.mrb[0].mxu0
      %577 = vmatprep.mubr.bf16.mxu0 0
      %578 = vmatmul.mubr.bf16.gmra.mrb[0].mxu0 %v453
      %v579 = vpop.f32.mrb[0].mxu0
      %v580 = vadd.f32 0.0, %v579
      %v581 = vpop.f32.mrb[0].mxu0
      %v582 = vpop.f32.mrb[0].mxu0
      %v583 = vadd.f32 0.0, %v582
      %v584 = vpop.f32.mrb[0].mxu0
      %585 = vmatprep.mubr.bf16.mxu0 0
      %586 = vmatmul.mubr.bf16.gmra.mrb[0].mxu0 %v456
      %v587 = vpop.f32.mrb[0].mxu0
      %v588 = vadd.f32 0.0, %v587
      %v589 = vpop.f32.mrb[0].mxu0
      %v590 = vpop.f32.mrb[0].mxu0
      %v591 = vadd.f32 0.0, %v590
      %v592 = vpop.f32.mrb[0].mxu0
      %593 = vmatprep.mubr.bf16.mxu0 0
      %594 = vmatmul.mubr.bf16.gmra.mrb[0].mxu0 %v459
      %v595 = vpop.f32.mrb[0].mxu0
      %v596 = vadd.f32 0.0, %v595
      %v597 = vpop.f32.mrb[0].mxu0
      %v598 = vpop.f32.mrb[0].mxu0
      %v599 = vadd.f32 0.0, %v598
      %v600 = vpop.f32.mrb[0].mxu0
      %601 = vmatprep.mubr.bf16.mxu0 0
      %602 = vmatmul.mubr.bf16.gmra.mrb[0].mxu0 %v462
      %v603 = vpop.f32.mrb[0].mxu0
      %v604 = vadd.f32 0.0, %v603
      %v605 = vpop.f32.mrb[0].mxu0
      %v606 = vpop.f32.mrb[0].mxu0
      %v607 = vadd.f32 0.0, %v606
      %v608 = vpop.f32.mrb[0].mxu0
      %609 = vmatprep.mubr.bf16.mxu0 0
      %610 = vmatmul.mubr.bf16.gmra.mrb[0].mxu0 %v465
      %v611 = vpop.f32.mrb[0].mxu0
      %v612 = vadd.f32 0.0, %v611
      %v613 = vpop.f32.mrb[0].mxu0
      %v614 = vpop.f32.mrb[0].mxu0
      %v615 = vadd.f32 0.0, %v614
      %v616 = vpop.f32.mrb[0].mxu0
      %617 = vmatprep.mubr.bf16.mxu0 0
      %618 = vmatmul.mubr.bf16.gmra.mrb[0].mxu0 %v468
      %v619 = vpop.f32.mrb[0].mxu0
      %v620 = vadd.f32 0.0, %v619
      %v621 = vpop.f32.mrb[0].mxu0
      %v622 = vpop.f32.mrb[0].mxu0
      %v623 = vadd.f32 0.0, %v622
      %v624 = vpop.f32.mrb[0].mxu0
      %625 = vmatprep.mubr.bf16.mxu0 0
      %626 = vmatmul.mubr.bf16.gmra.mrb[0].mxu0 %v471
      %v627 = vpop.f32.mrb[0].mxu0
      %v628 = vadd.f32 0.0, %v627
      %v629 = vpop.f32.mrb[0].mxu0
      %v630 = vpop.f32.mrb[0].mxu0
      %v631 = vadd.f32 0.0, %v630
      %v632 = vpop.f32.mrb[0].mxu0
      %633 = vdwg.mxu0
      %vm634 = vcmask 261120
      %v635 = vsel %vm634, %v508, 0.0
      %v636 = vsel %vm634, %v511, 0.0
      %v637 = vadd.f32 %v635, %v636
      %v638 = vsel %vm634, %v516, 0.0
      %v639 = vadd.f32 %v637, %v638
      %v640 = vsel %vm634, %v519, 0.0
      %v641 = vadd.f32 %v639, %v640
      %v642 = vsel %vm634, %v524, 0.0
      %v643 = vadd.f32 %v641, %v642
      %v644 = vsel %vm634, %v527, 0.0
      %v645 = vadd.f32 %v643, %v644
      %v646 = vsel %vm634, %v532, 0.0
      %v647 = vadd.f32 %v645, %v646
      %v648 = vsel %vm634, %v535, 0.0
      %v649 = vadd.f32 %v647, %v648
      %v650 = vsel %vm634, %v540, 0.0
      %v651 = vadd.f32 %v649, %v650
      %v652 = vsel %vm634, %v543, 0.0
      %v653 = vadd.f32 %v651, %v652
      %v654 = vsel %vm634, %v548, 0.0
      %v655 = vadd.f32 %v653, %v654
      %v656 = vsel %vm634, %v551, 0.0
      %v657 = vadd.f32 %v655, %v656
      %v658 = vsel %vm634, %v556, 0.0
      %v659 = vadd.f32 %v657, %v658
      %v660 = vsel %vm634, %v559, 0.0
      %v661 = vadd.f32 %v659, %v660
      %v662 = vsel %vm634, %v564, 0.0
      %v663 = vadd.f32 %v661, %v662
      %v664 = vsel %vm634, %v567, 0.0
      %v665 = vadd.f32 %v663, %v664
      %v666 = vsel %vm634, %v572, 0.0
      %v667 = vadd.f32 %v665, %v666
      %v668 = vsel %vm634, %v575, 0.0
      %v669 = vadd.f32 %v667, %v668
      %v670 = vsel %vm634, %v580, 0.0
      %v671 = vadd.f32 %v669, %v670
      %v672 = vsel %vm634, %v583, 0.0
      %v673 = vadd.f32 %v671, %v672
      %v674 = vsel %vm634, %v588, 0.0
      %v675 = vadd.f32 %v673, %v674
      %v676 = vsel %vm634, %v591, 0.0
      %v677 = vadd.f32 %v675, %v676
      %v678 = vsel %vm634, %v596, 0.0
      %v679 = vadd.f32 %v677, %v678
      %v680 = vsel %vm634, %v599, 0.0
      %v681 = vadd.f32 %v679, %v680
      %v682 = vsel %vm634, %v604, 0.0
      %v683 = vadd.f32 %v681, %v682
      %v684 = vsel %vm634, %v607, 0.0
      %v685 = vadd.f32 %v683, %v684
      %v686 = vsel %vm634, %v612, 0.0
      %v687 = vadd.f32 %v685, %v686
      %v688 = vsel %vm634, %v615, 0.0
      %v689 = vadd.f32 %v687, %v688
      %v690 = vsel %vm634, %v620, 0.0
      %v691 = vadd.f32 %v689, %v690
      %v692 = vsel %vm634, %v623, 0.0
      %v693 = vadd.f32 %v691, %v692
      %v694 = vsel %vm634, %v628, 0.0
      %v695 = vadd.f32 %v693, %v694
      %v696 = vsel %vm634, %v631, 0.0
      %v697 = vadd.f32 %v695, %v696
      %v698 = vrot.slane %v697, 4
      %v699 = vadd.f32 %v697, %v698
      %v700 = vrot.slane %v699, 2
      %v701 = vadd.f32 %v699, %v700
      %v702 = vrot.slane %v701, 1
      %v703 = vadd.f32 %v701, %v702
      %v704 = vrcp.pop 256.0
      %v705 = vmul.f32 %v703, %v704
      %v706 = vsel %vm634, %v508, -inf
      %v707 = vsel %vm634, %v511, -inf
      %v708 = vsel %vm634, %v516, -inf
      %v709 = vsel %vm634, %v519, -inf
      %v710 = vsel %vm634, %v524, -inf
      %v711 = vmax.f32 %v706, %v710
      %v712 = vsel %vm634, %v527, -inf
      %v713 = vmax.f32 %v707, %v712
      %v714 = vsel %vm634, %v532, -inf
      %v715 = vmax.f32 %v708, %v714
      %v716 = vsel %vm634, %v535, -inf
      %v717 = vmax.f32 %v709, %v716
      %v718 = vsel %vm634, %v540, -inf
      %v719 = vmax.f32 %v711, %v718
      %v720 = vsel %vm634, %v543, -inf
      %v721 = vmax.f32 %v713, %v720
      %v722 = vsel %vm634, %v548, -inf
      %v723 = vmax.f32 %v715, %v722
      %v724 = vsel %vm634, %v551, -inf
      %v725 = vmax.f32 %v717, %v724
      %v726 = vsel %vm634, %v556, -inf
      %v727 = vmax.f32 %v719, %v726
      %v728 = vsel %vm634, %v559, -inf
      %v729 = vmax.f32 %v721, %v728
      %v730 = vsel %vm634, %v564, -inf
      %v731 = vmax.f32 %v723, %v730
      %v732 = vsel %vm634, %v567, -inf
      %v733 = vmax.f32 %v725, %v732
      %v734 = vsel %vm634, %v572, -inf
      %v735 = vmax.f32 %v727, %v734
      %v736 = vsel %vm634, %v575, -inf
      %v737 = vmax.f32 %v729, %v736
      %v738 = vsel %vm634, %v580, -inf
      %v739 = vmax.f32 %v731, %v738
      %v740 = vsel %vm634, %v583, -inf
      %v741 = vmax.f32 %v733, %v740
      %v742 = vsel %vm634, %v588, -inf
      %v743 = vmax.f32 %v735, %v742
      %v744 = vsel %vm634, %v591, -inf
      %v745 = vmax.f32 %v737, %v744
      %v746 = vsel %vm634, %v596, -inf
      %v747 = vmax.f32 %v739, %v746
      %v748 = vsel %vm634, %v599, -inf
      %v749 = vmax.f32 %v741, %v748
      %v750 = vsel %vm634, %v604, -inf
      %v751 = vmax.f32 %v743, %v750
      %v752 = vsel %vm634, %v607, -inf
      %v753 = vmax.f32 %v745, %v752
      %v754 = vsel %vm634, %v612, -inf
      %v755 = vmax.f32 %v747, %v754
      %v756 = vsel %vm634, %v615, -inf
      %v757 = vmax.f32 %v749, %v756
      %v758 = vsel %vm634, %v620, -inf
      %v759 = vmax.f32 %v751, %v758
      %v760 = vsel %vm634, %v623, -inf
      %v761 = vmax.f32 %v753, %v760
      %v762 = vsel %vm634, %v628, -inf
      %v763 = vmax.f32 %v755, %v762
      %v764 = vsel %vm634, %v631, -inf
      %v765 = vmax.f32 %v757, %v764
      %v766 = vmax.f32 %v759, %v761
      %v767 = vmax.f32 %v763, %v765
      %v768 = vmax.f32 %v766, %v767
      %v769 = vrot.slane %v768, 4
      %v770 = vmax.f32 %v768, %v769
      %v771 = vrot.slane %v770, 2
      %v772 = vmax.f32 %v770, %v771
      %v773 = vrot.slane %v772, 1
      %v774 = vmax.f32 %v772, %v773
      %vm775 = vcmask 1040384
      %v776 = vsel %vm775, %v705, %v774
      %v777 = vld [vmem:[%s2] sm:$0xff]
      %v778 = vld [vmem:[%s2 + $0x8] sm:$0xff]
      %v779 = vld [vmem:[%s2 + $0x10] sm:$0xff]
      %v780 = vld [vmem:[%s2 + $0x18] sm:$0xff]
      %v782 = vsel %vm634, %v776, 0
      %784 = vmatprep.subr.mxu0 0.0
      %785 = vmatpush1.msra.mxu0 %v777
      %786 = vmatprep.subr.mxu0 0.0
      %787 = vmatpush1.msra.mxu0 %v778
      %788 = vmatprep.subr.mxu0 0.0
      %789 = vmatpush1.msra.mxu0 %v779
      %790 = vmatprep.subr.mxu0 0.0
      %791 = vmatpush1.msra.mxu0 %v780
      %792 = vmatprep.subr.mxu0 0.0
      %793 = vmatpush1.msra.mxu0 0.0
      %794 = vmatprep.subr.mxu0 0.0
      %795 = vmatpush1.msra.mxu0 0.0
      %796 = vmatprep.subr.mxu0 0.0
      %797 = vmatpush1.msra.mxu0 0.0
      %798 = vmatprep.subr.mxu0 0.0
      %799 = vmatpush1.msra.mxu0 0.0
      %800 = vmatprep.subr.mxu0 0.0
      %801 = vmatpush1.msra.mxu0 0.0
      %802 = vmatprep.subr.mxu0 0.0
      %803 = vmatpush1.msra.mxu0 0.0
      %804 = vmatprep.subr.mxu0 0.0
      %805 = vmatpush1.msra.mxu0 0.0
      %806 = vmatprep.subr.mxu0 0.0
      %807 = vmatpush1.msra.mxu0 0.0
      %808 = vmatprep.subr.mxu0 0.0
      %809 = vmatpush1.msra.mxu0 0.0
      %810 = vmatprep.subr.mxu0 0.0
      %811 = vmatpush1.msra.mxu0 0.0
      %812 = vmatprep.subr.mxu0 0.0
      %813 = vmatpush1.msra.mxu0 0.0
      %814 = vmatprep.subr.mxu0 0.0
      %815 = vmatpush1.msra.mxu0 0.0
      %816 = vmatprep.subr.mxu0 0.0
      %817 = vmatpush1.msra.mxu0 0.0
      %818 = vmatprep.subr.mxu0 0.0
      %819 = vmatpush1.msra.mxu0 0.0
      %820 = vmatprep.subr.mxu0 0.0
      %821 = vmatpush1.msra.mxu0 0.0
      %822 = vmatprep.subr.mxu0 0.0
      %823 = vmatpush1.msra.mxu0 0.0
      %824 = vmatprep.subr.mxu0 0.0
      %825 = vmatpush1.msra.mxu0 0.0
      %826 = vmatprep.subr.mxu0 0.0
      %827 = vmatpush1.msra.mxu0 0.0
      %828 = vmatprep.subr.mxu0 0.0
      %829 = vmatpush1.msra.mxu0 0.0
      %830 = vmatprep.subr.mxu0 0.0
      %831 = vmatpush1.msra.mxu0 0.0
      %832 = vmatprep.subr.mxu0 0.0
      %833 = vmatpush1.msra.mxu0 0.0
      %834 = vmatprep.subr.mxu0 0.0
      %835 = vmatpush1.msra.mxu0 0.0
      %836 = vmatprep.subr.mxu0 0.0
      %837 = vmatpush1.msra.mxu0 0.0
      %838 = vmatprep.subr.mxu0 0.0
      %839 = vmatpush1.msra.mxu0 0.0
      %840 = vmatprep.subr.mxu0 0.0
      %841 = vmatpush1.msra.mxu0 0.0
      %842 = vmatprep.subr.mxu0 0.0
      %843 = vmatpush1.msra.mxu0 0.0
      %844 = vmatprep.subr.mxu0 0.0
      %845 = vmatpush1.msra.mxu0 0.0
      %846 = vmatprep.subr.mxu0 0.0
      %847 = vmatpush1.msra.mxu0 0.0
      %848 = vmatprep.mubr.f32.mxu0 0.0
      %849 = vmatmul.mubr.f32.gmra.mrb[0].mxu0 %v782
      %v850 = vpop.f32.mrb[0].mxu0
      %v851 = vadd.f32 0.0, %v850
      %v852 = vpop.f32.mrb[0].mxu0
      %853 = vdwg.mxu0
      %v854 = vmax.f32 %v851, 0.0
      %v855 = vld [vmem:[%s3] sm:$0x3]
      %vm856 = vcmask 15360
      %v858 = vsel %vm856, %v854, 0
      %vm860 = vcmask 1041408
      %v862 = vsel %vm860, %v855, 0
      %864 = vmatprep.subr.mxu0 0.0
      %865 = vmatpush1.msra.mxu0 %v862
      %866 = vmatprep.subr.mxu0 0.0
      %867 = vmatpush1.msra.mxu0 0.0
      %868 = vmatprep.subr.mxu0 0.0
      %869 = vmatpush1.msra.mxu0 0.0
      %870 = vmatprep.subr.mxu0 0.0
      %871 = vmatpush1.msra.mxu0 0.0
      %872 = vmatprep.subr.mxu0 0.0
      %873 = vmatpush1.msra.mxu0 0.0
      %874 = vmatprep.subr.mxu0 0.0
      %875 = vmatpush1.msra.mxu0 0.0
      %876 = vmatprep.subr.mxu0 0.0
      %877 = vmatpush1.msra.mxu0 0.0
      %878 = vmatprep.subr.mxu0 0.0
      %879 = vmatpush1.msra.mxu0 0.0
      %880 = vmatprep.subr.mxu0 0.0
      %881 = vmatpush1.msra.mxu0 0.0
      %882 = vmatprep.subr.mxu0 0.0
      %883 = vmatpush1.msra.mxu0 0.0
      %884 = vmatprep.subr.mxu0 0.0
      %885 = vmatpush1.msra.mxu0 0.0
      %886 = vmatprep.subr.mxu0 0.0
      %887 = vmatpush1.msra.mxu0 0.0
      %888 = vmatprep.subr.mxu0 0.0
      %889 = vmatpush1.msra.mxu0 0.0
      %890 = vmatprep.subr.mxu0 0.0
      %891 = vmatpush1.msra.mxu0 0.0
      %892 = vmatprep.subr.mxu0 0.0
      %893 = vmatpush1.msra.mxu0 0.0
      %894 = vmatprep.subr.mxu0 0.0
      %895 = vmatpush1.msra.mxu0 0.0
      %896 = vmatprep.subr.mxu0 0.0
      %897 = vmatpush1.msra.mxu0 0.0
      %898 = vmatprep.subr.mxu0 0.0
      %899 = vmatpush1.msra.mxu0 0.0
      %900 = vmatprep.subr.mxu0 0.0
      %901 = vmatpush1.msra.mxu0 0.0
      %902 = vmatprep.subr.mxu0 0.0
      %903 = vmatpush1.msra.mxu0 0.0
      %904 = vmatprep.subr.mxu0 0.0
      %905 = vmatpush1.msra.mxu0 0.0
      %906 = vmatprep.subr.mxu0 0.0
      %907 = vmatpush1.msra.mxu0 0.0
      %908 = vmatprep.subr.mxu0 0.0
      %909 = vmatpush1.msra.mxu0 0.0
      %910 = vmatprep.subr.mxu0 0.0
      %911 = vmatpush1.msra.mxu0 0.0
      %912 = vmatprep.subr.mxu0 0.0
      %913 = vmatpush1.msra.mxu0 0.0
      %914 = vmatprep.subr.mxu0 0.0
      %915 = vmatpush1.msra.mxu0 0.0
      %916 = vmatprep.subr.mxu0 0.0
      %917 = vmatpush1.msra.mxu0 0.0
      %918 = vmatprep.subr.mxu0 0.0
      %919 = vmatpush1.msra.mxu0 0.0
      %920 = vmatprep.subr.mxu0 0.0
      %921 = vmatpush1.msra.mxu0 0.0
      %922 = vmatprep.subr.mxu0 0.0
      %923 = vmatpush1.msra.mxu0 0.0
      %924 = vmatprep.subr.mxu0 0.0
      %925 = vmatpush1.msra.mxu0 0.0
      %926 = vmatprep.subr.mxu0 0.0
      %927 = vmatpush1.msra.mxu0 0.0
      %928 = vmatprep.mubr.f32.mxu0 0.0
      %929 = vmatmul.mubr.f32.gmra.mrb[0].mxu0 %v858
      %v930 = vpop.f32.mrb[0].mxu0
      %v931 = vadd.f32 0.0, %v930
      %v932 = vpop.f32.mrb[0].mxu0
      %933 = vdwg.mxu0
      %v935 = vrot.slane %v931, 1
      %v937 = vadd.f32 %v931, %v935
      %v938 = vxor.u32 %v937, 2147483648
      %v939 = vmul.f32 %v938, 1.442695
      %v940 = vpow.pop %v939
      %v941 = vadd.f32 %v940, 1.0
      %v942 = vrcp.pop %v941
      %v943 = vmul.f32 1.0, %v942
      %v944 = vlaneseq
      %v945 = vshrl.u32 %v944, 7
      %v946 = vsub.s32 0, %v945
      %v947 = vrot.slane %v943, %v946
      %v948 = vmul.f32 %v508, %v947
      %v949 = vmul.f32 %v511, %v947
      %v950 = vmul.f32 %v516, %v947
      %v951 = vmul.f32 %v519, %v947
      %v952 = vmul.f32 %v524, %v947
      %v953 = vmul.f32 %v527, %v947
      %v954 = vmul.f32 %v532, %v947
      %v955 = vmul.f32 %v535, %v947
      %v956 = vmul.f32 %v540, %v947
      %v957 = vmul.f32 %v543, %v947
      %v958 = vmul.f32 %v548, %v947
      %v959 = vmul.f32 %v551, %v947
      %v960 = vmul.f32 %v556, %v947
      %v961 = vmul.f32 %v559, %v947
      %v962 = vmul.f32 %v564, %v947
      %v963 = vmul.f32 %v567, %v947
      %v964 = vmul.f32 %v572, %v947
      %v965 = vmul.f32 %v575, %v947
      %v966 = vmul.f32 %v580, %v947
      %v967 = vmul.f32 %v583, %v947
      %v968 = vmul.f32 %v588, %v947
      %v969 = vmul.f32 %v591, %v947
      %v970 = vmul.f32 %v596, %v947
      %v971 = vmul.f32 %v599, %v947
      %v972 = vmul.f32 %v604, %v947
      %v973 = vmul.f32 %v607, %v947
      %v974 = vmul.f32 %v612, %v947
      %v975 = vmul.f32 %v615, %v947
      %v976 = vmul.f32 %v620, %v947
      %v977 = vmul.f32 %v623, %v947
      %v978 = vmul.f32 %v628, %v947
      %v979 = vmul.f32 %v631, %v947
      %vm980 = vcmask 179200
      %981 = vst.msk [vmem:[#allocation2] sm:$0xff] %vm980, 0.0
      %982 = vst.msk [vmem:[#allocation2 + $0x8] sm:$0xff] %vm980, 0.0
      %vm983 = vcmask 177152
      %984 = vst.msk [vmem:[#allocation2 + $0x10] sm:$0x3f] %vm983, 0.0
      %985 = vst.msk [vmem:[#allocation2 + $0x18] sm:$0xff] %vm980, 0.0
      %986 = vst.msk [vmem:[#allocation2 + $0x20] sm:$0xff] %vm980, 0.0
      %987 = vst.msk [vmem:[#allocation2 + $0x28] sm:$0x3f] %vm983, 0.0
      %v988 = vsel %vm634, %v948, 0.0
      %989 = vadd.xlane.f32.xlu0 %v988
      %v990 = vpop.xlane.xlu0 %989
      %v991 = vsel %vm634, %v949, 0.0
      %992 = vadd.xlane.f32.xlu0 %v991
      %v993 = vpop.xlane.xlu0 %992
      %v994 = vsel %vm634, %v950, 0.0
      %995 = vadd.xlane.f32.xlu0 %v994
      %v996 = vpop.xlane.xlu0 %995
      %v997 = vsel %vm634, %v951, 0.0
      %998 = vadd.xlane.f32.xlu0 %v997
      %v999 = vpop.xlane.xlu0 %998
      %v1000 = vsel %vm634, %v952, 0.0
      %1001 = vadd.xlane.f32.xlu0 %v1000
      %v1002 = vpop.xlane.xlu0 %1001
      %v1003 = vsel %vm634, %v953, 0.0
      %1004 = vadd.xlane.f32.xlu0 %v1003
      %v1005 = vpop.xlane.xlu0 %1004
      %v1006 = vsel %vm634, %v954, 0.0
      %1007 = vadd.xlane.f32.xlu0 %v1006
      %v1008 = vpop.xlane.xlu0 %1007
      %v1009 = vsel %vm634, %v955, 0.0
      %1010 = vadd.xlane.f32.xlu0 %v1009
      %v1011 = vpop.xlane.xlu0 %1010
      %v1012 = vsel %vm634, %v956, 0.0
      %1013 = vadd.xlane.f32.xlu0 %v1012
      %v1014 = vpop.xlane.xlu0 %1013
      %v1015 = vsel %vm634, %v957, 0.0
      %1016 = vadd.xlane.f32.xlu0 %v1015
      %v1017 = vpop.xlane.xlu0 %1016
      %v1018 = vsel %vm634, %v958, 0.0
      %1019 = vadd.xlane.f32.xlu0 %v1018
      %v1020 = vpop.xlane.xlu0 %1019
      %v1021 = vsel %vm634, %v959, 0.0
      %1022 = vadd.xlane.f32.xlu0 %v1021
      %v1023 = vpop.xlane.xlu0 %1022
      %v1024 = vsel %vm634, %v960, 0.0
      %1025 = vadd.xlane.f32.xlu0 %v1024
      %v1026 = vpop.xlane.xlu0 %1025
      %v1027 = vsel %vm634, %v961, 0.0
      %1028 = vadd.xlane.f32.xlu0 %v1027
      %v1029 = vpop.xlane.xlu0 %1028
      %v1030 = vsel %vm634, %v962, 0.0
      %1031 = vadd.xlane.f32.xlu0 %v1030
      %v1032 = vpop.xlane.xlu0 %1031
      %v1033 = vsel %vm634, %v963, 0.0
      %1034 = vadd.xlane.f32.xlu0 %v1033
      %v1035 = vpop.xlane.xlu0 %1034
      %v1036 = vsel %vm634, %v964, 0.0
      %1037 = vadd.xlane.f32.xlu0 %v1036
      %v1038 = vpop.xlane.xlu0 %1037
      %v1039 = vsel %vm634, %v965, 0.0
      %1040 = vadd.xlane.f32.xlu0 %v1039
      %v1041 = vpop.xlane.xlu0 %1040
      %v1042 = vsel %vm634, %v966, 0.0
      %1043 = vadd.xlane.f32.xlu0 %v1042
      %v1044 = vpop.xlane.xlu0 %1043
      %v1045 = vsel %vm634, %v967, 0.0
      %1046 = vadd.xlane.f32.xlu0 %v1045
      %v1047 = vpop.xlane.xlu0 %1046
      %v1048 = vsel %vm634, %v968, 0.0
      %1049 = vadd.xlane.f32.xlu0 %v1048
      %v1050 = vpop.xlane.xlu0 %1049
      %v1051 = vsel %vm634, %v969, 0.0
      %1052 = vadd.xlane.f32.xlu0 %v1051
      %v1053 = vpop.xlane.xlu0 %1052
      %v1054 = vsel %vm634, %v970, 0.0
      %1055 = vadd.xlane.f32.xlu0 %v1054
      %v1056 = vpop.xlane.xlu0 %1055
      %v1057 = vsel %vm634, %v971, 0.0
      %1058 = vadd.xlane.f32.xlu0 %v1057
      %v1059 = vpop.xlane.xlu0 %1058
      %v1060 = vsel %vm634, %v972, 0.0
      %1061 = vadd.xlane.f32.xlu0 %v1060
      %v1062 = vpop.xlane.xlu0 %1061
      %v1063 = vsel %vm634, %v973, 0.0
      %1064 = vadd.xlane.f32.xlu0 %v1063
      %v1065 = vpop.xlane.xlu0 %1064
      %v1066 = vsel %vm634, %v974, 0.0
      %1067 = vadd.xlane.f32.xlu0 %v1066
      %v1068 = vpop.xlane.xlu0 %1067
      %v1069 = vsel %vm634, %v975, 0.0
      %1070 = vadd.xlane.f32.xlu0 %v1069
      %v1071 = vpop.xlane.xlu0 %1070
      %v1072 = vsel %vm634, %v976, 0.0
      %1073 = vadd.xlane.f32.xlu0 %v1072
      %v1074 = vpop.xlane.xlu0 %1073
      %v1075 = vsel %vm634, %v977, 0.0
      %1076 = vadd.xlane.f32.xlu0 %v1075
      %v1077 = vpop.xlane.xlu0 %1076
      %v1078 = vsel %vm634, %v978, 0.0
      %1079 = vadd.xlane.f32.xlu0 %v1078
      %v1080 = vpop.xlane.xlu0 %1079
      %v1081 = vsel %vm634, %v979, 0.0
      %1082 = vadd.xlane.f32.xlu0 %v1081
      %v1083 = vpop.xlane.xlu0 %1082
      %v1084 = vrcp.pop 32.0
      %v1085 = vmul.f32 %v990, %v1084
      %v1086 = vmul.f32 %v993, %v1084
      %v1087 = vmul.f32 %v996, %v1084
      %v1088 = vmul.f32 %v999, %v1084
      %v1089 = vmul.f32 %v1002, %v1084
      %v1090 = vmul.f32 %v1005, %v1084
      %v1091 = vmul.f32 %v1008, %v1084
      %v1092 = vmul.f32 %v1011, %v1084
      %v1093 = vmul.f32 %v1014, %v1084
      %v1094 = vmul.f32 %v1017, %v1084
      %v1095 = vmul.f32 %v1020, %v1084
      %v1096 = vmul.f32 %v1023, %v1084
      %v1097 = vmul.f32 %v1026, %v1084
      %v1098 = vmul.f32 %v1029, %v1084
      %v1099 = vmul.f32 %v1032, %v1084
      %v1100 = vmul.f32 %v1035, %v1084
      %v1101 = vmul.f32 %v1038, %v1084
      %v1102 = vmul.f32 %v1041, %v1084
      %v1103 = vmul.f32 %v1044, %v1084
      %v1104 = vmul.f32 %v1047, %v1084
      %v1105 = vmul.f32 %v1050, %v1084
      %v1106 = vmul.f32 %v1053, %v1084
      %v1107 = vmul.f32 %v1056, %v1084
      %v1108 = vmul.f32 %v1059, %v1084
      %v1109 = vmul.f32 %v1062, %v1084
      %v1110 = vmul.f32 %v1065, %v1084
      %v1111 = vmul.f32 %v1068, %v1084
      %v1112 = vmul.f32 %v1071, %v1084
      %v1113 = vmul.f32 %v1074, %v1084
      %v1114 = vmul.f32 %v1077, %v1084
      %v1115 = vmul.f32 %v1080, %v1084
      %v1116 = vmul.f32 %v1083, %v1084
      %v1149 = vlaneseq
      %v1150 = vand.u32 %v1149, 127
      %v1151 = vadd.s32 %v1150, 4294967293
      %v1152 = vlaneseq
      %v1153 = vshrl.u32 %v1152, 7
      %v1154 = vsub.s32 %v1151, %v1153
      %v1155 = vrot.slane %v1085, %v1154
      %v1156 = vadd.s32 %v1150, 4294967285
      %v1157 = vlaneseq
      %v1158 = vshrl.u32 %v1157, 7
      %v1159 = vsub.s32 %v1156, %v1158
      %v1160 = vrot.slane %v1086, %v1159
      %vm1161 = vcmask 154712
      %v1162 = vsel %vm1161, %v1160, %v1155
      %v1163 = vlaneseq
      %v1164 = vshrl.u32 %v1163, 7
      %v1165 = vsub.s32 %v1151, %v1164
      %v1166 = vrot.slane %v1087, %v1165
      %v1167 = vlaneseq
      %v1168 = vshrl.u32 %v1167, 7
      %v1169 = vsub.s32 %v1156, %v1168
      %v1170 = vrot.slane %v1088, %v1169
      %v1171 = vsel %vm1161, %v1170, %v1166
      %v1172 = vlaneseq
      %v1173 = vshrl.u32 %v1172, 7
      %v1174 = vsub.s32 %v1151, %v1173
      %v1175 = vrot.slane %v1089, %v1174
      %v1176 = vlaneseq
      %v1177 = vshrl.u32 %v1176, 7
      %v1178 = vsub.s32 %v1156, %v1177
      %v1179 = vrot.slane %v1090, %v1178
      %v1180 = vsel %vm1161, %v1179, %v1175
      %v1181 = vlaneseq
      %v1182 = vshrl.u32 %v1181, 7
      %v1183 = vsub.s32 %v1151, %v1182
      %v1184 = vrot.slane %v1091, %v1183
      %v1185 = vlaneseq
      %v1186 = vshrl.u32 %v1185, 7
      %v1187 = vsub.s32 %v1156, %v1186
      %v1188 = vrot.slane %v1092, %v1187
      %v1189 = vsel %vm1161, %v1188, %v1184
      %v1190 = vlaneseq
      %v1191 = vshrl.u32 %v1190, 7
      %v1192 = vsub.s32 %v1151, %v1191
      %v1193 = vrot.slane %v1093, %v1192
      %v1194 = vlaneseq
      %v1195 = vshrl.u32 %v1194, 7
      %v1196 = vsub.s32 %v1156, %v1195
      %v1197 = vrot.slane %v1094, %v1196
      %v1198 = vsel %vm1161, %v1197, %v1193
      %v1199 = vlaneseq
      %v1200 = vshrl.u32 %v1199, 7
      %v1201 = vsub.s32 %v1151, %v1200
      %v1202 = vrot.slane %v1095, %v1201
      %v1203 = vlaneseq
      %v1204 = vshrl.u32 %v1203, 7
      %v1205 = vsub.s32 %v1156, %v1204
      %v1206 = vrot.slane %v1096, %v1205
      %v1207 = vsel %vm1161, %v1206, %v1202
      %v1208 = vlaneseq
      %v1209 = vshrl.u32 %v1208, 7
      %v1210 = vsub.s32 %v1151, %v1209
      %v1211 = vrot.slane %v1097, %v1210
      %v1212 = vlaneseq
      %v1213 = vshrl.u32 %v1212, 7
      %v1214 = vsub.s32 %v1156, %v1213
      %v1215 = vrot.slane %v1098, %v1214
      %v1216 = vsel %vm1161, %v1215, %v1211
      %v1217 = vlaneseq
      %v1218 = vshrl.u32 %v1217, 7
      %v1219 = vsub.s32 %v1151, %v1218
      %v1220 = vrot.slane %v1099, %v1219
      %v1221 = vlaneseq
      %v1222 = vshrl.u32 %v1221, 7
      %v1223 = vsub.s32 %v1156, %v1222
      %v1224 = vrot.slane %v1100, %v1223
      %v1225 = vsel %vm1161, %v1224, %v1220
      %v1226 = vlaneseq
      %v1227 = vshrl.u32 %v1226, 7
      %v1228 = vsub.s32 %v1151, %v1227
      %v1229 = vrot.slane %v1101, %v1228
      %v1230 = vlaneseq
      %v1231 = vshrl.u32 %v1230, 7
      %v1232 = vsub.s32 %v1156, %v1231
      %v1233 = vrot.slane %v1102, %v1232
      %v1234 = vsel %vm1161, %v1233, %v1229
      %v1235 = vlaneseq
      %v1236 = vshrl.u32 %v1235, 7
      %v1237 = vsub.s32 %v1151, %v1236
      %v1238 = vrot.slane %v1103, %v1237
      %v1239 = vlaneseq
      %v1240 = vshrl.u32 %v1239, 7
      %v1241 = vsub.s32 %v1156, %v1240
      %v1242 = vrot.slane %v1104, %v1241
      %v1243 = vsel %vm1161, %v1242, %v1238
      %v1244 = vlaneseq
      %v1245 = vshrl.u32 %v1244, 7
      %v1246 = vsub.s32 %v1151, %v1245
      %v1247 = vrot.slane %v1105, %v1246
      %v1248 = vlaneseq
      %v1249 = vshrl.u32 %v1248, 7
      %v1250 = vsub.s32 %v1156, %v1249
      %v1251 = vrot.slane %v1106, %v1250
      %v1252 = vsel %vm1161, %v1251, %v1247
      %v1253 = vlaneseq
      %v1254 = vshrl.u32 %v1253, 7
      %v1255 = vsub.s32 %v1151, %v1254
      %v1256 = vrot.slane %v1107, %v1255
      %v1257 = vlaneseq
      %v1258 = vshrl.u32 %v1257, 7
      %v1259 = vsub.s32 %v1156, %v1258
      %v1260 = vrot.slane %v1108, %v1259
      %v1261 = vsel %vm1161, %v1260, %v1256
      %v1262 = vlaneseq
      %v1263 = vshrl.u32 %v1262, 7
      %v1264 = vsub.s32 %v1151, %v1263
      %v1265 = vrot.slane %v1109, %v1264
      %v1266 = vlaneseq
      %v1267 = vshrl.u32 %v1266, 7
      %v1268 = vsub.s32 %v1156, %v1267
      %v1269 = vrot.slane %v1110, %v1268
      %v1270 = vsel %vm1161, %v1269, %v1265
      %v1271 = vlaneseq
      %v1272 = vshrl.u32 %v1271, 7
      %v1273 = vsub.s32 %v1151, %v1272
      %v1274 = vrot.slane %v1111, %v1273
      %v1275 = vlaneseq
      %v1276 = vshrl.u32 %v1275, 7
      %v1277 = vsub.s32 %v1156, %v1276
      %v1278 = vrot.slane %v1112, %v1277
      %v1279 = vsel %vm1161, %v1278, %v1274
      %v1280 = vlaneseq
      %v1281 = vshrl.u32 %v1280, 7
      %v1282 = vsub.s32 %v1151, %v1281
      %v1283 = vrot.slane %v1113, %v1282
      %v1284 = vlaneseq
      %v1285 = vshrl.u32 %v1284, 7
      %v1286 = vsub.s32 %v1156, %v1285
      %v1287 = vrot.slane %v1114, %v1286
      %v1288 = vsel %vm1161, %v1287, %v1283
      %v1289 = vlaneseq
      %v1290 = vshrl.u32 %v1289, 7
      %v1291 = vsub.s32 %v1151, %v1290
      %v1292 = vrot.slane %v1115, %v1291
      %v1293 = vlaneseq
      %v1294 = vshrl.u32 %v1293, 7
      %v1295 = vsub.s32 %v1156, %v1294
      %v1296 = vrot.slane %v1116, %v1295
      %v1297 = vsel %vm1161, %v1296, %v1292
      %vm1298 = vcmask 1041409
      %v1299 = vsel %vm1298, %v1171, %v1162
      %vm1300 = vcmask 1042434
      %v1301 = vsel %vm1300, %v1180, %v1299
      %vm1302 = vcmask 1043459
      %v1303 = vsel %vm1302, %v1189, %v1301
      %vm1304 = vcmask 1044484
      %v1305 = vsel %vm1304, %v1198, %v1303
      %vm1306 = vcmask 1045509
      %v1307 = vsel %vm1306, %v1207, %v1305
      %vm1308 = vcmask 1046534
      %v1309 = vsel %vm1308, %v1216, %v1307
      %vm1310 = vcmask 1047559
      %v1311 = vsel %vm1310, %v1225, %v1309
      %v1312 = vsel %vm1298, %v1243, %v1234
      %v1313 = vsel %vm1300, %v1252, %v1312
      %v1314 = vsel %vm1302, %v1261, %v1313
      %v1315 = vsel %vm1304, %v1270, %v1314
      %v1316 = vsel %vm1306, %v1279, %v1315
      %v1317 = vsel %vm1308, %v1288, %v1316
      %v1318 = vsel %vm1310, %v1297, %v1317
      %vm1321 = vcmask 154648
      %1322 = vst.msk [vmem:[#allocation2 + $0x3] sm:$0xff] %vm1321, %v1311
      %1323 = vst.msk [vmem:[#allocation2 + $0xb] sm:$0xff] %vm1321, %v1318
      %v1324 = vsel %vm634, %v948, -inf
      %1325 = vmax.xlane.f32.xlu0 %v1324
      %v1326 = vpop.xlane.xlu0 %1325
      %v1327 = vsel %vm634, %v949, -inf
      %1328 = vmax.xlane.f32.xlu0 %v1327
      %v1329 = vpop.xlane.xlu0 %1328
      %v1330 = vsel %vm634, %v950, -inf
      %1331 = vmax.xlane.f32.xlu0 %v1330
      %v1332 = vpop.xlane.xlu0 %1331
      %v1333 = vsel %vm634, %v951, -inf
      %1334 = vmax.xlane.f32.xlu0 %v1333
      %v1335 = vpop.xlane.xlu0 %1334
      %v1336 = vsel %vm634, %v952, -inf
      %1337 = vmax.xlane.f32.xlu0 %v1336
      %v1338 = vpop.xlane.xlu0 %1337
      %v1339 = vsel %vm634, %v953, -inf
      %1340 = vmax.xlane.f32.xlu0 %v1339
      %v1341 = vpop.xlane.xlu0 %1340
      %v1342 = vsel %vm634, %v954, -inf
      %1343 = vmax.xlane.f32.xlu0 %v1342
      %v1344 = vpop.xlane.xlu0 %1343
      %v1345 = vsel %vm634, %v955, -inf
      %1346 = vmax.xlane.f32.xlu0 %v1345
      %v1347 = vpop.xlane.xlu0 %1346
      %v1348 = vsel %vm634, %v956, -inf
      %1349 = vmax.xlane.f32.xlu0 %v1348
      %v1350 = vpop.xlane.xlu0 %1349
      %v1351 = vsel %vm634, %v957, -inf
      %1352 = vmax.xlane.f32.xlu0 %v1351
      %v1353 = vpop.xlane.xlu0 %1352
      %v1354 = vsel %vm634, %v958, -inf
      %1355 = vmax.xlane.f32.xlu0 %v1354
      %v1356 = vpop.xlane.xlu0 %1355
      %v1357 = vsel %vm634, %v959, -inf
      %1358 = vmax.xlane.f32.xlu0 %v1357
      %v1359 = vpop.xlane.xlu0 %1358
      %v1360 = vsel %vm634, %v960, -inf
      %1361 = vmax.xlane.f32.xlu0 %v1360
      %v1362 = vpop.xlane.xlu0 %1361
      %v1363 = vsel %vm634, %v961, -inf
      %1364 = vmax.xlane.f32.xlu0 %v1363
      %v1365 = vpop.xlane.xlu0 %1364
      %v1366 = vsel %vm634, %v962, -inf
      %1367 = vmax.xlane.f32.xlu0 %v1366
      %v1368 = vpop.xlane.xlu0 %1367
      %v1369 = vsel %vm634, %v963, -inf
      %1370 = vmax.xlane.f32.xlu0 %v1369
      %v1371 = vpop.xlane.xlu0 %1370
      %v1372 = vsel %vm634, %v964, -inf
      %1373 = vmax.xlane.f32.xlu0 %v1372
      %v1374 = vpop.xlane.xlu0 %1373
      %v1375 = vsel %vm634, %v965, -inf
      %1376 = vmax.xlane.f32.xlu0 %v1375
      %v1377 = vpop.xlane.xlu0 %1376
      %v1378 = vsel %vm634, %v966, -inf
      %1379 = vmax.xlane.f32.xlu0 %v1378
      %v1380 = vpop.xlane.xlu0 %1379
      %v1381 = vsel %vm634, %v967, -inf
      %1382 = vmax.xlane.f32.xlu0 %v1381
      %v1383 = vpop.xlane.xlu0 %1382
      %v1384 = vsel %vm634, %v968, -inf
      %1385 = vmax.xlane.f32.xlu0 %v1384
      %v1386 = vpop.xlane.xlu0 %1385
      %v1387 = vsel %vm634, %v969, -inf
      %1388 = vmax.xlane.f32.xlu0 %v1387
      %v1389 = vpop.xlane.xlu0 %1388
      %v1390 = vsel %vm634, %v970, -inf
      %1391 = vmax.xlane.f32.xlu0 %v1390
      %v1392 = vpop.xlane.xlu0 %1391
      %v1393 = vsel %vm634, %v971, -inf
      %1394 = vmax.xlane.f32.xlu0 %v1393
      %v1395 = vpop.xlane.xlu0 %1394
      %v1396 = vsel %vm634, %v972, -inf
      %1397 = vmax.xlane.f32.xlu0 %v1396
      %v1398 = vpop.xlane.xlu0 %1397
      %v1399 = vsel %vm634, %v973, -inf
      %1400 = vmax.xlane.f32.xlu0 %v1399
      %v1401 = vpop.xlane.xlu0 %1400
      %v1402 = vsel %vm634, %v974, -inf
      %1403 = vmax.xlane.f32.xlu0 %v1402
      %v1404 = vpop.xlane.xlu0 %1403
      %v1405 = vsel %vm634, %v975, -inf
      %1406 = vmax.xlane.f32.xlu0 %v1405
      %v1407 = vpop.xlane.xlu0 %1406
      %v1408 = vsel %vm634, %v976, -inf
      %1409 = vmax.xlane.f32.xlu0 %v1408
      %v1410 = vpop.xlane.xlu0 %1409
      %v1411 = vsel %vm634, %v977, -inf
      %1412 = vmax.xlane.f32.xlu0 %v1411
      %v1413 = vpop.xlane.xlu0 %1412
      %v1414 = vsel %vm634, %v978, -inf
      %1415 = vmax.xlane.f32.xlu0 %v1414
      %v1416 = vpop.xlane.xlu0 %1415
      %v1417 = vsel %vm634, %v979, -inf
      %1418 = vmax.xlane.f32.xlu0 %v1417
      %v1419 = vpop.xlane.xlu0 %1418
      %v1452 = vlaneseq
      %v1453 = vshrl.u32 %v1452, 7
      %v1454 = vsub.s32 %v1151, %v1453
      %v1455 = vrot.slane %v1326, %v1454
      %v1456 = vlaneseq
      %v1457 = vshrl.u32 %v1456, 7
      %v1458 = vsub.s32 %v1156, %v1457
      %v1459 = vrot.slane %v1329, %v1458
      %v1460 = vsel %vm1161, %v1459, %v1455
      %v1461 = vlaneseq
      %v1462 = vshrl.u32 %v1461, 7
      %v1463 = vsub.s32 %v1151, %v1462
      %v1464 = vrot.slane %v1332, %v1463
      %v1465 = vlaneseq
      %v1466 = vshrl.u32 %v1465, 7
      %v1467 = vsub.s32 %v1156, %v1466
      %v1468 = vrot.slane %v1335, %v1467
      %v1469 = vsel %vm1161, %v1468, %v1464
      %v1470 = vlaneseq
      %v1471 = vshrl.u32 %v1470, 7
      %v1472 = vsub.s32 %v1151, %v1471
      %v1473 = vrot.slane %v1338, %v1472
      %v1474 = vlaneseq
      %v1475 = vshrl.u32 %v1474, 7
      %v1476 = vsub.s32 %v1156, %v1475
      %v1477 = vrot.slane %v1341, %v1476
      %v1478 = vsel %vm1161, %v1477, %v1473
      %v1479 = vlaneseq
      %v1480 = vshrl.u32 %v1479, 7
      %v1481 = vsub.s32 %v1151, %v1480
      %v1482 = vrot.slane %v1344, %v1481
      %v1483 = vlaneseq
      %v1484 = vshrl.u32 %v1483, 7
      %v1485 = vsub.s32 %v1156, %v1484
      %v1486 = vrot.slane %v1347, %v1485
      %v1487 = vsel %vm1161, %v1486, %v1482
      %v1488 = vlaneseq
      %v1489 = vshrl.u32 %v1488, 7
      %v1490 = vsub.s32 %v1151, %v1489
      %v1491 = vrot.slane %v1350, %v1490
      %v1492 = vlaneseq
      %v1493 = vshrl.u32 %v1492, 7
      %v1494 = vsub.s32 %v1156, %v1493
      %v1495 = vrot.slane %v1353, %v1494
      %v1496 = vsel %vm1161, %v1495, %v1491
      %v1497 = vlaneseq
      %v1498 = vshrl.u32 %v1497, 7
      %v1499 = vsub.s32 %v1151, %v1498
      %v1500 = vrot.slane %v1356, %v1499
      %v1501 = vlaneseq
      %v1502 = vshrl.u32 %v1501, 7
      %v1503 = vsub.s32 %v1156, %v1502
      %v1504 = vrot.slane %v1359, %v1503
      %v1505 = vsel %vm1161, %v1504, %v1500
      %v1506 = vlaneseq
      %v1507 = vshrl.u32 %v1506, 7
      %v1508 = vsub.s32 %v1151, %v1507
      %v1509 = vrot.slane %v1362, %v1508
      %v1510 = vlaneseq
      %v1511 = vshrl.u32 %v1510, 7
      %v1512 = vsub.s32 %v1156, %v1511
      %v1513 = vrot.slane %v1365, %v1512
      %v1514 = vsel %vm1161, %v1513, %v1509
      %v1515 = vlaneseq
      %v1516 = vshrl.u32 %v1515, 7
      %v1517 = vsub.s32 %v1151, %v1516
      %v1518 = vrot.slane %v1368, %v1517
      %v1519 = vlaneseq
      %v1520 = vshrl.u32 %v1519, 7
      %v1521 = vsub.s32 %v1156, %v1520
      %v1522 = vrot.slane %v1371, %v1521
      %v1523 = vsel %vm1161, %v1522, %v1518
      %v1524 = vlaneseq
      %v1525 = vshrl.u32 %v1524, 7
      %v1526 = vsub.s32 %v1151, %v1525
      %v1527 = vrot.slane %v1374, %v1526
      %v1528 = vlaneseq
      %v1529 = vshrl.u32 %v1528, 7
      %v1530 = vsub.s32 %v1156, %v1529
      %v1531 = vrot.slane %v1377, %v1530
      %v1532 = vsel %vm1161, %v1531, %v1527
      %v1533 = vlaneseq
      %v1534 = vshrl.u32 %v1533, 7
      %v1535 = vsub.s32 %v1151, %v1534
      %v1536 = vrot.slane %v1380, %v1535
      %v1537 = vlaneseq
      %v1538 = vshrl.u32 %v1537, 7
      %v1539 = vsub.s32 %v1156, %v1538
      %v1540 = vrot.slane %v1383, %v1539
      %v1541 = vsel %vm1161, %v1540, %v1536
      %v1542 = vlaneseq
      %v1543 = vshrl.u32 %v1542, 7
      %v1544 = vsub.s32 %v1151, %v1543
      %v1545 = vrot.slane %v1386, %v1544
      %v1546 = vlaneseq
      %v1547 = vshrl.u32 %v1546, 7
      %v1548 = vsub.s32 %v1156, %v1547
      %v1549 = vrot.slane %v1389, %v1548
      %v1550 = vsel %vm1161, %v1549, %v1545
      %v1551 = vlaneseq
      %v1552 = vshrl.u32 %v1551, 7
      %v1553 = vsub.s32 %v1151, %v1552
      %v1554 = vrot.slane %v1392, %v1553
      %v1555 = vlaneseq
      %v1556 = vshrl.u32 %v1555, 7
      %v1557 = vsub.s32 %v1156, %v1556
      %v1558 = vrot.slane %v1395, %v1557
      %v1559 = vsel %vm1161, %v1558, %v1554
      %v1560 = vlaneseq
      %v1561 = vshrl.u32 %v1560, 7
      %v1562 = vsub.s32 %v1151, %v1561
      %v1563 = vrot.slane %v1398, %v1562
      %v1564 = vlaneseq
      %v1565 = vshrl.u32 %v1564, 7
      %v1566 = vsub.s32 %v1156, %v1565
      %v1567 = vrot.slane %v1401, %v1566
      %v1568 = vsel %vm1161, %v1567, %v1563
      %v1569 = vlaneseq
      %v1570 = vshrl.u32 %v1569, 7
      %v1571 = vsub.s32 %v1151, %v1570
      %v1572 = vrot.slane %v1404, %v1571
      %v1573 = vlaneseq
      %v1574 = vshrl.u32 %v1573, 7
      %v1575 = vsub.s32 %v1156, %v1574
      %v1576 = vrot.slane %v1407, %v1575
      %v1577 = vsel %vm1161, %v1576, %v1572
      %v1578 = vlaneseq
      %v1579 = vshrl.u32 %v1578, 7
      %v1580 = vsub.s32 %v1151, %v1579
      %v1581 = vrot.slane %v1410, %v1580
      %v1582 = vlaneseq
      %v1583 = vshrl.u32 %v1582, 7
      %v1584 = vsub.s32 %v1156, %v1583
      %v1585 = vrot.slane %v1413, %v1584
      %v1586 = vsel %vm1161, %v1585, %v1581
      %v1587 = vlaneseq
      %v1588 = vshrl.u32 %v1587, 7
      %v1589 = vsub.s32 %v1151, %v1588
      %v1590 = vrot.slane %v1416, %v1589
      %v1591 = vlaneseq
      %v1592 = vshrl.u32 %v1591, 7
      %v1593 = vsub.s32 %v1156, %v1592
      %v1594 = vrot.slane %v1419, %v1593
      %v1595 = vsel %vm1161, %v1594, %v1590
      %v1596 = vsel %vm1298, %v1469, %v1460
      %v1597 = vsel %vm1300, %v1478, %v1596
      %v1598 = vsel %vm1302, %v1487, %v1597
      %v1599 = vsel %vm1304, %v1496, %v1598
      %v1600 = vsel %vm1306, %v1505, %v1599
      %v1601 = vsel %vm1308, %v1514, %v1600
      %v1602 = vsel %vm1310, %v1523, %v1601
      %v1603 = vsel %vm1298, %v1541, %v1532
      %v1604 = vsel %vm1300, %v1550, %v1603
      %v1605 = vsel %vm1302, %v1559, %v1604
      %v1606 = vsel %vm1304, %v1568, %v1605
      %v1607 = vsel %vm1306, %v1577, %v1606
      %v1608 = vsel %vm1308, %v1586, %v1607
      %v1609 = vsel %vm1310, %v1595, %v1608
      %s1612 = scalar_lea.vmem [#allocation2], 24
      %1613 = vst.msk [vmem:[%s1612 + $0x3] sm:$0xff] %vm1321, %v1602
      %1614 = vst.msk [vmem:[%s1612 + $0xb] sm:$0xff] %vm1321, %v1609
      %v1615 = vld [vmem:[#allocation2] sm:$0xff]
      %v1616 = vld [vmem:[#allocation2 + $0x8] sm:$0xff]
      %v1617 = vld [vmem:[#allocation2 + $0x1] sm:$0xff]
      %v1618 = vld [vmem:[#allocation2 + $0x9] sm:$0xff]
      %v1619 = vld [vmem:[#allocation2 + $0x2] sm:$0xff]
      %v1620 = vld [vmem:[#allocation2 + $0xa] sm:$0xff]
      %v1621 = vld [vmem:[#allocation2 + $0x3] sm:$0xff]
      %v1622 = vld [vmem:[#allocation2 + $0xb] sm:$0xff]
      %v1623 = vld [vmem:[#allocation2 + $0x4] sm:$0xff]
      %v1624 = vld [vmem:[#allocation2 + $0xc] sm:$0xff]
      %v1625 = vld [vmem:[#allocation2 + $0x5] sm:$0xff]
      %v1626 = vld [vmem:[#allocation2 + $0xd] sm:$0xff]
      %v1627 = vld [vmem:[#allocation2 + $0x6] sm:$0xff]
      %v1628 = vld [vmem:[#allocation2 + $0xe] sm:$0xff]
      %v1629 = vld [vmem:[%s1612] sm:$0xff]
      %v1630 = vld [vmem:[%s1612 + $0x8] sm:$0xff]
      %v1631 = vld [vmem:[%s1612 + $0x1] sm:$0xff]
      %v1632 = vld [vmem:[%s1612 + $0x9] sm:$0xff]
      %v1633 = vld [vmem:[%s1612 + $0x2] sm:$0xff]
      %v1634 = vld [vmem:[%s1612 + $0xa] sm:$0xff]
      %v1635 = vld [vmem:[%s1612 + $0x3] sm:$0xff]
      %v1636 = vld [vmem:[%s1612 + $0xb] sm:$0xff]
      %v1637 = vld [vmem:[%s1612 + $0x4] sm:$0xff]
      %v1638 = vld [vmem:[%s1612 + $0xc] sm:$0xff]
      %v1639 = vld [vmem:[%s1612 + $0x5] sm:$0xff]
      %v1640 = vld [vmem:[%s1612 + $0xd] sm:$0xff]
      %v1641 = vld [vmem:[%s1612 + $0x6] sm:$0xff]
      %v1642 = vld [vmem:[%s1612 + $0xe] sm:$0xff]
      %1645 = vrot.lane.b32.xlu0 %v1617, 22
      %v1646 = vpop.permute.xlu0 %1645
      %1647 = vrot.lane.b32.xlu0 %v1618, 22
      %v1648 = vpop.permute.xlu0 %1647
      %1653 = vrot.lane.b32.xlu0 %v1619, 44
      %v1654 = vpop.permute.xlu0 %1653
      %1655 = vrot.lane.b32.xlu0 %v1620, 44
      %v1656 = vpop.permute.xlu0 %1655
      %1661 = vrot.lane.b32.xlu0 %v1621, 66
      %v1662 = vpop.permute.xlu0 %1661
      %1663 = vrot.lane.b32.xlu0 %v1622, 66
      %v1664 = vpop.permute.xlu0 %1663
      %1669 = vrot.lane.b32.xlu0 %v1623, 88
      %v1670 = vpop.permute.xlu0 %1669
      %1671 = vrot.lane.b32.xlu0 %v1624, 88
      %v1672 = vpop.permute.xlu0 %1671
      %1677 = vrot.lane.b32.xlu0 %v1625, 110
      %v1678 = vpop.permute.xlu0 %1677
      %1679 = vrot.lane.b32.xlu0 %v1626, 110
      %v1680 = vpop.permute.xlu0 %1679
      %1685 = vrot.lane.b32.xlu0 %v1627, 4
      %v1686 = vpop.permute.xlu0 %1685
      %1687 = vrot.lane.b32.xlu0 %v1628, 4
      %v1688 = vpop.permute.xlu0 %1687
      %1693 = vrot.lane.b32.xlu0 %v1629, 26
      %v1694 = vpop.permute.xlu0 %1693
      %1695 = vrot.lane.b32.xlu0 %v1630, 26
      %v1696 = vpop.permute.xlu0 %1695
      %1701 = vrot.lane.b32.xlu0 %v1631, 48
      %v1702 = vpop.permute.xlu0 %1701
      %1703 = vrot.lane.b32.xlu0 %v1632, 48
      %v1704 = vpop.permute.xlu0 %1703
      %1709 = vrot.lane.b32.xlu0 %v1633, 70
      %v1710 = vpop.permute.xlu0 %1709
      %1711 = vrot.lane.b32.xlu0 %v1634, 70
      %v1712 = vpop.permute.xlu0 %1711
      %1717 = vrot.lane.b32.xlu0 %v1635, 92
      %v1718 = vpop.permute.xlu0 %1717
      %1719 = vrot.lane.b32.xlu0 %v1636, 92
      %v1720 = vpop.permute.xlu0 %1719
      %1725 = vrot.lane.b32.xlu0 %v1637, 114
      %v1726 = vpop.permute.xlu0 %1725
      %1727 = vrot.lane.b32.xlu0 %v1638, 114
      %v1728 = vpop.permute.xlu0 %1727
      %1733 = vrot.lane.b32.xlu0 %v1639, 8
      %v1734 = vpop.permute.xlu0 %1733
      %1735 = vrot.lane.b32.xlu0 %v1640, 8
      %v1736 = vpop.permute.xlu0 %1735
      %1741 = vrot.lane.b32.xlu0 %v1641, 30
      %v1742 = vpop.permute.xlu0 %1741
      %1743 = vrot.lane.b32.xlu0 %v1642, 30
      %v1744 = vpop.permute.xlu0 %1743
      %v1747 = vsel %vm980, %v1615, %v1646
      %v1748 = vsel %vm980, %v1616, %v1648
      %vm1749 = vcmask 359424
      %v1750 = vsel %vm1749, %v1747, %v1654
      %v1751 = vsel %vm1749, %v1748, %v1656
      %vm1752 = vcmask 539648
      %v1753 = vsel %vm1752, %v1750, %v1662
      %v1754 = vsel %vm1752, %v1751, %v1664
      %vm1755 = vcmask 719872
      %v1756 = vsel %vm1755, %v1753, %v1670
      %v1757 = vsel %vm1755, %v1754, %v1672
      %vm1758 = vcmask 900096
      %v1759 = vsel %vm1758, %v1756, %v1678
      %v1760 = vsel %vm1758, %v1757, %v1680
      %vm1761 = vcmask 31744
      %v1762 = vsel %vm1761, %v1678, %v1686
      %v1763 = vsel %vm1761, %v1680, %v1688
      %vm1764 = vcmask 211968
      %v1765 = vsel %vm1764, %v1762, %v1694
      %v1766 = vsel %vm1764, %v1763, %v1696
      %vm1767 = vcmask 392192
      %v1768 = vsel %vm1767, %v1765, %v1702
      %v1769 = vsel %vm1767, %v1766, %v1704
      %vm1770 = vcmask 572416
      %v1771 = vsel %vm1770, %v1768, %v1710
      %v1772 = vsel %vm1770, %v1769, %v1712
      %vm1773 = vcmask 752640
      %v1774 = vsel %vm1773, %v1771, %v1718
      %v1775 = vsel %vm1773, %v1772, %v1720
      %vm1776 = vcmask 932864
      %v1777 = vsel %vm1776, %v1774, %v1726
      %v1778 = vsel %vm1776, %v1775, %v1728
      %vm1779 = vcmask 64512
      %v1780 = vsel %vm1779, %v1726, %v1734
      %v1781 = vsel %vm1779, %v1728, %v1736
      %vm1782 = vcmask 244736
      %v1783 = vsel %vm1782, %v1780, %v1742
      %v1784 = vsel %vm1782, %v1781, %v1744
      %v1785 = vpack.c.bf16 %v1760, %v1759
      %v1786 = vpack.c.bf16 %v1778, %v1777
      %v1787 = vpack.c.bf16 %v1784, %v1783
      %v1788 = vld [vmem:[%s4] sm:$0xf]
      %v1789 = vld [vmem:[%s4 + $0x4] sm:$0xf]
      %v1790 = vld [vmem:[%s4 + $0x8] sm:$0xf]
      %v1791 = vld [vmem:[%s4 + $0xc] sm:$0xf]
      %v1792 = vld [vmem:[%s4 + $0x10] sm:$0xf]
      %v1793 = vld [vmem:[%s4 + $0x14] sm:$0xf]
      %v1794 = vld [vmem:[%s4 + $0x18] sm:$0xf]
      %v1795 = vld [vmem:[%s4 + $0x1c] sm:$0xf]
      %v1796 = vld [vmem:[%s4 + $0x20] sm:$0xf]
      %v1797 = vld [vmem:[%s4 + $0x24] sm:$0xf]
      %v1798 = vld [vmem:[%s4 + $0x28] sm:$0xf]
      %v1799 = vld [vmem:[%s4 + $0x2c] sm:$0xf]
      %v1800 = vld [vmem:[%s4 + $0x30] sm:$0xf]
      %v1801 = vld [vmem:[%s4 + $0x34] sm:$0xf]
      %v1802 = vld [vmem:[%s4 + $0x38] sm:$0xf]
      %v1803 = vld [vmem:[%s4 + $0x3c] sm:$0xf]
      %v1804 = vld [vmem:[%s4 + $0x40] sm:$0xf]
      %v1805 = vld [vmem:[%s4 + $0x44] sm:$0xf]
      %v1806 = vld [vmem:[%s4 + $0x48] sm:$0xf]
      %v1807 = vld [vmem:[%s4 + $0x4c] sm:$0xf]
      %v1808 = vld [vmem:[%s4 + $0x50] sm:$0xf]
      %v1809 = vld [vmem:[%s4 + $0x54] sm:$0xf]
      %v1810 = vld [vmem:[%s4 + $0x58] sm:$0xf]
      %v1811 = vld [vmem:[%s4 + $0x5c] sm:$0xf]
      %v1812 = vld [vmem:[%s4 + $0x60] sm:$0xf]
      %v1813 = vld [vmem:[%s4 + $0x64] sm:$0xf]
      %v1814 = vld [vmem:[%s4 + $0x68] sm:$0xf]
      %v1815 = vld [vmem:[%s4 + $0x6c] sm:$0xf]
      %v1816 = vld [vmem:[%s4 + $0x70] sm:$0xf]
      %v1817 = vld [vmem:[%s4 + $0x74] sm:$0xf]
      %v1818 = vld [vmem:[%s4 + $0x78] sm:$0xf]
      %v1819 = vld [vmem:[%s4 + $0x7c] sm:$0xf]
      %v1820 = vld [vmem:[%s4 + $0x80] sm:$0xf]
      %v1821 = vld [vmem:[%s4 + $0x84] sm:$0xf]
      %v1822 = vld [vmem:[%s4 + $0x88] sm:$0xf]
      %v1823 = vld [vmem:[%s4 + $0x8c] sm:$0xf]
      %v1824 = vld [vmem:[%s4 + $0x90] sm:$0xf]
      %v1825 = vld [vmem:[%s4 + $0x94] sm:$0xf]
      %v1826 = vld [vmem:[%s4 + $0x98] sm:$0x3]
      %v1866 = vunpack.c.l.b16 %v1788
      %v1867 = vunpack.c.l.b16 %v1789
      %v1868 = vunpack.c.l.b16 %v1790
      %v1869 = vunpack.c.l.b16 %v1791
      %v1870 = vunpack.c.l.b16 %v1792
      %v1871 = vunpack.c.l.b16 %v1793
      %v1872 = vunpack.c.l.b16 %v1794
      %v1873 = vunpack.c.l.b16 %v1795
      %v1874 = vunpack.c.l.b16 %v1796
      %v1875 = vunpack.c.l.b16 %v1797
      %v1876 = vunpack.c.l.b16 %v1798
      %v1877 = vunpack.c.l.b16 %v1799
      %v1878 = vunpack.c.l.b16 %v1800
      %v1879 = vunpack.c.l.b16 %v1801
      %v1880 = vunpack.c.l.b16 %v1802
      %v1881 = vunpack.c.l.b16 %v1803
      %v1882 = vunpack.c.l.b16 %v1804
      %v1883 = vunpack.c.l.b16 %v1805
      %v1884 = vunpack.c.l.b16 %v1806
      %v1885 = vunpack.c.l.b16 %v1807
      %v1886 = vunpack.c.l.b16 %v1808
      %v1887 = vunpack.c.l.b16 %v1809
      %v1888 = vunpack.c.l.b16 %v1810
      %v1889 = vunpack.c.l.b16 %v1811
      %v1890 = vunpack.c.l.b16 %v1812
      %v1891 = vunpack.c.l.b16 %v1813
      %v1892 = vunpack.c.l.b16 %v1814
      %v1893 = vunpack.c.l.b16 %v1815
      %v1894 = vunpack.c.l.b16 %v1816
      %v1895 = vunpack.c.l.b16 %v1817
      %v1896 = vunpack.c.l.b16 %v1818
      %v1897 = vunpack.c.l.b16 %v1819
      %v1898 = vunpack.c.l.b16 %v1820
      %v1899 = vunpack.c.l.b16 %v1821
      %v1900 = vunpack.c.l.b16 %v1822
      %v1901 = vunpack.c.l.b16 %v1823
      %v1902 = vunpack.c.l.b16 %v1824
      %v1903 = vunpack.c.l.b16 %v1825
      %v1904 = vunpack.c.l.b16 %v1826
      %v1905 = vpack.c.b16 %v1867, %v1866
      %v1906 = vpack.c.b16 %v1869, %v1868
      %v1907 = vpack.c.b16 %v1871, %v1870
      %v1908 = vpack.c.b16 %v1873, %v1872
      %v1909 = vpack.c.b16 %v1875, %v1874
      %v1910 = vpack.c.b16 %v1877, %v1876
      %v1911 = vpack.c.b16 %v1879, %v1878
      %v1912 = vpack.c.b16 %v1881, %v1880
      %v1913 = vpack.c.b16 %v1883, %v1882
      %v1914 = vpack.c.b16 %v1885, %v1884
      %v1915 = vpack.c.b16 %v1887, %v1886
      %v1916 = vpack.c.b16 %v1889, %v1888
      %v1917 = vpack.c.b16 %v1891, %v1890
      %v1918 = vpack.c.b16 %v1893, %v1892
      %v1919 = vpack.c.b16 %v1895, %v1894
      %v1920 = vpack.c.b16 %v1897, %v1896
      %v1921 = vpack.c.b16 %v1899, %v1898
      %v1922 = vpack.c.b16 %v1901, %v1900
      %v1923 = vpack.c.b16 %v1903, %v1902
      %v1924 = vpack.c.b16 %v1904, %v1904
      %vm1944 = vcmask 424960
      %v1946 = vsel %vm1944, %v1787, 0
      %v1949 = vsel %vm860, %v1924, 0
      %1951 = vmatprep.subr.bf16.mxu0 0
      %1952 = vmatpush1.bf16.msra.mxu0 %v1905
      %1953 = vmatprep.subr.bf16.mxu0 0
      %1954 = vmatpush1.bf16.msra.mxu0 %v1906
      %1955 = vmatprep.subr.bf16.mxu0 0
      %1956 = vmatpush1.bf16.msra.mxu0 %v1907
      %1957 = vmatprep.subr.bf16.mxu0 0
      %1958 = vmatpush1.bf16.msra.mxu0 %v1908
      %1959 = vmatprep.subr.bf16.mxu0 0
      %1960 = vmatpush1.bf16.msra.mxu0 %v1909
      %1961 = vmatprep.subr.bf16.mxu0 0
      %1962 = vmatpush1.bf16.msra.mxu0 %v1910
      %1963 = vmatprep.subr.bf16.mxu0 0
      %1964 = vmatpush1.bf16.msra.mxu0 %v1911
      %1965 = vmatprep.subr.bf16.mxu0 0
      %1966 = vmatpush1.bf16.msra.mxu0 %v1912
      %1967 = vmatprep.subr.bf16.mxu0 0
      %1968 = vmatpush1.bf16.msra.mxu0 %v1913
      %1969 = vmatprep.subr.bf16.mxu0 0
      %1970 = vmatpush1.bf16.msra.mxu0 %v1914
      %1971 = vmatprep.subr.bf16.mxu0 0
      %1972 = vmatpush1.bf16.msra.mxu0 %v1915
      %1973 = vmatprep.subr.bf16.mxu0 0
      %1974 = vmatpush1.bf16.msra.mxu0 %v1916
      %1975 = vmatprep.subr.bf16.mxu0 0
      %1976 = vmatpush1.bf16.msra.mxu0 %v1917
      %1977 = vmatprep.subr.bf16.mxu0 0
      %1978 = vmatpush1.bf16.msra.mxu0 %v1918
      %1979 = vmatprep.subr.bf16.mxu0 0
      %1980 = vmatpush1.bf16.msra.mxu0 %v1919
      %1981 = vmatprep.subr.bf16.mxu0 0
      %1982 = vmatpush1.bf16.msra.mxu0 %v1920
      %1983 = vmatprep.mubr.bf16.mxu0 %v1786
      %1984 = vmatmul.mubr.bf16.gmra.mrb[0].mxu0 %v1785
      %v1985 = vpop.f32.mrb[0].mxu0
      %v1986 = vadd.f32 0.0, %v1985
      %v1987 = vpop.f32.mrb[0].mxu0
      %v1988 = vpop.f32.mrb[0].mxu0
      %v1989 = vadd.f32 0.0, %v1988
      %v1990 = vpop.f32.mrb[0].mxu0
      %1991 = vdwg.mxu0
      %1992 = vmatprep.subr.bf16.mxu0 0
      %1993 = vmatpush1.bf16.msra.mxu0 %v1921
      %1994 = vmatprep.subr.bf16.mxu0 0
      %1995 = vmatpush1.bf16.msra.mxu0 %v1922
      %1996 = vmatprep.subr.bf16.mxu0 0
      %1997 = vmatpush1.bf16.msra.mxu0 %v1923
      %1998 = vmatprep.subr.bf16.mxu0 0
      %1999 = vmatpush1.bf16.msra.mxu0 %v1949
      %2000 = vmatprep.subr.bf16.mxu0 0
      %2001 = vmatpush1.bf16.msra.mxu0 0
      %2002 = vmatprep.subr.bf16.mxu0 0
      %2003 = vmatpush1.bf16.msra.mxu0 0
      %2004 = vmatprep.subr.bf16.mxu0 0
      %2005 = vmatpush1.bf16.msra.mxu0 0
      %2006 = vmatprep.subr.bf16.mxu0 0
      %2007 = vmatpush1.bf16.msra.mxu0 0
      %2008 = vmatprep.subr.bf16.mxu0 0
      %2009 = vmatpush1.bf16.msra.mxu0 0
      %2010 = vmatprep.subr.bf16.mxu0 0
      %2011 = vmatpush1.bf16.msra.mxu0 0
      %2012 = vmatprep.subr.bf16.mxu0 0
      %2013 = vmatpush1.bf16.msra.mxu0 0
      %2014 = vmatprep.subr.bf16.mxu0 0
      %2015 = vmatpush1.bf16.msra.mxu0 0
      %2016 = vmatprep.subr.bf16.mxu0 0
      %2017 = vmatpush1.bf16.msra.mxu0 0
      %2018 = vmatprep.subr.bf16.mxu0 0
      %2019 = vmatpush1.bf16.msra.mxu0 0
      %2020 = vmatprep.subr.bf16.mxu0 0
      %2021 = vmatpush1.bf16.msra.mxu0 0
      %2022 = vmatprep.subr.bf16.mxu0 0
      %2023 = vmatpush1.bf16.msra.mxu0 0
      %2024 = vmatprep.mubr.bf16.mxu0 0
      %2025 = vmatmul.mubr.bf16.gmra.mrb[0].mxu0 %v1946
      %v2026 = vpop.f32.mrb[0].mxu0
      %v2027 = vadd.f32 %v1986, %v2026
      %v2028 = vpop.f32.mrb[0].mxu0
      %v2029 = vpop.f32.mrb[0].mxu0
      %v2030 = vadd.f32 %v1989, %v2029
      %v2031 = vpop.f32.mrb[0].mxu0
      %2032 = vdwg.mxu0
      %v2033 = vxor.u32 %v2027, 2147483648
      %v2034 = vxor.u32 %v2030, 2147483648
      %v2035 = vmul.f32 %v2033, 1.442695
      %v2036 = vpow.pop %v2035
      %v2037 = vmul.f32 %v2034, 1.442695
      %v2038 = vpow.pop %v2037
      %v2039 = vadd.f32 %v2036, 1.0
      %v2040 = vadd.f32 %v2038, 1.0
      %v2041 = vrcp.pop %v2039
      %v2042 = vmul.f32 1.0, %v2041
      %v2043 = vrcp.pop %v2040
      %v2044 = vmul.f32 1.0, %v2043
      %v2045 = vlaneseq
      %v2046 = vshrl.u32 %v2045, 7
      %v2047 = vsub.s32 0, %v2046
      %v2048 = vrot.slane %v2042, %v2047
      %2050 = vbcast.lane.b32.xlu0 %v2048, 256
      %v2051 = vpop.permute.xlu0 %2050
      %s2053 = sor.u32 256, 8
      %2054 = vbcast.lane.b32.xlu0 %v2048, %s2053
      %v2055 = vpop.permute.xlu0 %2054
      %v2056 = vlaneseq
      %v2057 = vshrl.u32 %v2056, 7
      %v2058 = vsub.s32 1, %v2057
      %v2059 = vrot.slane %v2042, %v2058
      %2061 = vbcast.lane.b32.xlu0 %v2059, 256
      %v2062 = vpop.permute.xlu0 %2061
      %s2064 = sor.u32 256, 8
      %2065 = vbcast.lane.b32.xlu0 %v2059, %s2064
      %v2066 = vpop.permute.xlu0 %2065
      %v2067 = vlaneseq
      %v2068 = vshrl.u32 %v2067, 7
      %v2069 = vsub.s32 2, %v2068
      %v2070 = vrot.slane %v2042, %v2069
      %2072 = vbcast.lane.b32.xlu0 %v2070, 256
      %v2073 = vpop.permute.xlu0 %2072
      %s2075 = sor.u32 256, 8
      %2076 = vbcast.lane.b32.xlu0 %v2070, %s2075
      %v2077 = vpop.permute.xlu0 %2076
      %v2078 = vlaneseq
      %v2079 = vshrl.u32 %v2078, 7
      %v2080 = vsub.s32 3, %v2079
      %v2081 = vrot.slane %v2042, %v2080
      %2083 = vbcast.lane.b32.xlu0 %v2081, 256
      %v2084 = vpop.permute.xlu0 %2083
      %s2086 = sor.u32 256, 8
      %2087 = vbcast.lane.b32.xlu0 %v2081, %s2086
      %v2088 = vpop.permute.xlu0 %2087
      %v2089 = vlaneseq
      %v2090 = vshrl.u32 %v2089, 7
      %v2091 = vsub.s32 4, %v2090
      %v2092 = vrot.slane %v2042, %v2091
      %2094 = vbcast.lane.b32.xlu0 %v2092, 256
      %v2095 = vpop.permute.xlu0 %2094
      %s2097 = sor.u32 256, 8
      %2098 = vbcast.lane.b32.xlu0 %v2092, %s2097
      %v2099 = vpop.permute.xlu0 %2098
      %v2100 = vlaneseq
      %v2101 = vshrl.u32 %v2100, 7
      %v2102 = vsub.s32 5, %v2101
      %v2103 = vrot.slane %v2042, %v2102
      %2105 = vbcast.lane.b32.xlu0 %v2103, 256
      %v2106 = vpop.permute.xlu0 %2105
      %s2108 = sor.u32 256, 8
      %2109 = vbcast.lane.b32.xlu0 %v2103, %s2108
      %v2110 = vpop.permute.xlu0 %2109
      %v2111 = vlaneseq
      %v2112 = vshrl.u32 %v2111, 7
      %v2113 = vsub.s32 6, %v2112
      %v2114 = vrot.slane %v2042, %v2113
      %2116 = vbcast.lane.b32.xlu0 %v2114, 256
      %v2117 = vpop.permute.xlu0 %2116
      %s2119 = sor.u32 256, 8
      %2120 = vbcast.lane.b32.xlu0 %v2114, %s2119
      %v2121 = vpop.permute.xlu0 %2120
      %v2122 = vlaneseq
      %v2123 = vshrl.u32 %v2122, 7
      %v2124 = vsub.s32 7, %v2123
      %v2125 = vrot.slane %v2042, %v2124
      %2127 = vbcast.lane.b32.xlu0 %v2125, 256
      %v2128 = vpop.permute.xlu0 %2127
      %s2130 = sor.u32 256, 8
      %2131 = vbcast.lane.b32.xlu0 %v2125, %s2130
      %v2132 = vpop.permute.xlu0 %2131
      %v2133 = vlaneseq
      %v2134 = vshrl.u32 %v2133, 7
      %v2135 = vsub.s32 0, %v2134
      %v2136 = vrot.slane %v2044, %v2135
      %2138 = vbcast.lane.b32.xlu0 %v2136, 256
      %v2139 = vpop.permute.xlu0 %2138
      %s2141 = sor.u32 256, 8
      %2142 = vbcast.lane.b32.xlu0 %v2136, %s2141
      %v2143 = vpop.permute.xlu0 %2142
      %v2144 = vlaneseq
      %v2145 = vshrl.u32 %v2144, 7
      %v2146 = vsub.s32 1, %v2145
      %v2147 = vrot.slane %v2044, %v2146
      %2149 = vbcast.lane.b32.xlu0 %v2147, 256
      %v2150 = vpop.permute.xlu0 %2149
      %s2152 = sor.u32 256, 8
      %2153 = vbcast.lane.b32.xlu0 %v2147, %s2152
      %v2154 = vpop.permute.xlu0 %2153
      %v2155 = vlaneseq
      %v2156 = vshrl.u32 %v2155, 7
      %v2157 = vsub.s32 2, %v2156
      %v2158 = vrot.slane %v2044, %v2157
      %2160 = vbcast.lane.b32.xlu0 %v2158, 256
      %v2161 = vpop.permute.xlu0 %2160
      %s2163 = sor.u32 256, 8
      %2164 = vbcast.lane.b32.xlu0 %v2158, %s2163
      %v2165 = vpop.permute.xlu0 %2164
      %v2166 = vlaneseq
      %v2167 = vshrl.u32 %v2166, 7
      %v2168 = vsub.s32 3, %v2167
      %v2169 = vrot.slane %v2044, %v2168
      %2171 = vbcast.lane.b32.xlu0 %v2169, 256
      %v2172 = vpop.permute.xlu0 %2171
      %s2174 = sor.u32 256, 8
      %2175 = vbcast.lane.b32.xlu0 %v2169, %s2174
      %v2176 = vpop.permute.xlu0 %2175
      %v2177 = vlaneseq
      %v2178 = vshrl.u32 %v2177, 7
      %v2179 = vsub.s32 4, %v2178
      %v2180 = vrot.slane %v2044, %v2179
      %2182 = vbcast.lane.b32.xlu0 %v2180, 256
      %v2183 = vpop.permute.xlu0 %2182
      %s2185 = sor.u32 256, 8
      %2186 = vbcast.lane.b32.xlu0 %v2180, %s2185
      %v2187 = vpop.permute.xlu0 %2186
      %v2188 = vlaneseq
      %v2189 = vshrl.u32 %v2188, 7
      %v2190 = vsub.s32 5, %v2189
      %v2191 = vrot.slane %v2044, %v2190
      %2193 = vbcast.lane.b32.xlu0 %v2191, 256
      %v2194 = vpop.permute.xlu0 %2193
      %s2196 = sor.u32 256, 8
      %2197 = vbcast.lane.b32.xlu0 %v2191, %s2196
      %v2198 = vpop.permute.xlu0 %2197
      %v2199 = vlaneseq
      %v2200 = vshrl.u32 %v2199, 7
      %v2201 = vsub.s32 6, %v2200
      %v2202 = vrot.slane %v2044, %v2201
      %2204 = vbcast.lane.b32.xlu0 %v2202, 256
      %v2205 = vpop.permute.xlu0 %2204
      %s2207 = sor.u32 256, 8
      %2208 = vbcast.lane.b32.xlu0 %v2202, %s2207
      %v2209 = vpop.permute.xlu0 %2208
      %v2210 = vlaneseq
      %v2211 = vshrl.u32 %v2210, 7
      %v2212 = vsub.s32 7, %v2211
      %v2213 = vrot.slane %v2044, %v2212
      %2215 = vbcast.lane.b32.xlu0 %v2213, 256
      %v2216 = vpop.permute.xlu0 %2215
      %s2218 = sor.u32 256, 8
      %2219 = vbcast.lane.b32.xlu0 %v2213, %s2218
      %v2220 = vpop.permute.xlu0 %2219
      %v2221 = vmul.f32 %v948, %v2051
      %v2222 = vmul.f32 %v949, %v2055
      %v2223 = vmul.f32 %v950, %v2062
      %v2224 = vmul.f32 %v951, %v2066
      %v2225 = vmul.f32 %v952, %v2073
      %v2226 = vmul.f32 %v953, %v2077
      %v2227 = vmul.f32 %v954, %v2084
      %v2228 = vmul.f32 %v955, %v2088
      %v2229 = vmul.f32 %v956, %v2095
      %v2230 = vmul.f32 %v957, %v2099
      %v2231 = vmul.f32 %v958, %v2106
      %v2232 = vmul.f32 %v959, %v2110
      %v2233 = vmul.f32 %v960, %v2117
      %v2234 = vmul.f32 %v961, %v2121
      %v2235 = vmul.f32 %v962, %v2128
      %v2236 = vmul.f32 %v963, %v2132
      %v2237 = vmul.f32 %v964, %v2139
      %v2238 = vmul.f32 %v965, %v2143
      %v2239 = vmul.f32 %v966, %v2150
      %v2240 = vmul.f32 %v967, %v2154
      %v2241 = vmul.f32 %v968, %v2161
      %v2242 = vmul.f32 %v969, %v2165
      %v2243 = vmul.f32 %v970, %v2172
      %v2244 = vmul.f32 %v971, %v2176
      %v2245 = vmul.f32 %v972, %v2183
      %v2246 = vmul.f32 %v973, %v2187
      %v2247 = vmul.f32 %v974, %v2194
      %v2248 = vmul.f32 %v975, %v2198
      %v2249 = vmul.f32 %v976, %v2205
      %v2250 = vmul.f32 %v977, %v2209
      %v2251 = vmul.f32 %v978, %v2216
      %v2252 = vmul.f32 %v979, %v2220
      %2253 = vst.msk [vmem:[#allocation3] sm:$0xff] %vm634, 0.0
      %2254 = vst.msk [vmem:[#allocation3 + $0x8] sm:$0xff] %vm634, 0.0
      %vm2255 = vcmask 254976
      %2256 = vst.msk [vmem:[#allocation3 + $0x10] sm:$0x3] %vm2255, 0.0
      %s2257 = scalar_lea.vmem [#allocation3], 408
      %2258 = vst.msk [vmem:[%s2257] sm:$0xff] %vm634, 0.0
      %2259 = vst.msk [vmem:[%s2257 + $0x8] sm:$0xff] %vm634, 0.0
      %2260 = vst.msk [vmem:[%s2257 + $0x10] sm:$0x3] %vm2255, 0.0
      %s2261 = scalar_lea.vmem [#allocation3], 24
      %vm2262 = vcmask 253952
      %2263 = vst.msk [vmem:[%s2261] sm:$0x1] %vm2262, 0.0
      %2264 = vst.msk [vmem:[%s2261 + $0x18] sm:$0x1] %vm2262, 0.0
      %2265 = vst.msk [vmem:[%s2261 + $0x30] sm:$0x1] %vm2262, 0.0
      %2266 = vst.msk [vmem:[%s2261 + $0x48] sm:$0x1] %vm2262, 0.0
      %2267 = vst.msk [vmem:[%s2261 + $0x60] sm:$0x1] %vm2262, 0.0
      %2268 = vst.msk [vmem:[%s2261 + $0x78] sm:$0x1] %vm2262, 0.0
      %2269 = vst.msk [vmem:[%s2261 + $0x90] sm:$0x1] %vm2262, 0.0
      %2270 = vst.msk [vmem:[%s2261 + $0xa8] sm:$0x1] %vm2262, 0.0
      %2271 = vst.msk [vmem:[%s2261 + $0xc0] sm:$0x1] %vm2262, 0.0
      %2272 = vst.msk [vmem:[%s2261 + $0xd8] sm:$0x1] %vm2262, 0.0
      %2273 = vst.msk [vmem:[%s2261 + $0xf0] sm:$0x1] %vm2262, 0.0
      %2274 = vst.msk [vmem:[%s2261 + $0x108] sm:$0x1] %vm2262, 0.0
      %2275 = vst.msk [vmem:[%s2261 + $0x120] sm:$0x1] %vm2262, 0.0
      %2276 = vst.msk [vmem:[%s2261 + $0x138] sm:$0x1] %vm2262, 0.0
      %2277 = vst.msk [vmem:[%s2261 + $0x150] sm:$0x1] %vm2262, 0.0
      %2278 = vst.msk [vmem:[%s2261 + $0x168] sm:$0x1] %vm2262, 0.0
      %2279 = vst.msk [vmem:[%s2261 + $0x11] sm:$0x1] %vm2262, 0.0
      %2280 = vst.msk [vmem:[%s2261 + $0x29] sm:$0x1] %vm2262, 0.0
      %2281 = vst.msk [vmem:[%s2261 + $0x41] sm:$0x1] %vm2262, 0.0
      %2282 = vst.msk [vmem:[%s2261 + $0x59] sm:$0x1] %vm2262, 0.0
      %2283 = vst.msk [vmem:[%s2261 + $0x71] sm:$0x1] %vm2262, 0.0
      %2284 = vst.msk [vmem:[%s2261 + $0x89] sm:$0x1] %vm2262, 0.0
      %2285 = vst.msk [vmem:[%s2261 + $0xa1] sm:$0x1] %vm2262, 0.0
      %2286 = vst.msk [vmem:[%s2261 + $0xb9] sm:$0x1] %vm2262, 0.0
      %2287 = vst.msk [vmem:[%s2261 + $0xd1] sm:$0x1] %vm2262, 0.0
      %2288 = vst.msk [vmem:[%s2261 + $0xe9] sm:$0x1] %vm2262, 0.0
      %2289 = vst.msk [vmem:[%s2261 + $0x101] sm:$0x1] %vm2262, 0.0
      %2290 = vst.msk [vmem:[%s2261 + $0x119] sm:$0x1] %vm2262, 0.0
      %2291 = vst.msk [vmem:[%s2261 + $0x131] sm:$0x1] %vm2262, 0.0
      %2292 = vst.msk [vmem:[%s2261 + $0x149] sm:$0x1] %vm2262, 0.0
      %2293 = vst.msk [vmem:[%s2261 + $0x161] sm:$0x1] %vm2262, 0.0
      %2294 = vst.msk [vmem:[%s2261 + $0x179] sm:$0x1] %vm2262, 0.0
      %2295 = vst.msk [vmem:[%s2261 + $0x1] sm:$0xff] %vm634, %v2221
      %2296 = vst.msk [vmem:[%s2261 + $0x9] sm:$0xff] %vm634, %v2222
      %2297 = vst.msk [vmem:[%s2261 + $0x19] sm:$0xff] %vm634, %v2223
      %2298 = vst.msk [vmem:[%s2261 + $0x21] sm:$0xff] %vm634, %v2224
      %2299 = vst.msk [vmem:[%s2261 + $0x31] sm:$0xff] %vm634, %v2225
      %2300 = vst.msk [vmem:[%s2261 + $0x39] sm:$0xff] %vm634, %v2226
      %2301 = vst.msk [vmem:[%s2261 + $0x49] sm:$0xff] %vm634, %v2227
      %2302 = vst.msk [vmem:[%s2261 + $0x51] sm:$0xff] %vm634, %v2228
      %2303 = vst.msk [vmem:[%s2261 + $0x61] sm:$0xff] %vm634, %v2229
      %2304 = vst.msk [vmem:[%s2261 + $0x69] sm:$0xff] %vm634, %v2230
      %2305 = vst.msk [vmem:[%s2261 + $0x79] sm:$0xff] %vm634, %v2231
      %2306 = vst.msk [vmem:[%s2261 + $0x81] sm:$0xff] %vm634, %v2232
      %2307 = vst.msk [vmem:[%s2261 + $0x91] sm:$0xff] %vm634, %v2233
      %2308 = vst.msk [vmem:[%s2261 + $0x99] sm:$0xff] %vm634, %v2234
      %2309 = vst.msk [vmem:[%s2261 + $0xa9] sm:$0xff] %vm634, %v2235
      %2310 = vst.msk [vmem:[%s2261 + $0xb1] sm:$0xff] %vm634, %v2236
      %2311 = vst.msk [vmem:[%s2261 + $0xc1] sm:$0xff] %vm634, %v2237
      %2312 = vst.msk [vmem:[%s2261 + $0xc9] sm:$0xff] %vm634, %v2238
      %2313 = vst.msk [vmem:[%s2261 + $0xd9] sm:$0xff] %vm634, %v2239
      %2314 = vst.msk [vmem:[%s2261 + $0xe1] sm:$0xff] %vm634, %v2240
      %2315 = vst.msk [vmem:[%s2261 + $0xf1] sm:$0xff] %vm634, %v2241
      %2316 = vst.msk [vmem:[%s2261 + $0xf9] sm:$0xff] %vm634, %v2242
      %2317 = vst.msk [vmem:[%s2261 + $0x109] sm:$0xff] %vm634, %v2243
      %2318 = vst.msk [vmem:[%s2261 + $0x111] sm:$0xff] %vm634, %v2244
      %2319 = vst.msk [vmem:[%s2261 + $0x121] sm:$0xff] %vm634, %v2245
      %2320 = vst.msk [vmem:[%s2261 + $0x129] sm:$0xff] %vm634, %v2246
      %2321 = vst.msk [vmem:[%s2261 + $0x139] sm:$0xff] %vm634, %v2247
      %2322 = vst.msk [vmem:[%s2261 + $0x141] sm:$0xff] %vm634, %v2248
      %2323 = vst.msk [vmem:[%s2261 + $0x151] sm:$0xff] %vm634, %v2249
      %2324 = vst.msk [vmem:[%s2261 + $0x159] sm:$0xff] %vm634, %v2250
      %2325 = vst.msk [vmem:[%s2261 + $0x169] sm:$0xff] %vm634, %v2251
      %2326 = vst.msk [vmem:[%s2261 + $0x171] sm:$0xff] %vm634, %v2252
      %v2327 = vld [vmem:[#allocation3] sm:$0xff]
      %v2328 = vld [vmem:[#allocation3 + $0x8] sm:$0xff]
      %v2329 = vld [vmem:[#allocation3 + $0x18] sm:$0xff]
      %v2330 = vld [vmem:[#allocation3 + $0x20] sm:$0xff]
      %v2331 = vld [vmem:[#allocation3 + $0x30] sm:$0xff]
      %v2332 = vld [vmem:[#allocation3 + $0x38] sm:$0xff]
      %v2333 = vld [vmem:[#allocation3 + $0x48] sm:$0xff]
      %v2334 = vld [vmem:[#allocation3 + $0x50] sm:$0xff]
      %v2335 = vld [vmem:[#allocation3 + $0x60] sm:$0xff]
      %v2336 = vld [vmem:[#allocation3 + $0x68] sm:$0xff]
      %v2337 = vld [vmem:[#allocation3 + $0x78] sm:$0xff]
      %v2338 = vld [vmem:[#allocation3 + $0x80] sm:$0xff]
      %v2339 = vld [vmem:[#allocation3 + $0x90] sm:$0xff]
      %v2340 = vld [vmem:[#allocation3 + $0x98] sm:$0xff]
      %v2341 = vld [vmem:[#allocation3 + $0xa8] sm:$0xff]
      %v2342 = vld [vmem:[#allocation3 + $0xb0] sm:$0xff]
      %v2343 = vld [vmem:[#allocation3 + $0xc0] sm:$0xff]
      %v2344 = vld [vmem:[#allocation3 + $0xc8] sm:$0xff]
      %v2345 = vld [vmem:[#allocation3 + $0xd8] sm:$0xff]
      %v2346 = vld [vmem:[#allocation3 + $0xe0] sm:$0xff]
      %v2347 = vld [vmem:[#allocation3 + $0xf0] sm:$0xff]
      %v2348 = vld [vmem:[#allocation3 + $0xf8] sm:$0xff]
      %v2349 = vld [vmem:[#allocation3 + $0x108] sm:$0xff]
      %v2350 = vld [vmem:[#allocation3 + $0x110] sm:$0xff]
      %v2351 = vld [vmem:[#allocation3 + $0x120] sm:$0xff]
      %v2352 = vld [vmem:[#allocation3 + $0x128] sm:$0xff]
      %v2353 = vld [vmem:[#allocation3 + $0x138] sm:$0xff]
      %v2354 = vld [vmem:[#allocation3 + $0x140] sm:$0xff]
      %v2355 = vld [vmem:[#allocation3 + $0x150] sm:$0xff]
      %v2356 = vld [vmem:[#allocation3 + $0x158] sm:$0xff]
      %v2357 = vld [vmem:[#allocation3 + $0x168] sm:$0xff]
      %v2358 = vld [vmem:[#allocation3 + $0x170] sm:$0xff]
      %v2359 = vld [vmem:[#allocation3 + $0x1] sm:$0xff]
      %v2360 = vld [vmem:[#allocation3 + $0x9] sm:$0xff]
      %v2361 = vld [vmem:[#allocation3 + $0x19] sm:$0xff]
      %v2362 = vld [vmem:[#allocation3 + $0x21] sm:$0xff]
      %v2363 = vld [vmem:[#allocation3 + $0x31] sm:$0xff]
      %v2364 = vld [vmem:[#allocation3 + $0x39] sm:$0xff]
      %v2365 = vld [vmem:[#allocation3 + $0x49] sm:$0xff]
      %v2366 = vld [vmem:[#allocation3 + $0x51] sm:$0xff]
      %v2367 = vld [vmem:[#allocation3 + $0x61] sm:$0xff]
      %v2368 = vld [vmem:[#allocation3 + $0x69] sm:$0xff]
      %v2369 = vld [vmem:[#allocation3 + $0x79] sm:$0xff]
      %v2370 = vld [vmem:[#allocation3 + $0x81] sm:$0xff]
      %v2371 = vld [vmem:[#allocation3 + $0x91] sm:$0xff]
      %v2372 = vld [vmem:[#allocation3 + $0x99] sm:$0xff]
      %v2373 = vld [vmem:[#allocation3 + $0xa9] sm:$0xff]
      %v2374 = vld [vmem:[#allocation3 + $0xb1] sm:$0xff]
      %v2375 = vld [vmem:[#allocation3 + $0xc1] sm:$0xff]
      %v2376 = vld [vmem:[#allocation3 + $0xc9] sm:$0xff]
      %v2377 = vld [vmem:[#allocation3 + $0xd9] sm:$0xff]
      %v2378 = vld [vmem:[#allocation3 + $0xe1] sm:$0xff]
      %v2379 = vld [vmem:[#allocation3 + $0xf1] sm:$0xff]
      %v2380 = vld [vmem:[#allocation3 + $0xf9] sm:$0xff]
      %v2381 = vld [vmem:[#allocation3 + $0x109] sm:$0xff]
      %v2382 = vld [vmem:[#allocation3 + $0x111] sm:$0xff]
      %v2383 = vld [vmem:[#allocation3 + $0x121] sm:$0xff]
      %v2384 = vld [vmem:[#allocation3 + $0x129] sm:$0xff]
      %v2385 = vld [vmem:[#allocation3 + $0x139] sm:$0xff]
      %v2386 = vld [vmem:[#allocation3 + $0x141] sm:$0xff]
      %v2387 = vld [vmem:[#allocation3 + $0x151] sm:$0xff]
      %v2388 = vld [vmem:[#allocation3 + $0x159] sm:$0xff]
      %v2389 = vld [vmem:[#allocation3 + $0x169] sm:$0xff]
      %v2390 = vld [vmem:[#allocation3 + $0x171] sm:$0xff]
      %v2391 = vld [vmem:[#allocation3 + $0x2] sm:$0xff]
      %v2392 = vld [vmem:[#allocation3 + $0xa] sm:$0xff]
      %v2393 = vld [vmem:[#allocation3 + $0x1a] sm:$0xff]
      %v2394 = vld [vmem:[#allocation3 + $0x22] sm:$0xff]
      %v2395 = vld [vmem:[#allocation3 + $0x32] sm:$0xff]
      %v2396 = vld [vmem:[#allocation3 + $0x3a] sm:$0xff]
      %v2397 = vld [vmem:[#allocation3 + $0x4a] sm:$0xff]
      %v2398 = vld [vmem:[#allocation3 + $0x52] sm:$0xff]
      %v2399 = vld [vmem:[#allocation3 + $0x62] sm:$0xff]
      %v2400 = vld [vmem:[#allocation3 + $0x6a] sm:$0xff]
      %v2401 = vld [vmem:[#allocation3 + $0x7a] sm:$0xff]
      %v2402 = vld [vmem:[#allocation3 + $0x82] sm:$0xff]
      %v2403 = vld [vmem:[#allocation3 + $0x92] sm:$0xff]
      %v2404 = vld [vmem:[#allocation3 + $0x9a] sm:$0xff]
      %v2405 = vld [vmem:[#allocation3 + $0xaa] sm:$0xff]
      %v2406 = vld [vmem:[#allocation3 + $0xb2] sm:$0xff]
      %v2407 = vld [vmem:[#allocation3 + $0xc2] sm:$0xff]
      %v2408 = vld [vmem:[#allocation3 + $0xca] sm:$0xff]
      %v2409 = vld [vmem:[#allocation3 + $0xda] sm:$0xff]
      %v2410 = vld [vmem:[#allocation3 + $0xe2] sm:$0xff]
      %v2411 = vld [vmem:[#allocation3 + $0xf2] sm:$0xff]
      %v2412 = vld [vmem:[#allocation3 + $0xfa] sm:$0xff]
      %v2413 = vld [vmem:[#allocation3 + $0x10a] sm:$0xff]
      %v2414 = vld [vmem:[#allocation3 + $0x112] sm:$0xff]
      %v2415 = vld [vmem:[#allocation3 + $0x122] sm:$0xff]
      %v2416 = vld [vmem:[#allocation3 + $0x12a] sm:$0xff]
      %v2417 = vld [vmem:[#allocation3 + $0x13a] sm:$0xff]
      %v2418 = vld [vmem:[#allocation3 + $0x142] sm:$0xff]
      %v2419 = vld [vmem:[#allocation3 + $0x152] sm:$0xff]
      %v2420 = vld [vmem:[#allocation3 + $0x15a] sm:$0xff]
      %v2421 = vld [vmem:[#allocation3 + $0x16a] sm:$0xff]
      %v2422 = vld [vmem:[#allocation3 + $0x172] sm:$0xff]
      %v2423 = vld [vmem:[%s2261] sm:$0xff]
      %v2424 = vld [vmem:[%s2261 + $0x8] sm:$0xff]
      %v2425 = vld [vmem:[%s2261 + $0x18] sm:$0xff]
      %v2426 = vld [vmem:[%s2261 + $0x20] sm:$0xff]
      %v2427 = vld [vmem:[%s2261 + $0x30] sm:$0xff]
      %v2428 = vld [vmem:[%s2261 + $0x38] sm:$0xff]
      %v2429 = vld [vmem:[%s2261 + $0x48] sm:$0xff]
      %v2430 = vld [vmem:[%s2261 + $0x50] sm:$0xff]
      %v2431 = vld [vmem:[%s2261 + $0x60] sm:$0xff]
      %v2432 = vld [vmem:[%s2261 + $0x68] sm:$0xff]
      %v2433 = vld [vmem:[%s2261 + $0x78] sm:$0xff]
      %v2434 = vld [vmem:[%s2261 + $0x80] sm:$0xff]
      %v2435 = vld [vmem:[%s2261 + $0x90] sm:$0xff]
      %v2436 = vld [vmem:[%s2261 + $0x98] sm:$0xff]
      %v2437 = vld [vmem:[%s2261 + $0xa8] sm:$0xff]
      %v2438 = vld [vmem:[%s2261 + $0xb0] sm:$0xff]
      %v2439 = vld [vmem:[%s2261 + $0xc0] sm:$0xff]
      %v2440 = vld [vmem:[%s2261 + $0xc8] sm:$0xff]
      %v2441 = vld [vmem:[%s2261 + $0xd8] sm:$0xff]
      %v2442 = vld [vmem:[%s2261 + $0xe0] sm:$0xff]
      %v2443 = vld [vmem:[%s2261 + $0xf0] sm:$0xff]
      %v2444 = vld [vmem:[%s2261 + $0xf8] sm:$0xff]
      %v2445 = vld [vmem:[%s2261 + $0x108] sm:$0xff]
      %v2446 = vld [vmem:[%s2261 + $0x110] sm:$0xff]
      %v2447 = vld [vmem:[%s2261 + $0x120] sm:$0xff]
      %v2448 = vld [vmem:[%s2261 + $0x128] sm:$0xff]
      %v2449 = vld [vmem:[%s2261 + $0x138] sm:$0xff]
      %v2450 = vld [vmem:[%s2261 + $0x140] sm:$0xff]
      %v2451 = vld [vmem:[%s2261 + $0x150] sm:$0xff]
      %v2452 = vld [vmem:[%s2261 + $0x158] sm:$0xff]
      %v2453 = vld [vmem:[%s2261 + $0x168] sm:$0xff]
      %v2454 = vld [vmem:[%s2261 + $0x170] sm:$0xff]
      %v2455 = vld [vmem:[%s2261 + $0x1] sm:$0xff]
      %v2456 = vld [vmem:[%s2261 + $0x9] sm:$0xff]
      %v2457 = vld [vmem:[%s2261 + $0x19] sm:$0xff]
      %v2458 = vld [vmem:[%s2261 + $0x21] sm:$0xff]
      %v2459 = vld [vmem:[%s2261 + $0x31] sm:$0xff]
      %v2460 = vld [vmem:[%s2261 + $0x39] sm:$0xff]
      %v2461 = vld [vmem:[%s2261 + $0x49] sm:$0xff]
      %v2462 = vld [vmem:[%s2261 + $0x51] sm:$0xff]
      %v2463 = vld [vmem:[%s2261 + $0x61] sm:$0xff]
      %v2464 = vld [vmem:[%s2261 + $0x69] sm:$0xff]
      %v2465 = vld [vmem:[%s2261 + $0x79] sm:$0xff]
      %v2466 = vld [vmem:[%s2261 + $0x81] sm:$0xff]
      %v2467 = vld [vmem:[%s2261 + $0x91] sm:$0xff]
      %v2468 = vld [vmem:[%s2261 + $0x99] sm:$0xff]
      %v2469 = vld [vmem:[%s2261 + $0xa9] sm:$0xff]
      %v2470 = vld [vmem:[%s2261 + $0xb1] sm:$0xff]
      %v2471 = vld [vmem:[%s2261 + $0xc1] sm:$0xff]
      %v2472 = vld [vmem:[%s2261 + $0xc9] sm:$0xff]
      %v2473 = vld [vmem:[%s2261 + $0xd9] sm:$0xff]
      %v2474 = vld [vmem:[%s2261 + $0xe1] sm:$0xff]
      %v2475 = vld [vmem:[%s2261 + $0xf1] sm:$0xff]
      %v2476 = vld [vmem:[%s2261 + $0xf9] sm:$0xff]
      %v2477 = vld [vmem:[%s2261 + $0x109] sm:$0xff]
      %v2478 = vld [vmem:[%s2261 + $0x111] sm:$0xff]
      %v2479 = vld [vmem:[%s2261 + $0x121] sm:$0xff]
      %v2480 = vld [vmem:[%s2261 + $0x129] sm:$0xff]
      %v2481 = vld [vmem:[%s2261 + $0x139] sm:$0xff]
      %v2482 = vld [vmem:[%s2261 + $0x141] sm:$0xff]
      %v2483 = vld [vmem:[%s2261 + $0x151] sm:$0xff]
      %v2484 = vld [vmem:[%s2261 + $0x159] sm:$0xff]
      %v2485 = vld [vmem:[%s2261 + $0x169] sm:$0xff]
      %v2486 = vld [vmem:[%s2261 + $0x171] sm:$0xff]
      %v2487 = vld [vmem:[%s2261 + $0x2] sm:$0xff]
      %v2488 = vld [vmem:[%s2261 + $0xa] sm:$0xff]
      %v2489 = vld [vmem:[%s2261 + $0x1a] sm:$0xff]
      %v2490 = vld [vmem:[%s2261 + $0x22] sm:$0xff]
      %v2491 = vld [vmem:[%s2261 + $0x32] sm:$0xff]
      %v2492 = vld [vmem:[%s2261 + $0x3a] sm:$0xff]
      %v2493 = vld [vmem:[%s2261 + $0x4a] sm:$0xff]
      %v2494 = vld [vmem:[%s2261 + $0x52] sm:$0xff]
      %v2495 = vld [vmem:[%s2261 + $0x62] sm:$0xff]
      %v2496 = vld [vmem:[%s2261 + $0x6a] sm:$0xff]
      %v2497 = vld [vmem:[%s2261 + $0x7a] sm:$0xff]
      %v2498 = vld [vmem:[%s2261 + $0x82] sm:$0xff]
      %v2499 = vld [vmem:[%s2261 + $0x92] sm:$0xff]
      %v2500 = vld [vmem:[%s2261 + $0x9a] sm:$0xff]
      %v2501 = vld [vmem:[%s2261 + $0xaa] sm:$0xff]
      %v2502 = vld [vmem:[%s2261 + $0xb2] sm:$0xff]
      %v2503 = vld [vmem:[%s2261 + $0xc2] sm:$0xff]
      %v2504 = vld [vmem:[%s2261 + $0xca] sm:$0xff]
      %v2505 = vld [vmem:[%s2261 + $0xda] sm:$0xff]
      %v2506 = vld [vmem:[%s2261 + $0xe2] sm:$0xff]
      %v2507 = vld [vmem:[%s2261 + $0xf2] sm:$0xff]
      %v2508 = vld [vmem:[%s2261 + $0xfa] sm:$0xff]
      %v2509 = vld [vmem:[%s2261 + $0x10a] sm:$0xff]
      %v2510 = vld [vmem:[%s2261 + $0x112] sm:$0xff]
      %v2511 = vld [vmem:[%s2261 + $0x122] sm:$0xff]
      %v2512 = vld [vmem:[%s2261 + $0x12a] sm:$0xff]
      %v2513 = vld [vmem:[%s2261 + $0x13a] sm:$0xff]
      %v2514 = vld [vmem:[%s2261 + $0x142] sm:$0xff]
      %v2515 = vld [vmem:[%s2261 + $0x152] sm:$0xff]
      %v2516 = vld [vmem:[%s2261 + $0x15a] sm:$0xff]
      %v2517 = vld [vmem:[%s2261 + $0x16a] sm:$0xff]
      %v2518 = vld [vmem:[%s2261 + $0x172] sm:$0xff]
      %s2519 = scalar_lea.vmem [#allocation3], 48
      %v2520 = vld [vmem:[%s2519] sm:$0xff]
      %v2521 = vld [vmem:[%s2519 + $0x8] sm:$0xff]
      %v2522 = vld [vmem:[%s2519 + $0x18] sm:$0xff]
      %v2523 = vld [vmem:[%s2519 + $0x20] sm:$0xff]
      %v2524 = vld [vmem:[%s2519 + $0x30] sm:$0xff]
      %v2525 = vld [vmem:[%s2519 + $0x38] sm:$0xff]
      %v2526 = vld [vmem:[%s2519 + $0x48] sm:$0xff]
      %v2527 = vld [vmem:[%s2519 + $0x50] sm:$0xff]
      %v2528 = vld [vmem:[%s2519 + $0x60] sm:$0xff]
      %v2529 = vld [vmem:[%s2519 + $0x68] sm:$0xff]
      %v2530 = vld [vmem:[%s2519 + $0x78] sm:$0xff]
      %v2531 = vld [vmem:[%s2519 + $0x80] sm:$0xff]
      %v2532 = vld [vmem:[%s2519 + $0x90] sm:$0xff]
      %v2533 = vld [vmem:[%s2519 + $0x98] sm:$0xff]
      %v2534 = vld [vmem:[%s2519 + $0xa8] sm:$0xff]
      %v2535 = vld [vmem:[%s2519 + $0xb0] sm:$0xff]
      %v2536 = vld [vmem:[%s2519 + $0xc0] sm:$0xff]
      %v2537 = vld [vmem:[%s2519 + $0xc8] sm:$0xff]
      %v2538 = vld [vmem:[%s2519 + $0xd8] sm:$0xff]
      %v2539 = vld [vmem:[%s2519 + $0xe0] sm:$0xff]
      %v2540 = vld [vmem:[%s2519 + $0xf0] sm:$0xff]
      %v2541 = vld [vmem:[%s2519 + $0xf8] sm:$0xff]
      %v2542 = vld [vmem:[%s2519 + $0x108] sm:$0xff]
      %v2543 = vld [vmem:[%s2519 + $0x110] sm:$0xff]
      %v2544 = vld [vmem:[%s2519 + $0x120] sm:$0xff]
      %v2545 = vld [vmem:[%s2519 + $0x128] sm:$0xff]
      %v2546 = vld [vmem:[%s2519 + $0x138] sm:$0xff]
      %v2547 = vld [vmem:[%s2519 + $0x140] sm:$0xff]
      %v2548 = vld [vmem:[%s2519 + $0x150] sm:$0xff]
      %v2549 = vld [vmem:[%s2519 + $0x158] sm:$0xff]
      %v2550 = vld [vmem:[%s2519 + $0x168] sm:$0xff]
      %v2551 = vld [vmem:[%s2519 + $0x170] sm:$0xff]
      %v2552 = vld [vmem:[%s2519 + $0x1] sm:$0xff]
      %v2553 = vld [vmem:[%s2519 + $0x9] sm:$0xff]
      %v2554 = vld [vmem:[%s2519 + $0x19] sm:$0xff]
      %v2555 = vld [vmem:[%s2519 + $0x21] sm:$0xff]
      %v2556 = vld [vmem:[%s2519 + $0x31] sm:$0xff]
      %v2557 = vld [vmem:[%s2519 + $0x39] sm:$0xff]
      %v2558 = vld [vmem:[%s2519 + $0x49] sm:$0xff]
      %v2559 = vld [vmem:[%s2519 + $0x51] sm:$0xff]
      %v2560 = vld [vmem:[%s2519 + $0x61] sm:$0xff]
      %v2561 = vld [vmem:[%s2519 + $0x69] sm:$0xff]
      %v2562 = vld [vmem:[%s2519 + $0x79] sm:$0xff]
      %v2563 = vld [vmem:[%s2519 + $0x81] sm:$0xff]
      %v2564 = vld [vmem:[%s2519 + $0x91] sm:$0xff]
      %v2565 = vld [vmem:[%s2519 + $0x99] sm:$0xff]
      %v2566 = vld [vmem:[%s2519 + $0xa9] sm:$0xff]
      %v2567 = vld [vmem:[%s2519 + $0xb1] sm:$0xff]
      %v2568 = vld [vmem:[%s2519 + $0xc1] sm:$0xff]
      %v2569 = vld [vmem:[%s2519 + $0xc9] sm:$0xff]
      %v2570 = vld [vmem:[%s2519 + $0xd9] sm:$0xff]
      %v2571 = vld [vmem:[%s2519 + $0xe1] sm:$0xff]
      %v2572 = vld [vmem:[%s2519 + $0xf1] sm:$0xff]
      %v2573 = vld [vmem:[%s2519 + $0xf9] sm:$0xff]
      %v2574 = vld [vmem:[%s2519 + $0x109] sm:$0xff]
      %v2575 = vld [vmem:[%s2519 + $0x111] sm:$0xff]
      %v2576 = vld [vmem:[%s2519 + $0x121] sm:$0xff]
      %v2577 = vld [vmem:[%s2519 + $0x129] sm:$0xff]
      %v2578 = vld [vmem:[%s2519 + $0x139] sm:$0xff]
      %v2579 = vld [vmem:[%s2519 + $0x141] sm:$0xff]
      %v2580 = vld [vmem:[%s2519 + $0x151] sm:$0xff]
      %v2581 = vld [vmem:[%s2519 + $0x159] sm:$0xff]
      %v2582 = vld [vmem:[%s2519 + $0x169] sm:$0xff]
      %v2583 = vld [vmem:[%s2519 + $0x171] sm:$0xff]
      %v2584 = vld [vmem:[%s2519 + $0x2] sm:$0xff]
      %v2585 = vld [vmem:[%s2519 + $0xa] sm:$0xff]
      %v2586 = vld [vmem:[%s2519 + $0x1a] sm:$0xff]
      %v2587 = vld [vmem:[%s2519 + $0x22] sm:$0xff]
      %v2588 = vld [vmem:[%s2519 + $0x32] sm:$0xff]
      %v2589 = vld [vmem:[%s2519 + $0x3a] sm:$0xff]
      %v2590 = vld [vmem:[%s2519 + $0x4a] sm:$0xff]
      %v2591 = vld [vmem:[%s2519 + $0x52] sm:$0xff]
      %v2592 = vld [vmem:[%s2519 + $0x62] sm:$0xff]
      %v2593 = vld [vmem:[%s2519 + $0x6a] sm:$0xff]
      %v2594 = vld [vmem:[%s2519 + $0x7a] sm:$0xff]
      %v2595 = vld [vmem:[%s2519 + $0x82] sm:$0xff]
      %v2596 = vld [vmem:[%s2519 + $0x92] sm:$0xff]
      %v2597 = vld [vmem:[%s2519 + $0x9a] sm:$0xff]
      %v2598 = vld [vmem:[%s2519 + $0xaa] sm:$0xff]
      %v2599 = vld [vmem:[%s2519 + $0xb2] sm:$0xff]
      %v2600 = vld [vmem:[%s2519 + $0xc2] sm:$0xff]
      %v2601 = vld [vmem:[%s2519 + $0xca] sm:$0xff]
      %v2602 = vld [vmem:[%s2519 + $0xda] sm:$0xff]
      %v2603 = vld [vmem:[%s2519 + $0xe2] sm:$0xff]
      %v2604 = vld [vmem:[%s2519 + $0xf2] sm:$0xff]
      %v2605 = vld [vmem:[%s2519 + $0xfa] sm:$0xff]
      %v2606 = vld [vmem:[%s2519 + $0x10a] sm:$0xff]
      %v2607 = vld [vmem:[%s2519 + $0x112] sm:$0xff]
      %v2608 = vld [vmem:[%s2519 + $0x122] sm:$0xff]
      %v2609 = vld [vmem:[%s2519 + $0x12a] sm:$0xff]
      %v2610 = vld [vmem:[%s2519 + $0x13a] sm:$0xff]
      %v2611 = vld [vmem:[%s2519 + $0x142] sm:$0xff]
      %v2612 = vld [vmem:[%s2519 + $0x152] sm:$0xff]
      %v2613 = vld [vmem:[%s2519 + $0x15a] sm:$0xff]
      %v2614 = vld [vmem:[%s2519 + $0x16a] sm:$0xff]
      %v2615 = vld [vmem:[%s2519 + $0x172] sm:$0xff]
      %2648 = vrot.lane.b32.xlu0 %v2359, 32
      %v2649 = vpop.permute.xlu0 %2648
      %2650 = vrot.lane.b32.xlu0 %v2360, 32
      %v2651 = vpop.permute.xlu0 %2650
      %2652 = vrot.lane.b32.xlu0 %v2361, 32
      %v2653 = vpop.permute.xlu0 %2652
      %2654 = vrot.lane.b32.xlu0 %v2362, 32
      %v2655 = vpop.permute.xlu0 %2654
      %2656 = vrot.lane.b32.xlu0 %v2363, 32
      %v2657 = vpop.permute.xlu0 %2656
      %2658 = vrot.lane.b32.xlu0 %v2364, 32
      %v2659 = vpop.permute.xlu0 %2658
      %2660 = vrot.lane.b32.xlu0 %v2365, 32
      %v2661 = vpop.permute.xlu0 %2660
      %2662 = vrot.lane.b32.xlu0 %v2366, 32
      %v2663 = vpop.permute.xlu0 %2662
      %2664 = vrot.lane.b32.xlu0 %v2367, 32
      %v2665 = vpop.permute.xlu0 %2664
      %2666 = vrot.lane.b32.xlu0 %v2368, 32
      %v2667 = vpop.permute.xlu0 %2666
      %2668 = vrot.lane.b32.xlu0 %v2369, 32
      %v2669 = vpop.permute.xlu0 %2668
      %2670 = vrot.lane.b32.xlu0 %v2370, 32
      %v2671 = vpop.permute.xlu0 %2670
      %2672 = vrot.lane.b32.xlu0 %v2371, 32
      %v2673 = vpop.permute.xlu0 %2672
      %2674 = vrot.lane.b32.xlu0 %v2372, 32
      %v2675 = vpop.permute.xlu0 %2674
      %2676 = vrot.lane.b32.xlu0 %v2373, 32
      %v2677 = vpop.permute.xlu0 %2676
      %2678 = vrot.lane.b32.xlu0 %v2374, 32
      %v2679 = vpop.permute.xlu0 %2678
      %2680 = vrot.lane.b32.xlu0 %v2375, 32
      %v2681 = vpop.permute.xlu0 %2680
      %2682 = vrot.lane.b32.xlu0 %v2376, 32
      %v2683 = vpop.permute.xlu0 %2682
      %2684 = vrot.lane.b32.xlu0 %v2377, 32
      %v2685 = vpop.permute.xlu0 %2684
      %2686 = vrot.lane.b32.xlu0 %v2378, 32
      %v2687 = vpop.permute.xlu0 %2686
      %2688 = vrot.lane.b32.xlu0 %v2379, 32
      %v2689 = vpop.permute.xlu0 %2688
      %2690 = vrot.lane.b32.xlu0 %v2380, 32
      %v2691 = vpop.permute.xlu0 %2690
      %2692 = vrot.lane.b32.xlu0 %v2381, 32
      %v2693 = vpop.permute.xlu0 %2692
      %2694 = vrot.lane.b32.xlu0 %v2382, 32
      %v2695 = vpop.permute.xlu0 %2694
      %2696 = vrot.lane.b32.xlu0 %v2383, 32
      %v2697 = vpop.permute.xlu0 %2696
      %2698 = vrot.lane.b32.xlu0 %v2384, 32
      %v2699 = vpop.permute.xlu0 %2698
      %2700 = vrot.lane.b32.xlu0 %v2385, 32
      %v2701 = vpop.permute.xlu0 %2700
      %2702 = vrot.lane.b32.xlu0 %v2386, 32
      %v2703 = vpop.permute.xlu0 %2702
      %2704 = vrot.lane.b32.xlu0 %v2387, 32
      %v2705 = vpop.permute.xlu0 %2704
      %2706 = vrot.lane.b32.xlu0 %v2388, 32
      %v2707 = vpop.permute.xlu0 %2706
      %2708 = vrot.lane.b32.xlu0 %v2389, 32
      %v2709 = vpop.permute.xlu0 %2708
      %2710 = vrot.lane.b32.xlu0 %v2390, 32
      %v2711 = vpop.permute.xlu0 %2710
      %2776 = vrot.lane.b32.xlu0 %v2391, 64
      %v2777 = vpop.permute.xlu0 %2776
      %2778 = vrot.lane.b32.xlu0 %v2392, 64
      %v2779 = vpop.permute.xlu0 %2778
      %2780 = vrot.lane.b32.xlu0 %v2393, 64
      %v2781 = vpop.permute.xlu0 %2780
      %2782 = vrot.lane.b32.xlu0 %v2394, 64
      %v2783 = vpop.permute.xlu0 %2782
      %2784 = vrot.lane.b32.xlu0 %v2395, 64
      %v2785 = vpop.permute.xlu0 %2784
      %2786 = vrot.lane.b32.xlu0 %v2396, 64
      %v2787 = vpop.permute.xlu0 %2786
      %2788 = vrot.lane.b32.xlu0 %v2397, 64
      %v2789 = vpop.permute.xlu0 %2788
      %2790 = vrot.lane.b32.xlu0 %v2398, 64
      %v2791 = vpop.permute.xlu0 %2790
      %2792 = vrot.lane.b32.xlu0 %v2399, 64
      %v2793 = vpop.permute.xlu0 %2792
      %2794 = vrot.lane.b32.xlu0 %v2400, 64
      %v2795 = vpop.permute.xlu0 %2794
      %2796 = vrot.lane.b32.xlu0 %v2401, 64
      %v2797 = vpop.permute.xlu0 %2796
      %2798 = vrot.lane.b32.xlu0 %v2402, 64
      %v2799 = vpop.permute.xlu0 %2798
      %2800 = vrot.lane.b32.xlu0 %v2403, 64
      %v2801 = vpop.permute.xlu0 %2800
      %2802 = vrot.lane.b32.xlu0 %v2404, 64
      %v2803 = vpop.permute.xlu0 %2802
      %2804 = vrot.lane.b32.xlu0 %v2405, 64
      %v2805 = vpop.permute.xlu0 %2804
      %2806 = vrot.lane.b32.xlu0 %v2406, 64
      %v2807 = vpop.permute.xlu0 %2806
      %2808 = vrot.lane.b32.xlu0 %v2407, 64
      %v2809 = vpop.permute.xlu0 %2808
      %2810 = vrot.lane.b32.xlu0 %v2408, 64
      %v2811 = vpop.permute.xlu0 %2810
      %2812 = vrot.lane.b32.xlu0 %v2409, 64
      %v2813 = vpop.permute.xlu0 %2812
      %2814 = vrot.lane.b32.xlu0 %v2410, 64
      %v2815 = vpop.permute.xlu0 %2814
      %2816 = vrot.lane.b32.xlu0 %v2411, 64
      %v2817 = vpop.permute.xlu0 %2816
      %2818 = vrot.lane.b32.xlu0 %v2412, 64
      %v2819 = vpop.permute.xlu0 %2818
      %2820 = vrot.lane.b32.xlu0 %v2413, 64
      %v2821 = vpop.permute.xlu0 %2820
      %2822 = vrot.lane.b32.xlu0 %v2414, 64
      %v2823 = vpop.permute.xlu0 %2822
      %2824 = vrot.lane.b32.xlu0 %v2415, 64
      %v2825 = vpop.permute.xlu0 %2824
      %2826 = vrot.lane.b32.xlu0 %v2416, 64
      %v2827 = vpop.permute.xlu0 %2826
      %2828 = vrot.lane.b32.xlu0 %v2417, 64
      %v2829 = vpop.permute.xlu0 %2828
      %2830 = vrot.lane.b32.xlu0 %v2418, 64
      %v2831 = vpop.permute.xlu0 %2830
      %2832 = vrot.lane.b32.xlu0 %v2419, 64
      %v2833 = vpop.permute.xlu0 %2832
      %2834 = vrot.lane.b32.xlu0 %v2420, 64
      %v2835 = vpop.permute.xlu0 %2834
      %2836 = vrot.lane.b32.xlu0 %v2421, 64
      %v2837 = vpop.permute.xlu0 %2836
      %2838 = vrot.lane.b32.xlu0 %v2422, 64
      %v2839 = vpop.permute.xlu0 %2838
      %2904 = vrot.lane.b32.xlu0 %v2423, 96
      %v2905 = vpop.permute.xlu0 %2904
      %2906 = vrot.lane.b32.xlu0 %v2424, 96
      %v2907 = vpop.permute.xlu0 %2906
      %2908 = vrot.lane.b32.xlu0 %v2425, 96
      %v2909 = vpop.permute.xlu0 %2908
      %2910 = vrot.lane.b32.xlu0 %v2426, 96
      %v2911 = vpop.permute.xlu0 %2910
      %2912 = vrot.lane.b32.xlu0 %v2427, 96
      %v2913 = vpop.permute.xlu0 %2912
      %2914 = vrot.lane.b32.xlu0 %v2428, 96
      %v2915 = vpop.permute.xlu0 %2914
      %2916 = vrot.lane.b32.xlu0 %v2429, 96
      %v2917 = vpop.permute.xlu0 %2916
      %2918 = vrot.lane.b32.xlu0 %v2430, 96
      %v2919 = vpop.permute.xlu0 %2918
      %2920 = vrot.lane.b32.xlu0 %v2431, 96
      %v2921 = vpop.permute.xlu0 %2920
      %2922 = vrot.lane.b32.xlu0 %v2432, 96
      %v2923 = vpop.permute.xlu0 %2922
      %2924 = vrot.lane.b32.xlu0 %v2433, 96
      %v2925 = vpop.permute.xlu0 %2924
      %2926 = vrot.lane.b32.xlu0 %v2434, 96
      %v2927 = vpop.permute.xlu0 %2926
      %2928 = vrot.lane.b32.xlu0 %v2435, 96
      %v2929 = vpop.permute.xlu0 %2928
      %2930 = vrot.lane.b32.xlu0 %v2436, 96
      %v2931 = vpop.permute.xlu0 %2930
      %2932 = vrot.lane.b32.xlu0 %v2437, 96
      %v2933 = vpop.permute.xlu0 %2932
      %2934 = vrot.lane.b32.xlu0 %v2438, 96
      %v2935 = vpop.permute.xlu0 %2934
      %2936 = vrot.lane.b32.xlu0 %v2439, 96
      %v2937 = vpop.permute.xlu0 %2936
      %2938 = vrot.lane.b32.xlu0 %v2440, 96
      %v2939 = vpop.permute.xlu0 %2938
      %2940 = vrot.lane.b32.xlu0 %v2441, 96
      %v2941 = vpop.permute.xlu0 %2940
      %2942 = vrot.lane.b32.xlu0 %v2442, 96
      %v2943 = vpop.permute.xlu0 %2942
      %2944 = vrot.lane.b32.xlu0 %v2443, 96
      %v2945 = vpop.permute.xlu0 %2944
      %2946 = vrot.lane.b32.xlu0 %v2444, 96
      %v2947 = vpop.permute.xlu0 %2946
      %2948 = vrot.lane.b32.xlu0 %v2445, 96
      %v2949 = vpop.permute.xlu0 %2948
      %2950 = vrot.lane.b32.xlu0 %v2446, 96
      %v2951 = vpop.permute.xlu0 %2950
      %2952 = vrot.lane.b32.xlu0 %v2447, 96
      %v2953 = vpop.permute.xlu0 %2952
      %2954 = vrot.lane.b32.xlu0 %v2448, 96
      %v2955 = vpop.permute.xlu0 %2954
      %2956 = vrot.lane.b32.xlu0 %v2449, 96
      %v2957 = vpop.permute.xlu0 %2956
      %2958 = vrot.lane.b32.xlu0 %v2450, 96
      %v2959 = vpop.permute.xlu0 %2958
      %2960 = vrot.lane.b32.xlu0 %v2451, 96
      %v2961 = vpop.permute.xlu0 %2960
      %2962 = vrot.lane.b32.xlu0 %v2452, 96
      %v2963 = vpop.permute.xlu0 %2962
      %2964 = vrot.lane.b32.xlu0 %v2453, 96
      %v2965 = vpop.permute.xlu0 %2964
      %2966 = vrot.lane.b32.xlu0 %v2454, 96
      %v2967 = vpop.permute.xlu0 %2966
      %3032 = vrot.lane.b32.xlu0 %v2487, 32
      %v3033 = vpop.permute.xlu0 %3032
      %3034 = vrot.lane.b32.xlu0 %v2488, 32
      %v3035 = vpop.permute.xlu0 %3034
      %3036 = vrot.lane.b32.xlu0 %v2489, 32
      %v3037 = vpop.permute.xlu0 %3036
      %3038 = vrot.lane.b32.xlu0 %v2490, 32
      %v3039 = vpop.permute.xlu0 %3038
      %3040 = vrot.lane.b32.xlu0 %v2491, 32
      %v3041 = vpop.permute.xlu0 %3040
      %3042 = vrot.lane.b32.xlu0 %v2492, 32
      %v3043 = vpop.permute.xlu0 %3042
      %3044 = vrot.lane.b32.xlu0 %v2493, 32
      %v3045 = vpop.permute.xlu0 %3044
      %3046 = vrot.lane.b32.xlu0 %v2494, 32
      %v3047 = vpop.permute.xlu0 %3046
      %3048 = vrot.lane.b32.xlu0 %v2495, 32
      %v3049 = vpop.permute.xlu0 %3048
      %3050 = vrot.lane.b32.xlu0 %v2496, 32
      %v3051 = vpop.permute.xlu0 %3050
      %3052 = vrot.lane.b32.xlu0 %v2497, 32
      %v3053 = vpop.permute.xlu0 %3052
      %3054 = vrot.lane.b32.xlu0 %v2498, 32
      %v3055 = vpop.permute.xlu0 %3054
      %3056 = vrot.lane.b32.xlu0 %v2499, 32
      %v3057 = vpop.permute.xlu0 %3056
      %3058 = vrot.lane.b32.xlu0 %v2500, 32
      %v3059 = vpop.permute.xlu0 %3058
      %3060 = vrot.lane.b32.xlu0 %v2501, 32
      %v3061 = vpop.permute.xlu0 %3060
      %3062 = vrot.lane.b32.xlu0 %v2502, 32
      %v3063 = vpop.permute.xlu0 %3062
      %3064 = vrot.lane.b32.xlu0 %v2503, 32
      %v3065 = vpop.permute.xlu0 %3064
      %3066 = vrot.lane.b32.xlu0 %v2504, 32
      %v3067 = vpop.permute.xlu0 %3066
      %3068 = vrot.lane.b32.xlu0 %v2505, 32
      %v3069 = vpop.permute.xlu0 %3068
      %3070 = vrot.lane.b32.xlu0 %v2506, 32
      %v3071 = vpop.permute.xlu0 %3070
      %3072 = vrot.lane.b32.xlu0 %v2507, 32
      %v3073 = vpop.permute.xlu0 %3072
      %3074 = vrot.lane.b32.xlu0 %v2508, 32
      %v3075 = vpop.permute.xlu0 %3074
      %3076 = vrot.lane.b32.xlu0 %v2509, 32
      %v3077 = vpop.permute.xlu0 %3076
      %3078 = vrot.lane.b32.xlu0 %v2510, 32
      %v3079 = vpop.permute.xlu0 %3078
      %3080 = vrot.lane.b32.xlu0 %v2511, 32
      %v3081 = vpop.permute.xlu0 %3080
      %3082 = vrot.lane.b32.xlu0 %v2512, 32
      %v3083 = vpop.permute.xlu0 %3082
      %3084 = vrot.lane.b32.xlu0 %v2513, 32
      %v3085 = vpop.permute.xlu0 %3084
      %3086 = vrot.lane.b32.xlu0 %v2514, 32
      %v3087 = vpop.permute.xlu0 %3086
      %3088 = vrot.lane.b32.xlu0 %v2515, 32
      %v3089 = vpop.permute.xlu0 %3088
      %3090 = vrot.lane.b32.xlu0 %v2516, 32
      %v3091 = vpop.permute.xlu0 %3090
      %3092 = vrot.lane.b32.xlu0 %v2517, 32
      %v3093 = vpop.permute.xlu0 %3092
      %3094 = vrot.lane.b32.xlu0 %v2518, 32
      %v3095 = vpop.permute.xlu0 %3094
      %3160 = vrot.lane.b32.xlu0 %v2520, 64
      %v3161 = vpop.permute.xlu0 %3160
      %3162 = vrot.lane.b32.xlu0 %v2521, 64
      %v3163 = vpop.permute.xlu0 %3162
      %3164 = vrot.lane.b32.xlu0 %v2522, 64
      %v3165 = vpop.permute.xlu0 %3164
      %3166 = vrot.lane.b32.xlu0 %v2523, 64
      %v3167 = vpop.permute.xlu0 %3166
      %3168 = vrot.lane.b32.xlu0 %v2524, 64
      %v3169 = vpop.permute.xlu0 %3168
      %3170 = vrot.lane.b32.xlu0 %v2525, 64
      %v3171 = vpop.permute.xlu0 %3170
      %3172 = vrot.lane.b32.xlu0 %v2526, 64
      %v3173 = vpop.permute.xlu0 %3172
      %3174 = vrot.lane.b32.xlu0 %v2527, 64
      %v3175 = vpop.permute.xlu0 %3174
      %3176 = vrot.lane.b32.xlu0 %v2528, 64
      %v3177 = vpop.permute.xlu0 %3176
      %3178 = vrot.lane.b32.xlu0 %v2529, 64
      %v3179 = vpop.permute.xlu0 %3178
      %3180 = vrot.lane.b32.xlu0 %v2530, 64
      %v3181 = vpop.permute.xlu0 %3180
      %3182 = vrot.lane.b32.xlu0 %v2531, 64
      %v3183 = vpop.permute.xlu0 %3182
      %3184 = vrot.lane.b32.xlu0 %v2532, 64
      %v3185 = vpop.permute.xlu0 %3184
      %3186 = vrot.lane.b32.xlu0 %v2533, 64
      %v3187 = vpop.permute.xlu0 %3186
      %3188 = vrot.lane.b32.xlu0 %v2534, 64
      %v3189 = vpop.permute.xlu0 %3188
      %3190 = vrot.lane.b32.xlu0 %v2535, 64
      %v3191 = vpop.permute.xlu0 %3190
      %3192 = vrot.lane.b32.xlu0 %v2536, 64
      %v3193 = vpop.permute.xlu0 %3192
      %3194 = vrot.lane.b32.xlu0 %v2537, 64
      %v3195 = vpop.permute.xlu0 %3194
      %3196 = vrot.lane.b32.xlu0 %v2538, 64
      %v3197 = vpop.permute.xlu0 %3196
      %3198 = vrot.lane.b32.xlu0 %v2539, 64
      %v3199 = vpop.permute.xlu0 %3198
      %3200 = vrot.lane.b32.xlu0 %v2540, 64
      %v3201 = vpop.permute.xlu0 %3200
      %3202 = vrot.lane.b32.xlu0 %v2541, 64
      %v3203 = vpop.permute.xlu0 %3202
      %3204 = vrot.lane.b32.xlu0 %v2542, 64
      %v3205 = vpop.permute.xlu0 %3204
      %3206 = vrot.lane.b32.xlu0 %v2543, 64
      %v3207 = vpop.permute.xlu0 %3206
      %3208 = vrot.lane.b32.xlu0 %v2544, 64
      %v3209 = vpop.permute.xlu0 %3208
      %3210 = vrot.lane.b32.xlu0 %v2545, 64
      %v3211 = vpop.permute.xlu0 %3210
      %3212 = vrot.lane.b32.xlu0 %v2546, 64
      %v3213 = vpop.permute.xlu0 %3212
      %3214 = vrot.lane.b32.xlu0 %v2547, 64
      %v3215 = vpop.permute.xlu0 %3214
      %3216 = vrot.lane.b32.xlu0 %v2548, 64
      %v3217 = vpop.permute.xlu0 %3216
      %3218 = vrot.lane.b32.xlu0 %v2549, 64
      %v3219 = vpop.permute.xlu0 %3218
      %3220 = vrot.lane.b32.xlu0 %v2550, 64
      %v3221 = vpop.permute.xlu0 %3220
      %3222 = vrot.lane.b32.xlu0 %v2551, 64
      %v3223 = vpop.permute.xlu0 %3222
      %3288 = vrot.lane.b32.xlu0 %v2552, 96
      %v3289 = vpop.permute.xlu0 %3288
      %3290 = vrot.lane.b32.xlu0 %v2553, 96
      %v3291 = vpop.permute.xlu0 %3290
      %3292 = vrot.lane.b32.xlu0 %v2554, 96
      %v3293 = vpop.permute.xlu0 %3292
      %3294 = vrot.lane.b32.xlu0 %v2555, 96
      %v3295 = vpop.permute.xlu0 %3294
      %3296 = vrot.lane.b32.xlu0 %v2556, 96
      %v3297 = vpop.permute.xlu0 %3296
      %3298 = vrot.lane.b32.xlu0 %v2557, 96
      %v3299 = vpop.permute.xlu0 %3298
      %3300 = vrot.lane.b32.xlu0 %v2558, 96
      %v3301 = vpop.permute.xlu0 %3300
      %3302 = vrot.lane.b32.xlu0 %v2559, 96
      %v3303 = vpop.permute.xlu0 %3302
      %3304 = vrot.lane.b32.xlu0 %v2560, 96
      %v3305 = vpop.permute.xlu0 %3304
      %3306 = vrot.lane.b32.xlu0 %v2561, 96
      %v3307 = vpop.permute.xlu0 %3306
      %3308 = vrot.lane.b32.xlu0 %v2562, 96
      %v3309 = vpop.permute.xlu0 %3308
      %3310 = vrot.lane.b32.xlu0 %v2563, 96
      %v3311 = vpop.permute.xlu0 %3310
      %3312 = vrot.lane.b32.xlu0 %v2564, 96
      %v3313 = vpop.permute.xlu0 %3312
      %3314 = vrot.lane.b32.xlu0 %v2565, 96
      %v3315 = vpop.permute.xlu0 %3314
      %3316 = vrot.lane.b32.xlu0 %v2566, 96
      %v3317 = vpop.permute.xlu0 %3316
      %3318 = vrot.lane.b32.xlu0 %v2567, 96
      %v3319 = vpop.permute.xlu0 %3318
      %3320 = vrot.lane.b32.xlu0 %v2568, 96
      %v3321 = vpop.permute.xlu0 %3320
      %3322 = vrot.lane.b32.xlu0 %v2569, 96
      %v3323 = vpop.permute.xlu0 %3322
      %3324 = vrot.lane.b32.xlu0 %v2570, 96
      %v3325 = vpop.permute.xlu0 %3324
      %3326 = vrot.lane.b32.xlu0 %v2571, 96
      %v3327 = vpop.permute.xlu0 %3326
      %3328 = vrot.lane.b32.xlu0 %v2572, 96
      %v3329 = vpop.permute.xlu0 %3328
      %3330 = vrot.lane.b32.xlu0 %v2573, 96
      %v3331 = vpop.permute.xlu0 %3330
      %3332 = vrot.lane.b32.xlu0 %v2574, 96
      %v3333 = vpop.permute.xlu0 %3332
      %3334 = vrot.lane.b32.xlu0 %v2575, 96
      %v3335 = vpop.permute.xlu0 %3334
      %3336 = vrot.lane.b32.xlu0 %v2576, 96
      %v3337 = vpop.permute.xlu0 %3336
      %3338 = vrot.lane.b32.xlu0 %v2577, 96
      %v3339 = vpop.permute.xlu0 %3338
      %3340 = vrot.lane.b32.xlu0 %v2578, 96
      %v3341 = vpop.permute.xlu0 %3340
      %3342 = vrot.lane.b32.xlu0 %v2579, 96
      %v3343 = vpop.permute.xlu0 %3342
      %3344 = vrot.lane.b32.xlu0 %v2580, 96
      %v3345 = vpop.permute.xlu0 %3344
      %3346 = vrot.lane.b32.xlu0 %v2581, 96
      %v3347 = vpop.permute.xlu0 %3346
      %3348 = vrot.lane.b32.xlu0 %v2582, 96
      %v3349 = vpop.permute.xlu0 %3348
      %3350 = vrot.lane.b32.xlu0 %v2583, 96
      %v3351 = vpop.permute.xlu0 %3350
      %v3384 = vsel %vm634, %v2327, %v2649
      %v3385 = vsel %vm634, %v2328, %v2651
      %v3386 = vsel %vm634, %v2329, %v2653
      %v3387 = vsel %vm634, %v2330, %v2655
      %v3388 = vsel %vm634, %v2331, %v2657
      %v3389 = vsel %vm634, %v2332, %v2659
      %v3390 = vsel %vm634, %v2333, %v2661
      %v3391 = vsel %vm634, %v2334, %v2663
      %v3392 = vsel %vm634, %v2335, %v2665
      %v3393 = vsel %vm634, %v2336, %v2667
      %v3394 = vsel %vm634, %v2337, %v2669
      %v3395 = vsel %vm634, %v2338, %v2671
      %v3396 = vsel %vm634, %v2339, %v2673
      %v3397 = vsel %vm634, %v2340, %v2675
      %v3398 = vsel %vm634, %v2341, %v2677
      %v3399 = vsel %vm634, %v2342, %v2679
      %v3400 = vsel %vm634, %v2343, %v2681
      %v3401 = vsel %vm634, %v2344, %v2683
      %v3402 = vsel %vm634, %v2345, %v2685
      %v3403 = vsel %vm634, %v2346, %v2687
      %v3404 = vsel %vm634, %v2347, %v2689
      %v3405 = vsel %vm634, %v2348, %v2691
      %v3406 = vsel %vm634, %v2349, %v2693
      %v3407 = vsel %vm634, %v2350, %v2695
      %v3408 = vsel %vm634, %v2351, %v2697
      %v3409 = vsel %vm634, %v2352, %v2699
      %v3410 = vsel %vm634, %v2353, %v2701
      %v3411 = vsel %vm634, %v2354, %v2703
      %v3412 = vsel %vm634, %v2355, %v2705
      %v3413 = vsel %vm634, %v2356, %v2707
      %v3414 = vsel %vm634, %v2357, %v2709
      %v3415 = vsel %vm634, %v2358, %v2711
      %v3416 = vsel %vm424, %v3384, %v2777
      %v3417 = vsel %vm424, %v3385, %v2779
      %v3418 = vsel %vm424, %v3386, %v2781
      %v3419 = vsel %vm424, %v3387, %v2783
      %v3420 = vsel %vm424, %v3388, %v2785
      %v3421 = vsel %vm424, %v3389, %v2787
      %v3422 = vsel %vm424, %v3390, %v2789
      %v3423 = vsel %vm424, %v3391, %v2791
      %v3424 = vsel %vm424, %v3392, %v2793
      %v3425 = vsel %vm424, %v3393, %v2795
      %v3426 = vsel %vm424, %v3394, %v2797
      %v3427 = vsel %vm424, %v3395, %v2799
      %v3428 = vsel %vm424, %v3396, %v2801
      %v3429 = vsel %vm424, %v3397, %v2803
      %v3430 = vsel %vm424, %v3398, %v2805
      %v3431 = vsel %vm424, %v3399, %v2807
      %v3432 = vsel %vm424, %v3400, %v2809
      %v3433 = vsel %vm424, %v3401, %v2811
      %v3434 = vsel %vm424, %v3402, %v2813
      %v3435 = vsel %vm424, %v3403, %v2815
      %v3436 = vsel %vm424, %v3404, %v2817
      %v3437 = vsel %vm424, %v3405, %v2819
      %v3438 = vsel %vm424, %v3406, %v2821
      %v3439 = vsel %vm424, %v3407, %v2823
      %v3440 = vsel %vm424, %v3408, %v2825
      %v3441 = vsel %vm424, %v3409, %v2827
      %v3442 = vsel %vm424, %v3410, %v2829
      %v3443 = vsel %vm424, %v3411, %v2831
      %v3444 = vsel %vm424, %v3412, %v2833
      %v3445 = vsel %vm424, %v3413, %v2835
      %v3446 = vsel %vm424, %v3414, %v2837
      %v3447 = vsel %vm424, %v3415, %v2839
      %vm3448 = vcmask 785408
      %v3449 = vsel %vm3448, %v3416, %v2905
      %v3450 = vsel %vm3448, %v3417, %v2907
      %v3451 = vsel %vm3448, %v3418, %v2909
      %v3452 = vsel %vm3448, %v3419, %v2911
      %v3453 = vsel %vm3448, %v3420, %v2913
      %v3454 = vsel %vm3448, %v3421, %v2915
      %v3455 = vsel %vm3448, %v3422, %v2917
      %v3456 = vsel %vm3448, %v3423, %v2919
      %v3457 = vsel %vm3448, %v3424, %v2921
      %v3458 = vsel %vm3448, %v3425, %v2923
      %v3459 = vsel %vm3448, %v3426, %v2925
      %v3460 = vsel %vm3448, %v3427, %v2927
      %v3461 = vsel %vm3448, %v3428, %v2929
      %v3462 = vsel %vm3448, %v3429, %v2931
      %v3463 = vsel %vm3448, %v3430, %v2933
      %v3464 = vsel %vm3448, %v3431, %v2935
      %v3465 = vsel %vm3448, %v3432, %v2937
      %v3466 = vsel %vm3448, %v3433, %v2939
      %v3467 = vsel %vm3448, %v3434, %v2941
      %v3468 = vsel %vm3448, %v3435, %v2943
      %v3469 = vsel %vm3448, %v3436, %v2945
      %v3470 = vsel %vm3448, %v3437, %v2947
      %v3471 = vsel %vm3448, %v3438, %v2949
      %v3472 = vsel %vm3448, %v3439, %v2951
      %v3473 = vsel %vm3448, %v3440, %v2953
      %v3474 = vsel %vm3448, %v3441, %v2955
      %v3475 = vsel %vm3448, %v3442, %v2957
      %v3476 = vsel %vm3448, %v3443, %v2959
      %v3477 = vsel %vm3448, %v3444, %v2961
      %v3478 = vsel %vm3448, %v3445, %v2963
      %v3479 = vsel %vm3448, %v3446, %v2965
      %v3480 = vsel %vm3448, %v3447, %v2967
      %v3481 = vsel %vm634, %v2455, %v3033
      %v3482 = vsel %vm634, %v2456, %v3035
      %v3483 = vsel %vm634, %v2457, %v3037
      %v3484 = vsel %vm634, %v2458, %v3039
      %v3485 = vsel %vm634, %v2459, %v3041
      %v3486 = vsel %vm634, %v2460, %v3043
      %v3487 = vsel %vm634, %v2461, %v3045
      %v3488 = vsel %vm634, %v2462, %v3047
      %v3489 = vsel %vm634, %v2463, %v3049
      %v3490 = vsel %vm634, %v2464, %v3051
      %v3491 = vsel %vm634, %v2465, %v3053
      %v3492 = vsel %vm634, %v2466, %v3055
      %v3493 = vsel %vm634, %v2467, %v3057
      %v3494 = vsel %vm634, %v2468, %v3059
      %v3495 = vsel %vm634, %v2469, %v3061
      %v3496 = vsel %vm634, %v2470, %v3063
      %v3497 = vsel %vm634, %v2471, %v3065
      %v3498 = vsel %vm634, %v2472, %v3067
      %v3499 = vsel %vm634, %v2473, %v3069
      %v3500 = vsel %vm634, %v2474, %v3071
      %v3501 = vsel %vm634, %v2475, %v3073
      %v3502 = vsel %vm634, %v2476, %v3075
      %v3503 = vsel %vm634, %v2477, %v3077
      %v3504 = vsel %vm634, %v2478, %v3079
      %v3505 = vsel %vm634, %v2479, %v3081
      %v3506 = vsel %vm634, %v2480, %v3083
      %v3507 = vsel %vm634, %v2481, %v3085
      %v3508 = vsel %vm634, %v2482, %v3087
      %v3509 = vsel %vm634, %v2483, %v3089
      %v3510 = vsel %vm634, %v2484, %v3091
      %v3511 = vsel %vm634, %v2485, %v3093
      %v3512 = vsel %vm634, %v2486, %v3095
      %v3513 = vsel %vm424, %v3481, %v3161
      %v3514 = vsel %vm424, %v3482, %v3163
      %v3515 = vsel %vm424, %v3483, %v3165
      %v3516 = vsel %vm424, %v3484, %v3167
      %v3517 = vsel %vm424, %v3485, %v3169
      %v3518 = vsel %vm424, %v3486, %v3171
      %v3519 = vsel %vm424, %v3487, %v3173
      %v3520 = vsel %vm424, %v3488, %v3175
      %v3521 = vsel %vm424, %v3489, %v3177
      %v3522 = vsel %vm424, %v3490, %v3179
      %v3523 = vsel %vm424, %v3491, %v3181
      %v3524 = vsel %vm424, %v3492, %v3183
      %v3525 = vsel %vm424, %v3493, %v3185
      %v3526 = vsel %vm424, %v3494, %v3187
      %v3527 = vsel %vm424, %v3495, %v3189
      %v3528 = vsel %vm424, %v3496, %v3191
      %v3529 = vsel %vm424, %v3497, %v3193
      %v3530 = vsel %vm424, %v3498, %v3195
      %v3531 = vsel %vm424, %v3499, %v3197
      %v3532 = vsel %vm424, %v3500, %v3199
      %v3533 = vsel %vm424, %v3501, %v3201
      %v3534 = vsel %vm424, %v3502, %v3203
      %v3535 = vsel %vm424, %v3503, %v3205
      %v3536 = vsel %vm424, %v3504, %v3207
      %v3537 = vsel %vm424, %v3505, %v3209
      %v3538 = vsel %vm424, %v3506, %v3211
      %v3539 = vsel %vm424, %v3507, %v3213
      %v3540 = vsel %vm424, %v3508, %v3215
      %v3541 = vsel %vm424, %v3509, %v3217
      %v3542 = vsel %vm424, %v3510, %v3219
      %v3543 = vsel %vm424, %v3511, %v3221
      %v3544 = vsel %vm424, %v3512, %v3223
      %v3545 = vsel %vm3448, %v3513, %v3289
      %v3546 = vsel %vm3448, %v3514, %v3291
      %v3547 = vsel %vm3448, %v3515, %v3293
      %v3548 = vsel %vm3448, %v3516, %v3295
      %v3549 = vsel %vm3448, %v3517, %v3297
      %v3550 = vsel %vm3448, %v3518, %v3299
      %v3551 = vsel %vm3448, %v3519, %v3301
      %v3552 = vsel %vm3448, %v3520, %v3303
      %v3553 = vsel %vm3448, %v3521, %v3305
      %v3554 = vsel %vm3448, %v3522, %v3307
      %v3555 = vsel %vm3448, %v3523, %v3309
      %v3556 = vsel %vm3448, %v3524, %v3311
      %v3557 = vsel %vm3448, %v3525, %v3313
      %v3558 = vsel %vm3448, %v3526, %v3315
      %v3559 = vsel %vm3448, %v3527, %v3317
      %v3560 = vsel %vm3448, %v3528, %v3319
      %v3561 = vsel %vm3448, %v3529, %v3321
      %v3562 = vsel %vm3448, %v3530, %v3323
      %v3563 = vsel %vm3448, %v3531, %v3325
      %v3564 = vsel %vm3448, %v3532, %v3327
      %v3565 = vsel %vm3448, %v3533, %v3329
      %v3566 = vsel %vm3448, %v3534, %v3331
      %v3567 = vsel %vm3448, %v3535, %v3333
      %v3568 = vsel %vm3448, %v3536, %v3335
      %v3569 = vsel %vm3448, %v3537, %v3337
      %v3570 = vsel %vm3448, %v3538, %v3339
      %v3571 = vsel %vm3448, %v3539, %v3341
      %v3572 = vsel %vm3448, %v3540, %v3343
      %v3573 = vsel %vm3448, %v3541, %v3345
      %v3574 = vsel %vm3448, %v3542, %v3347
      %v3575 = vsel %vm3448, %v3543, %v3349
      %v3576 = vsel %vm3448, %v3544, %v3351
      %v3577 = vpack.c.bf16 %v3450, %v3449
      %v3578 = vpack.c.bf16 %v3546, %v3545
      %v3579 = vpack.c.bf16 %v2585, %v2584
      %v3580 = vpack.c.bf16 %v3452, %v3451
      %v3581 = vpack.c.bf16 %v3548, %v3547
      %v3582 = vpack.c.bf16 %v2587, %v2586
      %v3583 = vpack.c.bf16 %v3454, %v3453
      %v3584 = vpack.c.bf16 %v3550, %v3549
      %v3585 = vpack.c.bf16 %v2589, %v2588
      %v3586 = vpack.c.bf16 %v3456, %v3455
      %v3587 = vpack.c.bf16 %v3552, %v3551
      %v3588 = vpack.c.bf16 %v2591, %v2590
      %v3589 = vpack.c.bf16 %v3458, %v3457
      %v3590 = vpack.c.bf16 %v3554, %v3553
      %v3591 = vpack.c.bf16 %v2593, %v2592
      %v3592 = vpack.c.bf16 %v3460, %v3459
      %v3593 = vpack.c.bf16 %v3556, %v3555
      %v3594 = vpack.c.bf16 %v2595, %v2594
      %v3595 = vpack.c.bf16 %v3462, %v3461
      %v3596 = vpack.c.bf16 %v3558, %v3557
      %v3597 = vpack.c.bf16 %v2597, %v2596
      %v3598 = vpack.c.bf16 %v3464, %v3463
      %v3599 = vpack.c.bf16 %v3560, %v3559
      %v3600 = vpack.c.bf16 %v2599, %v2598
      %v3601 = vpack.c.bf16 %v3466, %v3465
      %v3602 = vpack.c.bf16 %v3562, %v3561
      %v3603 = vpack.c.bf16 %v2601, %v2600
      %v3604 = vpack.c.bf16 %v3468, %v3467
      %v3605 = vpack.c.bf16 %v3564, %v3563
      %v3606 = vpack.c.bf16 %v2603, %v2602
      %v3607 = vpack.c.bf16 %v3470, %v3469
      %v3608 = vpack.c.bf16 %v3566, %v3565
      %v3609 = vpack.c.bf16 %v2605, %v2604
      %v3610 = vpack.c.bf16 %v3472, %v3471
      %v3611 = vpack.c.bf16 %v3568, %v3567
      %v3612 = vpack.c.bf16 %v2607, %v2606
      %v3613 = vpack.c.bf16 %v3474, %v3473
      %v3614 = vpack.c.bf16 %v3570, %v3569
      %v3615 = vpack.c.bf16 %v2609, %v2608
      %v3616 = vpack.c.bf16 %v3476, %v3475
      %v3617 = vpack.c.bf16 %v3572, %v3571
      %v3618 = vpack.c.bf16 %v2611, %v2610
      %v3619 = vpack.c.bf16 %v3478, %v3477
      %v3620 = vpack.c.bf16 %v3574, %v3573
      %v3621 = vpack.c.bf16 %v2613, %v2612
      %v3622 = vpack.c.bf16 %v3480, %v3479
      %v3623 = vpack.c.bf16 %v3576, %v3575
      %v3624 = vpack.c.bf16 %v2615, %v2614
      %v3625 = vld [vmem:[%s5] sm:$0xf]
      %v3626 = vld [vmem:[%s5 + $0x4] sm:$0xf]
      %v3627 = vld [vmem:[%s5 + $0x8] sm:$0xf]
      %v3628 = vld [vmem:[%s5 + $0xc] sm:$0xf]
      %v3629 = vld [vmem:[%s5 + $0x10] sm:$0xf]
      %v3630 = vld [vmem:[%s5 + $0x14] sm:$0xf]
      %v3631 = vld [vmem:[%s5 + $0x18] sm:$0xf]
      %v3632 = vld [vmem:[%s5 + $0x1c] sm:$0xf]
      %v3633 = vld [vmem:[%s5 + $0x20] sm:$0xf]
      %v3634 = vld [vmem:[%s5 + $0x24] sm:$0xf]
      %v3635 = vld [vmem:[%s5 + $0x28] sm:$0xf]
      %v3636 = vld [vmem:[%s5 + $0x2c] sm:$0xf]
      %v3637 = vld [vmem:[%s5 + $0x30] sm:$0xf]
      %v3638 = vld [vmem:[%s5 + $0x34] sm:$0xf]
      %v3639 = vld [vmem:[%s5 + $0x38] sm:$0xf]
      %v3640 = vld [vmem:[%s5 + $0x3c] sm:$0xf]
      %v3641 = vld [vmem:[%s5 + $0x40] sm:$0xf]
      %v3642 = vld [vmem:[%s5 + $0x44] sm:$0xf]
      %v3643 = vld [vmem:[%s5 + $0x48] sm:$0xf]
      %v3644 = vld [vmem:[%s5 + $0x4c] sm:$0xf]
      %v3645 = vld [vmem:[%s5 + $0x50] sm:$0xf]
      %v3646 = vld [vmem:[%s5 + $0x54] sm:$0xf]
      %v3647 = vld [vmem:[%s5 + $0x58] sm:$0xf]
      %v3648 = vld [vmem:[%s5 + $0x5c] sm:$0xf]
      %v3649 = vld [vmem:[%s5 + $0x60] sm:$0xf]
      %v3650 = vld [vmem:[%s5 + $0x64] sm:$0xf]
      %v3651 = vld [vmem:[%s5 + $0x68] sm:$0xf]
      %v3652 = vld [vmem:[%s5 + $0x6c] sm:$0xf]
      %v3653 = vld [vmem:[%s5 + $0x70] sm:$0xf]
      %v3654 = vld [vmem:[%s5 + $0x74] sm:$0xf]
      %v3655 = vld [vmem:[%s5 + $0x78] sm:$0xf]
      %v3656 = vld [vmem:[%s5 + $0x7c] sm:$0xf]
      %v3657 = vld [vmem:[%s5 + $0x80] sm:$0xf]
      %v3658 = vld [vmem:[%s5 + $0x84] sm:$0xf]
      %v3659 = vld [vmem:[%s5 + $0x88] sm:$0xf]
      %v3660 = vld [vmem:[%s5 + $0x8c] sm:$0xf]
      %v3697 = vunpack.c.l.b16 %v3625
      %v3698 = vunpack.c.l.b16 %v3626
      %v3699 = vunpack.c.l.b16 %v3627
      %v3700 = vunpack.c.l.b16 %v3628
      %v3701 = vunpack.c.l.b16 %v3629
      %v3702 = vunpack.c.l.b16 %v3630
      %v3703 = vunpack.c.l.b16 %v3631
      %v3704 = vunpack.c.l.b16 %v3632
      %v3705 = vunpack.c.l.b16 %v3633
      %v3706 = vunpack.c.l.b16 %v3634
      %v3707 = vunpack.c.l.b16 %v3635
      %v3708 = vunpack.c.l.b16 %v3636
      %v3709 = vunpack.c.l.b16 %v3637
      %v3710 = vunpack.c.l.b16 %v3638
      %v3711 = vunpack.c.l.b16 %v3639
      %v3712 = vunpack.c.l.b16 %v3640
      %v3713 = vunpack.c.l.b16 %v3641
      %v3714 = vunpack.c.l.b16 %v3642
      %v3715 = vunpack.c.l.b16 %v3643
      %v3716 = vunpack.c.l.b16 %v3644
      %v3717 = vunpack.c.l.b16 %v3645
      %v3718 = vunpack.c.l.b16 %v3646
      %v3719 = vunpack.c.l.b16 %v3647
      %v3720 = vunpack.c.l.b16 %v3648
      %v3721 = vunpack.c.l.b16 %v3649
      %v3722 = vunpack.c.l.b16 %v3650
      %v3723 = vunpack.c.l.b16 %v3651
      %v3724 = vunpack.c.l.b16 %v3652
      %v3725 = vunpack.c.l.b16 %v3653
      %v3726 = vunpack.c.l.b16 %v3654
      %v3727 = vunpack.c.l.b16 %v3655
      %v3728 = vunpack.c.l.b16 %v3656
      %v3729 = vunpack.c.l.b16 %v3657
      %v3730 = vunpack.c.l.b16 %v3658
      %v3731 = vunpack.c.l.b16 %v3659
      %v3732 = vunpack.c.l.b16 %v3660
      %v3733 = vpack.c.b16 %v3698, %v3697
      %v3734 = vpack.c.b16 %v3700, %v3699
      %v3735 = vpack.c.b16 %v3702, %v3701
      %v3736 = vpack.c.b16 %v3704, %v3703
      %v3737 = vpack.c.b16 %v3706, %v3705
      %v3738 = vpack.c.b16 %v3708, %v3707
      %v3739 = vpack.c.b16 %v3710, %v3709
      %v3740 = vpack.c.b16 %v3712, %v3711
      %v3741 = vpack.c.b16 %v3714, %v3713
      %v3742 = vpack.c.b16 %v3716, %v3715
      %v3743 = vpack.c.b16 %v3718, %v3717
      %v3744 = vpack.c.b16 %v3720, %v3719
      %v3745 = vpack.c.b16 %v3722, %v3721
      %v3746 = vpack.c.b16 %v3724, %v3723
      %v3747 = vpack.c.b16 %v3726, %v3725
      %v3748 = vpack.c.b16 %v3728, %v3727
      %v3749 = vpack.c.b16 %v3730, %v3729
      %v3750 = vpack.c.b16 %v3732, %v3731
      %v3770 = vsel %vm634, %v3579, 0
      %v3773 = vsel %vm634, %v3582, 0
      %v3776 = vsel %vm634, %v3585, 0
      %v3779 = vsel %vm634, %v3588, 0
      %v3782 = vsel %vm634, %v3591, 0
      %v3785 = vsel %vm634, %v3594, 0
      %v3788 = vsel %vm634, %v3597, 0
      %v3791 = vsel %vm634, %v3600, 0
      %v3794 = vsel %vm634, %v3603, 0
      %v3797 = vsel %vm634, %v3606, 0
      %v3800 = vsel %vm634, %v3609, 0
      %v3803 = vsel %vm634, %v3612, 0
      %v3806 = vsel %vm634, %v3615, 0
      %v3809 = vsel %vm634, %v3618, 0
      %v3812 = vsel %vm634, %v3621, 0
      %v3815 = vsel %vm634, %v3624, 0
      %3817 = vmatprep.subr.bf16.mxu0 0
      %3818 = vmatpush1.bf16.msra.mxu0 %v3733
      %3819 = vmatprep.subr.bf16.mxu0 0
      %3820 = vmatpush1.bf16.msra.mxu0 %v3734
      %3821 = vmatprep.subr.bf16.mxu0 0
      %3822 = vmatpush1.bf16.msra.mxu0 %v3735
      %3823 = vmatprep.subr.bf16.mxu0 0
      %3824 = vmatpush1.bf16.msra.mxu0 %v3736
      %3825 = vmatprep.subr.bf16.mxu0 0
      %3826 = vmatpush1.bf16.msra.mxu0 %v3737
      %3827 = vmatprep.subr.bf16.mxu0 0
      %3828 = vmatpush1.bf16.msra.mxu0 %v3738
      %3829 = vmatprep.subr.bf16.mxu0 0
      %3830 = vmatpush1.bf16.msra.mxu0 %v3739
      %3831 = vmatprep.subr.bf16.mxu0 0
      %3832 = vmatpush1.bf16.msra.mxu0 %v3740
      %3833 = vmatprep.subr.bf16.mxu0 0
      %3834 = vmatpush1.bf16.msra.mxu0 %v3741
      %3835 = vmatprep.subr.bf16.mxu0 0
      %3836 = vmatpush1.bf16.msra.mxu0 %v3742
      %3837 = vmatprep.subr.bf16.mxu0 0
      %3838 = vmatpush1.bf16.msra.mxu0 %v3743
      %3839 = vmatprep.subr.bf16.mxu0 0
      %3840 = vmatpush1.bf16.msra.mxu0 %v3744
      %3841 = vmatprep.subr.bf16.mxu0 0
      %3842 = vmatpush1.bf16.msra.mxu0 %v3745
      %3843 = vmatprep.subr.bf16.mxu0 0
      %3844 = vmatpush1.bf16.msra.mxu0 %v3746
      %3845 = vmatprep.subr.bf16.mxu0 0
      %3846 = vmatpush1.bf16.msra.mxu0 %v3747
      %3847 = vmatprep.subr.bf16.mxu0 0
      %3848 = vmatpush1.bf16.msra.mxu0 %v3748
      %3849 = vmatprep.mubr.bf16.mxu0 %v3578
      %3850 = vmatmul.mubr.bf16.gmra.mrb[0].mxu0 %v3577
      %v3851 = vpop.f32.mrb[0].mxu0
      %v3852 = vadd.f32 0.0, %v3851
      %v3853 = vpop.f32.mrb[0].mxu0
      %v3854 = vpop.f32.mrb[0].mxu0
      %v3855 = vadd.f32 0.0, %v3854
      %v3856 = vpop.f32.mrb[0].mxu0
      %3857 = vmatprep.mubr.bf16.mxu0 %v3581
      %3858 = vmatmul.mubr.bf16.gmra.mrb[0].mxu0 %v3580
      %v3859 = vpop.f32.mrb[0].mxu0
      %v3860 = vadd.f32 0.0, %v3859
      %v3861 = vpop.f32.mrb[0].mxu0
      %v3862 = vpop.f32.mrb[0].mxu0
      %v3863 = vadd.f32 0.0, %v3862
      %v3864 = vpop.f32.mrb[0].mxu0
      %3865 = vmatprep.mubr.bf16.mxu0 %v3584
      %3866 = vmatmul.mubr.bf16.gmra.mrb[0].mxu0 %v3583
      %v3867 = vpop.f32.mrb[0].mxu0
      %v3868 = vadd.f32 0.0, %v3867
      %v3869 = vpop.f32.mrb[0].mxu0
      %v3870 = vpop.f32.mrb[0].mxu0
      %v3871 = vadd.f32 0.0, %v3870
      %v3872 = vpop.f32.mrb[0].mxu0
      %3873 = vmatprep.mubr.bf16.mxu0 %v3587
      %3874 = vmatmul.mubr.bf16.gmra.mrb[0].mxu0 %v3586
      %v3875 = vpop.f32.mrb[0].mxu0
      %v3876 = vadd.f32 0.0, %v3875
      %v3877 = vpop.f32.mrb[0].mxu0
      %v3878 = vpop.f32.mrb[0].mxu0
      %v3879 = vadd.f32 0.0, %v3878
      %v3880 = vpop.f32.mrb[0].mxu0
      %3881 = vmatprep.mubr.bf16.mxu0 %v3590
      %3882 = vmatmul.mubr.bf16.gmra.mrb[0].mxu0 %v3589
      %v3883 = vpop.f32.mrb[0].mxu0
      %v3884 = vadd.f32 0.0, %v3883
      %v3885 = vpop.f32.mrb[0].mxu0
      %v3886 = vpop.f32.mrb[0].mxu0
      %v3887 = vadd.f32 0.0, %v3886
      %v3888 = vpop.f32.mrb[0].mxu0
      %3889 = vmatprep.mubr.bf16.mxu0 %v3593
      %3890 = vmatmul.mubr.bf16.gmra.mrb[0].mxu0 %v3592
      %v3891 = vpop.f32.mrb[0].mxu0
      %v3892 = vadd.f32 0.0, %v3891
      %v3893 = vpop.f32.mrb[0].mxu0
      %v3894 = vpop.f32.mrb[0].mxu0
      %v3895 = vadd.f32 0.0, %v3894
      %v3896 = vpop.f32.mrb[0].mxu0
      %3897 = vmatprep.mubr.bf16.mxu0 %v3596
      %3898 = vmatmul.mubr.bf16.gmra.mrb[0].mxu0 %v3595
      %v3899 = vpop.f32.mrb[0].mxu0
      %v3900 = vadd.f32 0.0, %v3899
      %v3901 = vpop.f32.mrb[0].mxu0
      %v3902 = vpop.f32.mrb[0].mxu0
      %v3903 = vadd.f32 0.0, %v3902
      %v3904 = vpop.f32.mrb[0].mxu0
      %3905 = vmatprep.mubr.bf16.mxu0 %v3599
      %3906 = vmatmul.mubr.bf16.gmra.mrb[0].mxu0 %v3598
      %v3907 = vpop.f32.mrb[0].mxu0
      %v3908 = vadd.f32 0.0, %v3907
      %v3909 = vpop.f32.mrb[0].mxu0
      %v3910 = vpop.f32.mrb[0].mxu0
      %v3911 = vadd.f32 0.0, %v3910
      %v3912 = vpop.f32.mrb[0].mxu0
      %3913 = vmatprep.mubr.bf16.mxu0 %v3602
      %3914 = vmatmul.mubr.bf16.gmra.mrb[0].mxu0 %v3601
      %v3915 = vpop.f32.mrb[0].mxu0
      %v3916 = vadd.f32 0.0, %v3915
      %v3917 = vpop.f32.mrb[0].mxu0
      %v3918 = vpop.f32.mrb[0].mxu0
      %v3919 = vadd.f32 0.0, %v3918
      %v3920 = vpop.f32.mrb[0].mxu0
      %3921 = vmatprep.mubr.bf16.mxu0 %v3605
      %3922 = vmatmul.mubr.bf16.gmra.mrb[0].mxu0 %v3604
      %v3923 = vpop.f32.mrb[0].mxu0
      %v3924 = vadd.f32 0.0, %v3923
      %v3925 = vpop.f32.mrb[0].mxu0
      %v3926 = vpop.f32.mrb[0].mxu0
      %v3927 = vadd.f32 0.0, %v3926
      %v3928 = vpop.f32.mrb[0].mxu0
      %3929 = vmatprep.mubr.bf16.mxu0 %v3608
      %3930 = vmatmul.mubr.bf16.gmra.mrb[0].mxu0 %v3607
      %v3931 = vpop.f32.mrb[0].mxu0
      %v3932 = vadd.f32 0.0, %v3931
      %v3933 = vpop.f32.mrb[0].mxu0
      %v3934 = vpop.f32.mrb[0].mxu0
      %v3935 = vadd.f32 0.0, %v3934
      %v3936 = vpop.f32.mrb[0].mxu0
      %3937 = vmatprep.mubr.bf16.mxu0 %v3611
      %3938 = vmatmul.mubr.bf16.gmra.mrb[0].mxu0 %v3610
      %v3939 = vpop.f32.mrb[0].mxu0
      %v3940 = vadd.f32 0.0, %v3939
      %v3941 = vpop.f32.mrb[0].mxu0
      %v3942 = vpop.f32.mrb[0].mxu0
      %v3943 = vadd.f32 0.0, %v3942
      %v3944 = vpop.f32.mrb[0].mxu0
      %3945 = vmatprep.mubr.bf16.mxu0 %v3614
      %3946 = vmatmul.mubr.bf16.gmra.mrb[0].mxu0 %v3613
      %v3947 = vpop.f32.mrb[0].mxu0
      %v3948 = vadd.f32 0.0, %v3947
      %v3949 = vpop.f32.mrb[0].mxu0
      %v3950 = vpop.f32.mrb[0].mxu0
      %v3951 = vadd.f32 0.0, %v3950
      %v3952 = vpop.f32.mrb[0].mxu0
      %3953 = vmatprep.mubr.bf16.mxu0 %v3617
      %3954 = vmatmul.mubr.bf16.gmra.mrb[0].mxu0 %v3616
      %v3955 = vpop.f32.mrb[0].mxu0
      %v3956 = vadd.f32 0.0, %v3955
      %v3957 = vpop.f32.mrb[0].mxu0
      %v3958 = vpop.f32.mrb[0].mxu0
      %v3959 = vadd.f32 0.0, %v3958
      %v3960 = vpop.f32.mrb[0].mxu0
      %3961 = vmatprep.mubr.bf16.mxu0 %v3620
      %3962 = vmatmul.mubr.bf16.gmra.mrb[0].mxu0 %v3619
      %v3963 = vpop.f32.mrb[0].mxu0
      %v3964 = vadd.f32 0.0, %v3963
      %v3965 = vpop.f32.mrb[0].mxu0
      %v3966 = vpop.f32.mrb[0].mxu0
      %v3967 = vadd.f32 0.0, %v3966
      %v3968 = vpop.f32.mrb[0].mxu0
      %3969 = vmatprep.mubr.bf16.mxu0 %v3623
      %3970 = vmatmul.mubr.bf16.gmra.mrb[0].mxu0 %v3622
      %v3971 = vpop.f32.mrb[0].mxu0
      %v3972 = vadd.f32 0.0, %v3971
      %v3973 = vpop.f32.mrb[0].mxu0
      %v3974 = vpop.f32.mrb[0].mxu0
      %v3975 = vadd.f32 0.0, %v3974
      %v3976 = vpop.f32.mrb[0].mxu0
      %3977 = vdwg.mxu0
      %3978 = vmatprep.subr.bf16.mxu0 0
      %3979 = vmatpush1.bf16.msra.mxu0 %v3749
      %3980 = vmatprep.subr.bf16.mxu0 0
      %3981 = vmatpush1.bf16.msra.mxu0 %v3750
      %3982 = vmatprep.subr.bf16.mxu0 0
      %3983 = vmatpush1.bf16.msra.mxu0 0
      %3984 = vmatprep.subr.bf16.mxu0 0
      %3985 = vmatpush1.bf16.msra.mxu0 0
      %3986 = vmatprep.subr.bf16.mxu0 0
      %3987 = vmatpush1.bf16.msra.mxu0 0
      %3988 = vmatprep.subr.bf16.mxu0 0
      %3989 = vmatpush1.bf16.msra.mxu0 0
      %3990 = vmatprep.subr.bf16.mxu0 0
      %3991 = vmatpush1.bf16.msra.mxu0 0
      %3992 = vmatprep.subr.bf16.mxu0 0
      %3993 = vmatpush1.bf16.msra.mxu0 0
      %3994 = vmatprep.subr.bf16.mxu0 0
      %3995 = vmatpush1.bf16.msra.mxu0 0
      %3996 = vmatprep.subr.bf16.mxu0 0
      %3997 = vmatpush1.bf16.msra.mxu0 0
      %3998 = vmatprep.subr.bf16.mxu0 0
      %3999 = vmatpush1.bf16.msra.mxu0 0
      %4000 = vmatprep.subr.bf16.mxu0 0
      %4001 = vmatpush1.bf16.msra.mxu0 0
      %4002 = vmatprep.subr.bf16.mxu0 0
      %4003 = vmatpush1.bf16.msra.mxu0 0
      %4004 = vmatprep.subr.bf16.mxu0 0
      %4005 = vmatpush1.bf16.msra.mxu0 0
      %4006 = vmatprep.subr.bf16.mxu0 0
      %4007 = vmatpush1.bf16.msra.mxu0 0
      %4008 = vmatprep.subr.bf16.mxu0 0
      %4009 = vmatpush1.bf16.msra.mxu0 0
      %4010 = vmatprep.mubr.bf16.mxu0 0
      %4011 = vmatmul.mubr.bf16.gmra.mrb[0].mxu0 %v3770
      %v4012 = vpop.f32.mrb[0].mxu0
      %v4013 = vadd.f32 %v3852, %v4012
      %v4014 = vpop.f32.mrb[0].mxu0
      %v4015 = vpop.f32.mrb[0].mxu0
      %v4016 = vadd.f32 %v3855, %v4015
      %v4017 = vpop.f32.mrb[0].mxu0
      %4018 = vmatprep.mubr.bf16.mxu0 0
      %4019 = vmatmul.mubr.bf16.gmra.mrb[0].mxu0 %v3773
      %v4020 = vpop.f32.mrb[0].mxu0
      %v4021 = vadd.f32 %v3860, %v4020
      %v4022 = vpop.f32.mrb[0].mxu0
      %v4023 = vpop.f32.mrb[0].mxu0
      %v4024 = vadd.f32 %v3863, %v4023
      %v4025 = vpop.f32.mrb[0].mxu0
      %4026 = vmatprep.mubr.bf16.mxu0 0
      %4027 = vmatmul.mubr.bf16.gmra.mrb[0].mxu0 %v3776
      %v4028 = vpop.f32.mrb[0].mxu0
      %v4029 = vadd.f32 %v3868, %v4028
      %v4030 = vpop.f32.mrb[0].mxu0
      %v4031 = vpop.f32.mrb[0].mxu0
      %v4032 = vadd.f32 %v3871, %v4031
      %v4033 = vpop.f32.mrb[0].mxu0
      %4034 = vmatprep.mubr.bf16.mxu0 0
      %4035 = vmatmul.mubr.bf16.gmra.mrb[0].mxu0 %v3779
      %v4036 = vpop.f32.mrb[0].mxu0
      %v4037 = vadd.f32 %v3876, %v4036
      %v4038 = vpop.f32.mrb[0].mxu0
      %v4039 = vpop.f32.mrb[0].mxu0
      %v4040 = vadd.f32 %v3879, %v4039
      %v4041 = vpop.f32.mrb[0].mxu0
      %4042 = vmatprep.mubr.bf16.mxu0 0
      %4043 = vmatmul.mubr.bf16.gmra.mrb[0].mxu0 %v3782
      %v4044 = vpop.f32.mrb[0].mxu0
      %v4045 = vadd.f32 %v3884, %v4044
      %v4046 = vpop.f32.mrb[0].mxu0
      %v4047 = vpop.f32.mrb[0].mxu0
      %v4048 = vadd.f32 %v3887, %v4047
      %v4049 = vpop.f32.mrb[0].mxu0
      %4050 = vmatprep.mubr.bf16.mxu0 0
      %4051 = vmatmul.mubr.bf16.gmra.mrb[0].mxu0 %v3785
      %v4052 = vpop.f32.mrb[0].mxu0
      %v4053 = vadd.f32 %v3892, %v4052
      %v4054 = vpop.f32.mrb[0].mxu0
      %v4055 = vpop.f32.mrb[0].mxu0
      %v4056 = vadd.f32 %v3895, %v4055
      %v4057 = vpop.f32.mrb[0].mxu0
      %4058 = vmatprep.mubr.bf16.mxu0 0
      %4059 = vmatmul.mubr.bf16.gmra.mrb[0].mxu0 %v3788
      %v4060 = vpop.f32.mrb[0].mxu0
      %v4061 = vadd.f32 %v3900, %v4060
      %v4062 = vpop.f32.mrb[0].mxu0
      %v4063 = vpop.f32.mrb[0].mxu0
      %v4064 = vadd.f32 %v3903, %v4063
      %v4065 = vpop.f32.mrb[0].mxu0
      %4066 = vmatprep.mubr.bf16.mxu0 0
      %4067 = vmatmul.mubr.bf16.gmra.mrb[0].mxu0 %v3791
      %v4068 = vpop.f32.mrb[0].mxu0
      %v4069 = vadd.f32 %v3908, %v4068
      %v4070 = vpop.f32.mrb[0].mxu0
      %v4071 = vpop.f32.mrb[0].mxu0
      %v4072 = vadd.f32 %v3911, %v4071
      %v4073 = vpop.f32.mrb[0].mxu0
      %4074 = vmatprep.mubr.bf16.mxu0 0
      %4075 = vmatmul.mubr.bf16.gmra.mrb[0].mxu0 %v3794
      %v4076 = vpop.f32.mrb[0].mxu0
      %v4077 = vadd.f32 %v3916, %v4076
      %v4078 = vpop.f32.mrb[0].mxu0
      %v4079 = vpop.f32.mrb[0].mxu0
      %v4080 = vadd.f32 %v3919, %v4079
      %v4081 = vpop.f32.mrb[0].mxu0
      %4082 = vmatprep.mubr.bf16.mxu0 0
      %4083 = vmatmul.mubr.bf16.gmra.mrb[0].mxu0 %v3797
      %v4084 = vpop.f32.mrb[0].mxu0
      %v4085 = vadd.f32 %v3924, %v4084
      %v4086 = vpop.f32.mrb[0].mxu0
      %v4087 = vpop.f32.mrb[0].mxu0
      %v4088 = vadd.f32 %v3927, %v4087
      %v4089 = vpop.f32.mrb[0].mxu0
      %4090 = vmatprep.mubr.bf16.mxu0 0
      %4091 = vmatmul.mubr.bf16.gmra.mrb[0].mxu0 %v3800
      %v4092 = vpop.f32.mrb[0].mxu0
      %v4093 = vadd.f32 %v3932, %v4092
      %v4094 = vpop.f32.mrb[0].mxu0
      %v4095 = vpop.f32.mrb[0].mxu0
      %v4096 = vadd.f32 %v3935, %v4095
      %v4097 = vpop.f32.mrb[0].mxu0
      %4098 = vmatprep.mubr.bf16.mxu0 0
      %4099 = vmatmul.mubr.bf16.gmra.mrb[0].mxu0 %v3803
      %v4100 = vpop.f32.mrb[0].mxu0
      %v4101 = vadd.f32 %v3940, %v4100
      %v4102 = vpop.f32.mrb[0].mxu0
      %v4103 = vpop.f32.mrb[0].mxu0
      %v4104 = vadd.f32 %v3943, %v4103
      %v4105 = vpop.f32.mrb[0].mxu0
      %4106 = vmatprep.mubr.bf16.mxu0 0
      %4107 = vmatmul.mubr.bf16.gmra.mrb[0].mxu0 %v3806
      %v4108 = vpop.f32.mrb[0].mxu0
      %v4109 = vadd.f32 %v3948, %v4108
      %v4110 = vpop.f32.mrb[0].mxu0
      %v4111 = vpop.f32.mrb[0].mxu0
      %v4112 = vadd.f32 %v3951, %v4111
      %v4113 = vpop.f32.mrb[0].mxu0
      %4114 = vmatprep.mubr.bf16.mxu0 0
      %4115 = vmatmul.mubr.bf16.gmra.mrb[0].mxu0 %v3809
      %v4116 = vpop.f32.mrb[0].mxu0
      %v4117 = vadd.f32 %v3956, %v4116
      %v4118 = vpop.f32.mrb[0].mxu0
      %v4119 = vpop.f32.mrb[0].mxu0
      %v4120 = vadd.f32 %v3959, %v4119
      %v4121 = vpop.f32.mrb[0].mxu0
      %4122 = vmatprep.mubr.bf16.mxu0 0
      %4123 = vmatmul.mubr.bf16.gmra.mrb[0].mxu0 %v3812
      %v4124 = vpop.f32.mrb[0].mxu0
      %v4125 = vadd.f32 %v3964, %v4124
      %v4126 = vpop.f32.mrb[0].mxu0
      %v4127 = vpop.f32.mrb[0].mxu0
      %v4128 = vadd.f32 %v3967, %v4127
      %v4129 = vpop.f32.mrb[0].mxu0
      %4130 = vmatprep.mubr.bf16.mxu0 0
      %4131 = vmatmul.mubr.bf16.gmra.mrb[0].mxu0 %v3815
      %v4132 = vpop.f32.mrb[0].mxu0
      %v4133 = vadd.f32 %v3972, %v4132
      %v4134 = vpop.f32.mrb[0].mxu0
      %v4135 = vpop.f32.mrb[0].mxu0
      %v4136 = vadd.f32 %v3975, %v4135
      %v4137 = vpop.f32.mrb[0].mxu0
      %4138 = vdwg.mxu0
      %v4139 = vld [vmem:[%s6] sm:$0x1]
      %v4140 = vlaneseq
      %v4141 = vshrl.u32 %v4140, 7
      %v4142 = vsub.s32 0, %v4141
      %v4143 = vrot.slane %v4139, %v4142
      %v4144 = vmul.f32 %v4013, %v4143
      %v4145 = vmul.f32 %v4016, %v4143
      %v4146 = vmul.f32 %v4021, %v4143
      %v4147 = vmul.f32 %v4024, %v4143
      %v4148 = vmul.f32 %v4029, %v4143
      %v4149 = vmul.f32 %v4032, %v4143
      %v4150 = vmul.f32 %v4037, %v4143
      %v4151 = vmul.f32 %v4040, %v4143
      %v4152 = vmul.f32 %v4045, %v4143
      %v4153 = vmul.f32 %v4048, %v4143
      %v4154 = vmul.f32 %v4053, %v4143
      %v4155 = vmul.f32 %v4056, %v4143
      %v4156 = vmul.f32 %v4061, %v4143
      %v4157 = vmul.f32 %v4064, %v4143
      %v4158 = vmul.f32 %v4069, %v4143
      %v4159 = vmul.f32 %v4072, %v4143
      %v4160 = vmul.f32 %v4077, %v4143
      %v4161 = vmul.f32 %v4080, %v4143
      %v4162 = vmul.f32 %v4085, %v4143
      %v4163 = vmul.f32 %v4088, %v4143
      %v4164 = vmul.f32 %v4093, %v4143
      %v4165 = vmul.f32 %v4096, %v4143
      %v4166 = vmul.f32 %v4101, %v4143
      %v4167 = vmul.f32 %v4104, %v4143
      %v4168 = vmul.f32 %v4109, %v4143
      %v4169 = vmul.f32 %v4112, %v4143
      %v4170 = vmul.f32 %v4117, %v4143
      %v4171 = vmul.f32 %v4120, %v4143
      %v4172 = vmul.f32 %v4125, %v4143
      %v4173 = vmul.f32 %v4128, %v4143
      %v4174 = vmul.f32 %v4133, %v4143
      %v4175 = vmul.f32 %v4136, %v4143
      %v4176 = vld [vmem:[%s6 + $0x1] sm:$0x1]
      %v4177 = vlaneseq
      %v4178 = vshrl.u32 %v4177, 7
      %v4179 = vsub.s32 0, %v4178
      %v4180 = vrot.slane %v4176, %v4179
      %v4181 = vadd.f32 %v4144, %v4180
      %v4182 = vadd.f32 %v4145, %v4180
      %v4183 = vadd.f32 %v4146, %v4180
      %v4184 = vadd.f32 %v4147, %v4180
      %v4185 = vadd.f32 %v4148, %v4180
      %v4186 = vadd.f32 %v4149, %v4180
      %v4187 = vadd.f32 %v4150, %v4180
      %v4188 = vadd.f32 %v4151, %v4180
      %v4189 = vadd.f32 %v4152, %v4180
      %v4190 = vadd.f32 %v4153, %v4180
      %v4191 = vadd.f32 %v4154, %v4180
      %v4192 = vadd.f32 %v4155, %v4180
      %v4193 = vadd.f32 %v4156, %v4180
      %v4194 = vadd.f32 %v4157, %v4180
      %v4195 = vadd.f32 %v4158, %v4180
      %v4196 = vadd.f32 %v4159, %v4180
      %v4197 = vadd.f32 %v4160, %v4180
      %v4198 = vadd.f32 %v4161, %v4180
      %v4199 = vadd.f32 %v4162, %v4180
      %v4200 = vadd.f32 %v4163, %v4180
      %v4201 = vadd.f32 %v4164, %v4180
      %v4202 = vadd.f32 %v4165, %v4180
      %v4203 = vadd.f32 %v4166, %v4180
      %v4204 = vadd.f32 %v4167, %v4180
      %v4205 = vadd.f32 %v4168, %v4180
      %v4206 = vadd.f32 %v4169, %v4180
      %v4207 = vadd.f32 %v4170, %v4180
      %v4208 = vadd.f32 %v4171, %v4180
      %v4209 = vadd.f32 %v4172, %v4180
      %v4210 = vadd.f32 %v4173, %v4180
      %v4211 = vadd.f32 %v4174, %v4180
      %v4212 = vadd.f32 %v4175, %v4180
      %vm4213 = vcmask 130048
      %4214 = vst.msk [vmem:[%s278] sm:$0xff] %vm4213, %v4181
      %4215 = vst.msk [vmem:[%s278 + $0x8] sm:$0xff] %vm4213, %v4182
      %4216 = vst.msk [vmem:[%s278 + $0x10] sm:$0xff] %vm4213, %v4183
      %4217 = vst.msk [vmem:[%s278 + $0x18] sm:$0xff] %vm4213, %v4184
      %4218 = vst.msk [vmem:[%s278 + $0x20] sm:$0xff] %vm4213, %v4185
      %4219 = vst.msk [vmem:[%s278 + $0x28] sm:$0xff] %vm4213, %v4186
      %4220 = vst.msk [vmem:[%s278 + $0x30] sm:$0xff] %vm4213, %v4187
      %4221 = vst.msk [vmem:[%s278 + $0x38] sm:$0xff] %vm4213, %v4188
      %4222 = vst.msk [vmem:[%s278 + $0x40] sm:$0xff] %vm4213, %v4189
      %4223 = vst.msk [vmem:[%s278 + $0x48] sm:$0xff] %vm4213, %v4190
      %4224 = vst.msk [vmem:[%s278 + $0x50] sm:$0xff] %vm4213, %v4191
      %4225 = vst.msk [vmem:[%s278 + $0x58] sm:$0xff] %vm4213, %v4192
      %4226 = vst.msk [vmem:[%s278 + $0x60] sm:$0xff] %vm4213, %v4193
      %4227 = vst.msk [vmem:[%s278 + $0x68] sm:$0xff] %vm4213, %v4194
      %4228 = vst.msk [vmem:[%s278 + $0x70] sm:$0xff] %vm4213, %v4195
      %4229 = vst.msk [vmem:[%s278 + $0x78] sm:$0xff] %vm4213, %v4196
      %4230 = vst.msk [vmem:[%s278 + $0x80] sm:$0xff] %vm4213, %v4197
      %4231 = vst.msk [vmem:[%s278 + $0x88] sm:$0xff] %vm4213, %v4198
      %4232 = vst.msk [vmem:[%s278 + $0x90] sm:$0xff] %vm4213, %v4199
      %4233 = vst.msk [vmem:[%s278 + $0x98] sm:$0xff] %vm4213, %v4200
      %4234 = vst.msk [vmem:[%s278 + $0xa0] sm:$0xff] %vm4213, %v4201
      %4235 = vst.msk [vmem:[%s278 + $0xa8] sm:$0xff] %vm4213, %v4202
      %4236 = vst.msk [vmem:[%s278 + $0xb0] sm:$0xff] %vm4213, %v4203
      %4237 = vst.msk [vmem:[%s278 + $0xb8] sm:$0xff] %vm4213, %v4204
      %4238 = vst.msk [vmem:[%s278 + $0xc0] sm:$0xff] %vm4213, %v4205
      %4239 = vst.msk [vmem:[%s278 + $0xc8] sm:$0xff] %vm4213, %v4206
      %4240 = vst.msk [vmem:[%s278 + $0xd0] sm:$0xff] %vm4213, %v4207
      %4241 = vst.msk [vmem:[%s278 + $0xd8] sm:$0xff] %vm4213, %v4208
      %4242 = vst.msk [vmem:[%s278 + $0xe0] sm:$0xff] %vm4213, %v4209
      %4243 = vst.msk [vmem:[%s278 + $0xe8] sm:$0xff] %vm4213, %v4210
      %4244 = vst.msk [vmem:[%s278 + $0xf0] sm:$0xff] %vm4213, %v4211
      %4245 = vst.msk [vmem:[%s278 + $0xf8] sm:$0xff] %vm4213, %v4212
      %p4246 = scmp.lt.s32.totalorder %s18, 1
      %s4247 = scalar_select %p4246, %s18, 1
      %s4248 = smul.addr %s4247, 32
      %s4249 = smul.addr %s4248, 8
      %s4250 = scalar_lea.vmem %s7, %s4249
      // Predicated region
      $region49: #{tpu_custom_call.1} parent=47 // pred_check
        %p4251 = pneg %p188
      $region50: #{tpu_custom_call.1} parent=47 // pred_check_branch
        %4253 = sbr.rel (%p4251) target = $region52
      $region51: #{tpu_custom_call.1} parent=47 // pred_region
        _
      $region52: #{tpu_custom_call.1} parent=47 // pred_fallthru
        _
    $region48: #{tpu_custom_call.1} parent=5 // pred_fallthru
      _
    %p4254 = scmp.le.s32.totalorder 2, %s13
    // Predicated region
    $region53: #{tpu_custom_call.1} parent=5 // pred_check
      %p4255 = pneg %p4254
    $region54: #{tpu_custom_call.1} parent=5 // pred_check_branch
      %4257 = sbr.rel (%p4255) target = $region56
    $region55: #{tpu_custom_call.1} parent=5 // pred_region
      %s4258 = ssub.s32 %s13, 2
      // Predicated region
      $region57: #{tpu_custom_call.1} parent=55 // pred_check
        %p4259 = pneg %p194
      $region58: #{tpu_custom_call.1} parent=55 // pred_check_branch
        %4261 = sbr.rel (%p4259) target = $region60
      $region59: #{tpu_custom_call.1} parent=55 // pred_region
        %p4262 = scmp.lt.s32.totalorder %s19, 1
        %s4263 = scalar_select %p4262, %s19, 1
        %s4264 = smul.addr %s4263, 32
        %s4265 = smul.addr %s4264, 8
        %s4266 = scalar_lea.vmem %s7, %s4265
      $region60: #{tpu_custom_call.1} parent=55 // pred_fallthru
        _
    $region56: #{tpu_custom_call.1} parent=5 // pred_fallthru
      _
  $region6: #{tpu_custom_call.1} parent=0 // loop_footer
    %s17 = sadd.s32 1, %s13
  $region7: #{tpu_custom_call.1} parent=0 // loop_footer_branch
    %12 = sbr.rel target = $region3
  $region8: #{tpu_custom_call.1} parent=0 // loop_exit
    _

</llo_original>
